<compile_context>
chip_gen: v7x
topology: tpu7x:2x2x1
jax: 0.10.0
libtpu: 0.0.40
codegen_flags: <defaults>
</compile_context>

<pallas_src>
import functools

import jax
import jax.numpy as jnp
import numpy as np
from jax import lax
from jax.experimental import pallas as pl
from jax.experimental.pallas import tpu as pltpu

LANES = 128


def _round_up(v, m):
    return ((v + m - 1) // m) * m


def _bottleneck_kernel(xc_ref, xt_ref, xb_ref, cm_ref,
                       w1_ref, w2_ref, w3_ref, b1_ref, b2_ref, b3_ref,
                       o_ref, pad_ref, *, TH, Ws, d, PADTOP):
    """One (batch image, row-strip) step of the fused bottleneck."""
    M = TH * Ws          # flattened pixels in this strip (incl. width padding)
    HBR = d * Ws         # flattened pixels in one d-image-row halo
    s = pl.program_id(1)

    w1 = w1_ref[...]     # (Cp, Cp) bf16, BN1 scale folded in
    b1 = b1_ref[...]     # (1,  Cp) f32

    def conv1(x_f32):
        y = jnp.dot(x_f32.astype(jnp.bfloat16), w1,
                    preferred_element_type=jnp.float32)
        return jnp.maximum(y + b1, 0.0)

    # ---- conv1 + bn1 + relu, written straight into the width-padded scratch.
    # `cm` zeroes the left/right border columns of each image row so that every
    # conv2 tap below is a plain static slice (the zeros supply conv2's spatial
    # zero-padding at the image edges).
    cm = cm_ref[...]                                            # (M, 1) 0/1 f32
    pad_ref[PADTOP + HBR:PADTOP + HBR + M, :] = conv1(xc_ref[...]) * cm

    # Halo rows (d image rows above / below the strip).  At the image top/bottom
    # the halo must be zero; a branch-free scalar gate handles that.
    hm = cm_ref[0:HBR, :]                  # column pattern repeats every Ws rows
    top_gate = (s > 0).astype(jnp.float32)
    bot_gate = (s < pl.num_programs(1) - 1).astype(jnp.float32)
    pad_ref[PADTOP:PADTOP + HBR, :] = conv1(xt_ref[...]) * (hm * top_gate)
    pad_ref[PADTOP + HBR + M:PADTOP + 2 * HBR + M, :] = (
        conv1(xb_ref[...]) * (hm * bot_gate))

    # ---- conv2 (3x3, stride 1, padding = dilation = d) + bn2 + relu.
    # Each tap is a static row slice of the scratch; the 9-tap reduction stays
    # inside the MXU via a single dot with K = 9*Cp.
    taps = []
    for ky in range(3):
        base = PADTOP + ky * d * Ws
        for kx in range(3):
            off = base + (kx - 1) * d
            taps.append(pad_ref[off:off + M, :].astype(jnp.bfloat16))
    lhs = jnp.concatenate(taps, axis=1)                         # (M, 9*Cp) bf16
    out2 = jnp.dot(lhs, w2_ref[...], preferred_element_type=jnp.float32)
    out2 = jnp.maximum(out2 + b2_ref[...], 0.0)

    # ---- conv3 + bn3, identity residual (x re-read from VMEM), relu.
    out3 = jnp.dot(out2.astype(jnp.bfloat16), w3_ref[...],
                   preferred_element_type=jnp.float32)
    out3 = out3 + b3_ref[...] + xc_ref[...]
    o_ref[...] = jnp.maximum(out3, 0.0).astype(o_ref.dtype)


def bottleneck_v1b(x_nhwc, w1_hwio, w2_hwio, w3_hwio,
                   s1, b1, s2, b2, s3, b3, *,
                   dilation=1, stride=1, row_strip=None):
    """Fused BottleneckV1b forward (inference-form BN folded into the convs)."""
    assert stride == 1, "TODO(synk): stride>1 / downsample path not implemented"
    N, H, W, Cin = map(int, x_nhwc.shape)
    planes = int(w1_hwio.shape[-1])
    Cout = int(w3_hwio.shape[-1])
    assert Cin == Cout, "identity residual requires inplanes == planes*expansion"
    d = int(dilation)
    assert d >= 1

    Cp = _round_up(max(Cin, planes, Cout, LANES), LANES)   # lane-dense channels
    Ws = _round_up(W + 2 * d, 8)                           # padded image-row stride

    # ---- image-row strip size TH: multiple of d, divides H, x/out strip ~4 MiB.
    if row_strip is None:
        budget_rows = max(d, (4 << 20) // (Ws * Cp * 4))
        cands = [t for t in range(d, H + 1, d) if H % t == 0]
        assert cands, "dilation must divide H for this tiling"
        fits = [t for t in cands if t <= budget_rows]
        TH = max(fits) if fits else min(cands)
    else:
        TH = int(row_strip)
    assert H % TH == 0 and TH % d == 0, "row strip must divide H, be multiple of d"
    S = H // TH

    M = TH * Ws               # flattened rows per strip
    HBR = d * Ws              # flattened rows per halo
    PADTOP = _round_up(d, 8)  # guard rows so tap slices never go negative
    SROWS = PADTOP + (TH + 2 * d) * Ws + PADTOP

    f32, bf16 = jnp.float32, jnp.bfloat16

    # ---- wrapper-side layout plumbing (free at kernel run time) -------------
    # x: NHWC -> (N*H*Ws, Cp): d zero columns of border per image row (left/right),
    # channels zero-padded to the full 128-lane width.
    xp = jnp.zeros((N, H, Ws, Cp), f32)
    xp = xp.at[:, :, d:d + W, :Cin].set(x_nhwc.astype(f32))
    xp = xp.reshape(N * H * Ws, Cp)

    # BN scales folded into conv weights; padded to Cp lanes and pre-cast to bf16.
    w1f = jnp.zeros((Cp, Cp), f32).at[:Cin, :planes].set(
        w1_hwio[0, 0].astype(f32) * s1.astype(f32)[None, :]).astype(bf16)
    w3f = jnp.zeros((Cp, Cp), f32).at[:planes, :Cout].set(
        w3_hwio[0, 0].astype(f32) * s3.astype(f32)[None, :]).astype(bf16)
    w2s = (w2_hwio.astype(f32) * s2.astype(f32)[None, None, None, :]
           ).reshape(9, planes, planes)
    w2f = jnp.zeros((9, Cp, Cp), f32).at[:, :planes, :planes].set(w2s)
    w2f = w2f.reshape(9 * Cp, Cp).astype(bf16)           # taps stacked along K

    b1p = jnp.zeros((1, Cp), f32).at[0, :planes].set(b1.astype(f32))
    b2p = jnp.zeros((1, Cp), f32).at[0, :planes].set(b2.astype(f32))
    b3p = jnp.zeros((1, Cp), f32).at[0, :Cout].set(b3.astype(f32))

    # 0/1 column-validity mask (border columns invalid); constant across the grid.
    col = jnp.arange(Ws)
    cmask = jnp.tile(((col >= d) & (col < d + W)).astype(f32), TH)[:, None]

    kernel = functools.partial(_bottleneck_kernel, TH=TH, Ws=Ws, d=d,
                               PADTOP=PADTOP)

    Hd, THd = H // d, TH // d
    NBH = N * Hd                               # number of d-row halo blocks in x

    def center_map(n, s):
        return (n * S + s, 0)

    def top_map(n, s):     # last d image rows of the strip above (clamped)
        return (jnp.maximum(n * Hd + s * THd - 1, 0), 0)

    def bot_map(n, s):     # first d image rows of the strip below (clamped)
        return (jnp.minimum(n * Hd + (s + 1) * THd, NBH - 1), 0)

    const2 = lambda n, s: (0, 0)

    # ---- explicit VMEM budget, sized from the strip buffers + headroom -------
    blk = M * Cp * 4
    halo = HBR * Cp * 4
    wbytes = (2 * Cp * Cp + 9 * Cp * Cp) * 2 + 3 * Cp * 4 + M * 4
    temps = M * 9 * Cp * 2 + 2 * M * Cp * 4
    need = 2 * (2 * blk + 2 * halo) + wbytes + SROWS * Cp * 4 + temps
    vmem_limit = int(min(max(2 * need + (4 << 20), 32 << 20), 56 << 20))

    # ---- cost estimate using the padded (lane) dims actually fed to the MXU --
    nsteps = N * S
    flops = 2 * nsteps * Cp * Cp * (M + 2 * HBR + 9 * M + M)
    bytes_accessed = int(
        4 * (xp.size + N * H * Ws * Cp)                # x in, out
        + 4 * nsteps * 2 * HBR * Cp                    # halo re-fetch
        + 2 * (w1f.size + w2f.size + w3f.size) + 12 * Cp
        + nsteps * (4 * SROWS * Cp + 4 * 9 * M * Cp))  # scratch write + tap reads

    out = pl.pallas_call(
        kernel,
        out_shape=jax.ShapeDtypeStruct((N * H * Ws, Cp), x_nhwc.dtype),
        grid_spec=pltpu.PrefetchScalarGridSpec(
            num_scalar_prefetch=0,
            grid=(N, S),
            in_specs=[
                pl.BlockSpec((M, Cp), center_map),        # x, current strip
                pl.BlockSpec((HBR, Cp), top_map),         # x, top halo rows
                pl.BlockSpec((HBR, Cp), bot_map),         # x, bottom halo rows
                pl.BlockSpec((M, 1), const2),             # column mask
                pl.BlockSpec((Cp, Cp), const2),           # w1 (folded bn1)
                pl.BlockSpec((9 * Cp, Cp), const2),       # w2 (folded bn2, K-stacked)
                pl.BlockSpec((Cp, Cp), const2),           # w3 (folded bn3)
                pl.BlockSpec((1, Cp), const2),            # b1
                pl.BlockSpec((1, Cp), const2),            # b2
                pl.BlockSpec((1, Cp), const2),            # b3
            ],
            out_specs=pl.BlockSpec((M, Cp), center_map),
            scratch_shapes=[pltpu.VMEM((SROWS, Cp), jnp.float32)],
        ),
        compiler_params=pltpu.CompilerParams(
            dimension_semantics=("parallel", "parallel"),
            vmem_limit_bytes=vmem_limit),
        cost_estimate=pl.CostEstimate(flops=flops, transcendentals=0,
                                      bytes_accessed=bytes_accessed),
    )(xp, xp, xp, cmask, w1f, w2f, w3f, b1p, b2p, b3p)

    return out.reshape(N, H, Ws, Cp)[:, :, d:d + W, :Cout]


def make_params(key, inplanes, planes, dtype=jnp.float32):
    """Deterministic synthetic parameters (conv weights HWIO, folded BN)."""
    expansion = 4
    outplanes = planes * expansion
    ks = jax.random.split(key, 15)
    w1 = jax.random.normal(ks[0], (1, 1, inplanes, planes), dtype) * 0.2
    w2 = jax.random.normal(ks[1], (3, 3, planes, planes), dtype) * 0.2
    w3 = jax.random.normal(ks[2], (1, 1, planes, outplanes), dtype) * 0.2

    def bn(kg, kb, km, kv, c):
        gamma = jax.random.uniform(kg, (c,), dtype, 0.5, 1.5)
        beta = jax.random.normal(kb, (c,), dtype) * 0.1
        mean = jax.random.normal(km, (c,), dtype) * 0.1
        var = jax.random.uniform(kv, (c,), dtype, 0.5, 1.5)
        eps = 1e-5
        scale = gamma / jnp.sqrt(var + eps)
        bias = beta - mean * scale
        return scale, bias

    s1, b1 = bn(ks[3], ks[4], ks[5], ks[6], planes)
    s2, b2 = bn(ks[7], ks[8], ks[9], ks[10], planes)
    s3, b3 = bn(ks[11], ks[12], ks[13], ks[14], outplanes)
    return w1, w2, w3, s1, b1, s2, b2, s3, b3


def ref_forward(x, w1, w2, w3, s1, b1, s2, b2, s3, b3, d=1):
    """Pure-JAX reference matching the PyTorch forward (inference BN)."""
    dn = ('NHWC', 'HWIO', 'NHWC')
    out = lax.conv_general_dilated(x, w1, (1, 1), 'VALID', dimension_numbers=dn)
    out = jnp.maximum(out * s1 + b1, 0.0)
    out = lax.conv_general_dilated(out, w2, (1, 1), [(d, d), (d, d)],
                                   rhs_dilation=(d, d), dimension_numbers=dn)
    out = jnp.maximum(out * s2 + b2, 0.0)
    out = lax.conv_general_dilated(out, w3, (1, 1), 'VALID', dimension_numbers=dn)
    out = out * s3 + b3
    return jnp.maximum(out + x, 0.0)


if __name__ == "__main__":
    # Module config: inplanes = planes * expansion so the identity residual works.
    inplanes, planes = 16, 4
    N, H, W = 2, 16, 16
    dilation = 1

    key = jax.random.PRNGKey(0)
    kx, kp = jax.random.split(key)

    # PyTorch-convention NCHW input, transposed to NHWC for the TPU kernel.
    x_nchw = jax.random.normal(kx, (N, inplanes, H, W), jnp.float32)
    x_nhwc = jnp.transpose(x_nchw, (0, 2, 3, 1))

    params = make_params(kp, inplanes, planes)

    # row_strip=8 -> 2 strips per image: exercises the halo path and gives the
    # megacore a >=2-way parallel grid.
    out = bottleneck_v1b(x_nhwc, *params, dilation=dilation, row_strip=8)
    out = jax.block_until_ready(out)

    ref = ref_forward(x_nhwc, *params, d=dilation)
    # Tolerance accounts for bf16 matmul operands (f32 accumulation).
    np.testing.assert_allclose(np.asarray(out), np.asarray(ref),
                               rtol=2e-2, atol=2e-2)
    print("KERNEL_OK")
</pallas_src>

<mosaic_0001>
module attributes {stable_mosaic.version = 11 : i64} {
  func.func @_bottleneck_kernel(%arg0: i32, %arg1: i32, %arg2: memref<192x128xf32, #tpu.memory_space<vmem>>, %arg3: memref<24x128xf32, #tpu.memory_space<vmem>>, %arg4: memref<24x128xf32, #tpu.memory_space<vmem>>, %arg5: memref<192x1xf32, #tpu.memory_space<vmem>>, %arg6: memref<128x128xbf16, #tpu.memory_space<vmem>>, %arg7: memref<1152x128xbf16, #tpu.memory_space<vmem>>, %arg8: memref<128x128xbf16, #tpu.memory_space<vmem>>, %arg9: memref<1x128xf32, #tpu.memory_space<vmem>>, %arg10: memref<1x128xf32, #tpu.memory_space<vmem>>, %arg11: memref<1x128xf32, #tpu.memory_space<vmem>>, %arg12: memref<192x128xf32, #tpu.memory_space<vmem>>, %arg13: memref<256x128xf32, #tpu.memory_space<vmem>>) attributes {dimension_semantics = [#tpu.dimension_semantics<parallel>, #tpu.dimension_semantics<parallel>], iteration_bounds = array<i64: 2, 2>, scalar_prefetch = 0 : i64, scratch_operands = 1 : i64, tpu.core_type = #tpu.core_type<tc>, window_params = [{transform_indices = @transform_0, window_bounds = array<i64: 192, 128>}, {transform_indices = @transform_1, window_bounds = array<i64: 24, 128>}, {transform_indices = @transform_2, window_bounds = array<i64: 24, 128>}, {pipeline_mode = #tpu.pipeline_mode<synchronous>, transform_indices = @transform_3, window_bounds = array<i64: 192, 1>}, {pipeline_mode = #tpu.pipeline_mode<synchronous>, transform_indices = @transform_4, window_bounds = array<i64: 128, 128>}, {pipeline_mode = #tpu.pipeline_mode<synchronous>, transform_indices = @transform_5, window_bounds = array<i64: 1152, 128>}, {pipeline_mode = #tpu.pipeline_mode<synchronous>, transform_indices = @transform_6, window_bounds = array<i64: 128, 128>}, {pipeline_mode = #tpu.pipeline_mode<synchronous>, transform_indices = @transform_7, window_bounds = array<i64: 1, 128>}, {pipeline_mode = #tpu.pipeline_mode<synchronous>, transform_indices = @transform_8, window_bounds = array<i64: 1, 128>}, {pipeline_mode = #tpu.pipeline_mode<synchronous>, transform_indices = @transform_9, window_bounds = array<i64: 1, 128>}, {transform_indices = @transform_10, window_bounds = array<i64: 192, 128>}]} {
    %c0 = arith.constant 0 : index
    %c0_0 = arith.constant 0 : index
    %0 = vector.load %arg6[%c0, %c0_0] : memref<128x128xbf16, #tpu.memory_space<vmem>>, vector<128x128xbf16>
    %c0_1 = arith.constant 0 : index
    %c0_2 = arith.constant 0 : index
    %1 = vector.load %arg9[%c0_1, %c0_2] : memref<1x128xf32, #tpu.memory_space<vmem>>, vector<1x128xf32>
    %c0_3 = arith.constant 0 : index
    %c0_4 = arith.constant 0 : index
    %2 = vector.load %arg5[%c0_3, %c0_4] : memref<192x1xf32, #tpu.memory_space<vmem>>, vector<192x1xf32>
    %c0_5 = arith.constant 0 : index
    %c0_6 = arith.constant 0 : index
    %3 = vector.load %arg2[%c0_5, %c0_6] : memref<192x128xf32, #tpu.memory_space<vmem>>, vector<192x128xf32>
    %4 = arith.truncf %3 : vector<192x128xf32> to vector<192x128xbf16>
    %cst = arith.constant dense<0.000000e+00> : vector<192x128xf32>
    %5 = tpu.matmul %4, %0, %cst {dimension_numbers = #tpu.dot_dimension_numbers<[1], [0], [0], [1], [0, 0, 1, 1], [], []>} : vector<192x128xbf16>, vector<128x128xbf16>, vector<192x128xf32> -> vector<192x128xf32>
    %6 = vector.broadcast %1 : vector<1x128xf32> to vector<192x128xf32>
    %7 = arith.addf %5, %6 : vector<192x128xf32>
    %cst_7 = arith.constant 0.000000e+00 : f32
    %8 = vector.broadcast %cst_7 : f32 to vector<192x128xf32>
    %9 = arith.maximumf %7, %8 : vector<192x128xf32>
    %10 = vector.broadcast %2 : vector<192x1xf32> to vector<192x128xf32>
    %11 = arith.mulf %9, %10 : vector<192x128xf32>
    %c32 = arith.constant 32 : index
    %c0_8 = arith.constant 0 : index
    %12 = vector.load %arg13[%c32, %c0_8] : memref<256x128xf32, #tpu.memory_space<vmem>>, vector<192x128xf32>
    tpu.vector_store %arg13[%c32, %c0_8], %11 {strides = array<i32>} : memref<256x128xf32, #tpu.memory_space<vmem>>, vector<192x128xf32>,
    %c0_9 = arith.constant 0 : index
    %c0_10 = arith.constant 0 : index
    %13 = vector.load %arg5[%c0_9, %c0_10] : memref<192x1xf32, #tpu.memory_space<vmem>>, vector<24x1xf32>
    %c0_i32 = arith.constant 0 : i32
    %14 = arith.cmpi sgt, %arg1, %c0_i32 : i32
    %15 = arith.extui %14 : i1 to i32
    %16 = arith.sitofp %15 : i32 to f32
    %c1_i32 = arith.constant 1 : i32
    %17 = arith.cmpi slt, %arg1, %c1_i32 : i32
    %18 = arith.extui %17 : i1 to i32
    %19 = arith.sitofp %18 : i32 to f32
    %c0_11 = arith.constant 0 : index
    %c0_12 = arith.constant 0 : index
    %20 = vector.load %arg3[%c0_11, %c0_12] : memref<24x128xf32, #tpu.memory_space<vmem>>, vector<24x128xf32>
    %21 = arith.truncf %20 : vector<24x128xf32> to vector<24x128xbf16>
    %cst_13 = arith.constant dense<0.000000e+00> : vector<24x128xf32>
    %22 = tpu.matmul %21, %0, %cst_13 {dimension_numbers = #tpu.dot_dimension_numbers<[1], [0], [0], [1], [0, 0, 1, 1], [], []>} : vector<24x128xbf16>, vector<128x128xbf16>, vector<24x128xf32> -> vector<24x128xf32>
    %23 = vector.broadcast %1 : vector<1x128xf32> to vector<24x128xf32>
    %24 = arith.addf %22, %23 : vector<24x128xf32>
    %cst_14 = arith.constant 0.000000e+00 : f32
    %25 = vector.broadcast %cst_14 : f32 to vector<24x128xf32>
    %26 = arith.maximumf %24, %25 : vector<24x128xf32>
    %27 = vector.broadcast %16 : f32 to vector<24x1xf32>
    %28 = arith.mulf %13, %27 : vector<24x1xf32>
    %29 = vector.broadcast %28 : vector<24x1xf32> to vector<24x128xf32>
    %30 = arith.mulf %26, %29 : vector<24x128xf32>
    %c8 = arith.constant 8 : index
    %c0_15 = arith.constant 0 : index
    %31 = vector.load %arg13[%c8, %c0_15] : memref<256x128xf32, #tpu.memory_space<vmem>>, vector<24x128xf32>
    tpu.vector_store %arg13[%c8, %c0_15], %30 {strides = array<i32>} : memref<256x128xf32, #tpu.memory_space<vmem>>, vector<24x128xf32>,
    %c0_16 = arith.constant 0 : index
    %c0_17 = arith.constant 0 : index
    %32 = vector.load %arg4[%c0_16, %c0_17] : memref<24x128xf32, #tpu.memory_space<vmem>>, vector<24x128xf32>
    %33 = arith.truncf %32 : vector<24x128xf32> to vector<24x128xbf16>
    %cst_18 = arith.constant dense<0.000000e+00> : vector<24x128xf32>
    %34 = tpu.matmul %33, %0, %cst_18 {dimension_numbers = #tpu.dot_dimension_numbers<[1], [0], [0], [1], [0, 0, 1, 1], [], []>} : vector<24x128xbf16>, vector<128x128xbf16>, vector<24x128xf32> -> vector<24x128xf32>
    %35 = vector.broadcast %1 : vector<1x128xf32> to vector<24x128xf32>
    %36 = arith.addf %34, %35 : vector<24x128xf32>
    %cst_19 = arith.constant 0.000000e+00 : f32
    %37 = vector.broadcast %cst_19 : f32 to vector<24x128xf32>
    %38 = arith.maximumf %36, %37 : vector<24x128xf32>
    %39 = vector.broadcast %19 : f32 to vector<24x1xf32>
    %40 = arith.mulf %13, %39 : vector<24x1xf32>
    %41 = vector.broadcast %40 : vector<24x1xf32> to vector<24x128xf32>
    %42 = arith.mulf %38, %41 : vector<24x128xf32>
    %c224 = arith.constant 224 : index
    %c0_20 = arith.constant 0 : index
    %43 = vector.load %arg13[%c224, %c0_20] : memref<256x128xf32, #tpu.memory_space<vmem>>, vector<24x128xf32>
    tpu.vector_store %arg13[%c224, %c0_20], %42 {strides = array<i32>} : memref<256x128xf32, #tpu.memory_space<vmem>>, vector<24x128xf32>,
    %c7 = arith.constant 7 : index
    %c0_21 = arith.constant 0 : index
    %44 = vector.load %arg13[%c7, %c0_21] : memref<256x128xf32, #tpu.memory_space<vmem>>, vector<192x128xf32>
    %45 = arith.truncf %44 : vector<192x128xf32> to vector<192x128xbf16>
    %c8_22 = arith.constant 8 : index
    %c0_23 = arith.constant 0 : index
    %46 = vector.load %arg13[%c8_22, %c0_23] : memref<256x128xf32, #tpu.memory_space<vmem>>, vector<192x128xf32>
    %47 = arith.truncf %46 : vector<192x128xf32> to vector<192x128xbf16>
    %c9 = arith.constant 9 : index
    %c0_24 = arith.constant 0 : index
    %48 = vector.load %arg13[%c9, %c0_24] : memref<256x128xf32, #tpu.memory_space<vmem>>, vector<192x128xf32>
    %49 = arith.truncf %48 : vector<192x128xf32> to vector<192x128xbf16>
    %c31 = arith.constant 31 : index
    %c0_25 = arith.constant 0 : index
    %50 = vector.load %arg13[%c31, %c0_25] : memref<256x128xf32, #tpu.memory_space<vmem>>, vector<192x128xf32>
    %51 = arith.truncf %50 : vector<192x128xf32> to vector<192x128xbf16>
    %c32_26 = arith.constant 32 : index
    %c0_27 = arith.constant 0 : index
    %52 = vector.load %arg13[%c32_26, %c0_27] : memref<256x128xf32, #tpu.memory_space<vmem>>, vector<192x128xf32>
    %53 = arith.truncf %52 : vector<192x128xf32> to vector<192x128xbf16>
    %c33 = arith.constant 33 : index
    %c0_28 = arith.constant 0 : index
    %54 = vector.load %arg13[%c33, %c0_28] : memref<256x128xf32, #tpu.memory_space<vmem>>, vector<192x128xf32>
    %55 = arith.truncf %54 : vector<192x128xf32> to vector<192x128xbf16>
    %c55 = arith.constant 55 : index
    %c0_29 = arith.constant 0 : index
    %56 = vector.load %arg13[%c55, %c0_29] : memref<256x128xf32, #tpu.memory_space<vmem>>, vector<192x128xf32>
    %57 = arith.truncf %56 : vector<192x128xf32> to vector<192x128xbf16>
    %c56 = arith.constant 56 : index
    %c0_30 = arith.constant 0 : index
    %58 = vector.load %arg13[%c56, %c0_30] : memref<256x128xf32, #tpu.memory_space<vmem>>, vector<192x128xf32>
    %59 = arith.truncf %58 : vector<192x128xf32> to vector<192x128xbf16>
    %c57 = arith.constant 57 : index
    %c0_31 = arith.constant 0 : index
    %60 = vector.load %arg13[%c57, %c0_31] : memref<256x128xf32, #tpu.memory_space<vmem>>, vector<192x128xf32>
    %61 = arith.truncf %60 : vector<192x128xf32> to vector<192x128xbf16>
    %62 = tpu.concatenate %45, %47, %49, %51, %53, %55, %57, %59, %61 in 1 : vector<192x128xbf16>, vector<192x128xbf16>, vector<192x128xbf16>, vector<192x128xbf16>, vector<192x128xbf16>, vector<192x128xbf16>, vector<192x128xbf16>, vector<192x128xbf16>, vector<192x128xbf16> -> vector<192x1152xbf16>
    %c0_32 = arith.constant 0 : index
    %c0_33 = arith.constant 0 : index
    %63 = vector.load %arg7[%c0_32, %c0_33] : memref<1152x128xbf16, #tpu.memory_space<vmem>>, vector<1152x128xbf16>
    %cst_34 = arith.constant dense<0.000000e+00> : vector<192x128xf32>
    %64 = tpu.matmul %62, %63, %cst_34 {dimension_numbers = #tpu.dot_dimension_numbers<[1], [0], [0], [1], [0, 0, 1, 1], [], []>} : vector<192x1152xbf16>, vector<1152x128xbf16>, vector<192x128xf32> -> vector<192x128xf32>
    %c0_35 = arith.constant 0 : index
    %c0_36 = arith.constant 0 : index
    %65 = vector.load %arg10[%c0_35, %c0_36] : memref<1x128xf32, #tpu.memory_space<vmem>>, vector<1x128xf32>
    %66 = vector.broadcast %65 : vector<1x128xf32> to vector<192x128xf32>
    %67 = arith.addf %64, %66 : vector<192x128xf32>
    %cst_37 = arith.constant 0.000000e+00 : f32
    %68 = vector.broadcast %cst_37 : f32 to vector<192x128xf32>
    %69 = arith.maximumf %67, %68 : vector<192x128xf32>
    %70 = arith.truncf %69 : vector<192x128xf32> to vector<192x128xbf16>
    %c0_38 = arith.constant 0 : index
    %c0_39 = arith.constant 0 : index
    %71 = vector.load %arg8[%c0_38, %c0_39] : memref<128x128xbf16, #tpu.memory_space<vmem>>, vector<128x128xbf16>
    %cst_40 = arith.constant dense<0.000000e+00> : vector<192x128xf32>
    %72 = tpu.matmul %70, %71, %cst_40 {dimension_numbers = #tpu.dot_dimension_numbers<[1], [0], [0], [1], [0, 0, 1, 1], [], []>} : vector<192x128xbf16>, vector<128x128xbf16>, vector<192x128xf32> -> vector<192x128xf32>
    %c0_41 = arith.constant 0 : index
    %c0_42 = arith.constant 0 : index
    %73 = vector.load %arg11[%c0_41, %c0_42] : memref<1x128xf32, #tpu.memory_space<vmem>>, vector<1x128xf32>
    %74 = vector.broadcast %73 : vector<1x128xf32> to vector<192x128xf32>
    %75 = arith.addf %72, %74 : vector<192x128xf32>
    %c0_43 = arith.constant 0 : index
    %c0_44 = arith.constant 0 : index
    %76 = vector.load %arg2[%c0_43, %c0_44] : memref<192x128xf32, #tpu.memory_space<vmem>>, vector<192x128xf32>
    %77 = arith.addf %75, %76 : vector<192x128xf32>
    %cst_45 = arith.constant 0.000000e+00 : f32
    %78 = vector.broadcast %cst_45 : f32 to vector<192x128xf32>
    %79 = arith.maximumf %77, %78 : vector<192x128xf32>
    %c0_46 = arith.constant 0 : index
    %c0_47 = arith.constant 0 : index
    %80 = vector.load %arg12[%c0_46, %c0_47] : memref<192x128xf32, #tpu.memory_space<vmem>>, vector<192x128xf32>
    tpu.vector_store %arg12[%c0_46, %c0_47], %79 {strides = array<i32>} : memref<192x128xf32, #tpu.memory_space<vmem>>, vector<192x128xf32>,
    return
  }
  func.func @transform_0(%arg0: i32, %arg1: i32) -> (i32, i32) {
    %c2_i32 = arith.constant 2 : i32
    %0 = arith.muli %arg0, %c2_i32 : i32
    %1 = arith.addi %0, %arg1 : i32
    %c0_i32 = arith.constant 0 : i32
    %c0_i32_0 = arith.constant 0 : i32
    return %1, %c0_i32 : i32, i32
  }
  func.func @transform_1(%arg0: i32, %arg1: i32) -> (i32, i32) {
    %c16_i32 = arith.constant 16 : i32
    %0 = arith.muli %arg0, %c16_i32 : i32
    %c8_i32 = arith.constant 8 : i32
    %1 = arith.muli %arg1, %c8_i32 : i32
    %2 = arith.addi %0, %1 : i32
    %c1_i32 = arith.constant 1 : i32
    %3 = arith.subi %2, %c1_i32 : i32
    %c0_i32 = arith.constant 0 : i32
    %4 = arith.maxsi %3, %c0_i32 : i32
    %c0_i32_0 = arith.constant 0 : i32
    %c0_i32_1 = arith.constant 0 : i32
    return %4, %c0_i32_0 : i32, i32
  }
  func.func @transform_2(%arg0: i32, %arg1: i32) -> (i32, i32) {
    %c16_i32 = arith.constant 16 : i32
    %0 = arith.muli %arg0, %c16_i32 : i32
    %c1_i32 = arith.constant 1 : i32
    %1 = arith.addi %arg1, %c1_i32 : i32
    %c8_i32 = arith.constant 8 : i32
    %2 = arith.muli %1, %c8_i32 : i32
    %3 = arith.addi %0, %2 : i32
    %c31_i32 = arith.constant 31 : i32
    %4 = arith.minsi %3, %c31_i32 : i32
    %c0_i32 = arith.constant 0 : i32
    %c0_i32_0 = arith.constant 0 : i32
    return %4, %c0_i32 : i32, i32
  }
  func.func @transform_3(%arg0: i32, %arg1: i32) -> (i32, i32) {
    %c0_i32 = arith.constant 0 : i32
    %c0_i32_0 = arith.constant 0 : i32
    %c0_i32_1 = arith.constant 0 : i32
    return %c0_i32, %c0_i32_0 : i32, i32
  }
  func.func @transform_4(%arg0: i32, %arg1: i32) -> (i32, i32) {
    %c0_i32 = arith.constant 0 : i32
    %c0_i32_0 = arith.constant 0 : i32
    %c0_i32_1 = arith.constant 0 : i32
    return %c0_i32, %c0_i32_0 : i32, i32
  }
  func.func @transform_5(%arg0: i32, %arg1: i32) -> (i32, i32) {
    %c0_i32 = arith.constant 0 : i32
    %c0_i32_0 = arith.constant 0 : i32
    %c0_i32_1 = arith.constant 0 : i32
    return %c0_i32, %c0_i32_0 : i32, i32
  }
  func.func @transform_6(%arg0: i32, %arg1: i32) -> (i32, i32) {
    %c0_i32 = arith.constant 0 : i32
    %c0_i32_0 = arith.constant 0 : i32
    %c0_i32_1 = arith.constant 0 : i32
    return %c0_i32, %c0_i32_0 : i32, i32
  }
  func.func @transform_7(%arg0: i32, %arg1: i32) -> (i32, i32) {
    %c0_i32 = arith.constant 0 : i32
    %c0_i32_0 = arith.constant 0 : i32
    %c0_i32_1 = arith.constant 0 : i32
    return %c0_i32, %c0_i32_0 : i32, i32
  }
  func.func @transform_8(%arg0: i32, %arg1: i32) -> (i32, i32) {
    %c0_i32 = arith.constant 0 : i32
    %c0_i32_0 = arith.constant 0 : i32
    %c0_i32_1 = arith.constant 0 : i32
    return %c0_i32, %c0_i32_0 : i32, i32
  }
  func.func @transform_9(%arg0: i32, %arg1: i32) -> (i32, i32) {
    %c0_i32 = arith.constant 0 : i32
    %c0_i32_0 = arith.constant 0 : i32
    %c0_i32_1 = arith.constant 0 : i32
    return %c0_i32, %c0_i32_0 : i32, i32
  }
  func.func @transform_10(%arg0: i32, %arg1: i32) -> (i32, i32) {
    %c2_i32 = arith.constant 2 : i32
    %0 = arith.muli %arg0, %c2_i32 : i32
    %1 = arith.addi %0, %arg1 : i32
    %c0_i32 = arith.constant 0 : i32
    %c0_i32_0 = arith.constant 0 : i32
    return %1, %c0_i32 : i32, i32
  }
}

</mosaic_0001>

<llo_original>
// kernel: tpu_custom_call.1
$region0: #{tpu_custom_call.1}
  #allocation0 [shape = 'u32[]', space=smem, size = 0x4, offset = 0x4, fixed_abs, tag = 'smem constant byte address 0x4 - core index']
  #allocation1 [shape = 'u32[144,128]{1,0:T(1,128)}', space=vmem, size = 0x12000, scoped, tag = 'internal scratch']
  #allocation2 [shape = 'f32[256,128]{1,0:T(8,128)}', space=vmem, size = 0x20000, scoped, tag = 'scratch operand']
  %s0 = inlined_call_operand.hbm [shape: f32[768,128], index: 0, kind: input, shape index: {}]
  %s1 = inlined_call_operand.hbm [shape: f32[768,128], index: 1, kind: input, shape index: {}]
  %s2 = inlined_call_operand.hbm [shape: f32[768,128], index: 2, kind: input, shape index: {}]
  %s3 = inlined_call_operand.vmem [shape: f32[192,1], index: 3, kind: input, shape index: {}]
  %s4 = inlined_call_operand.vmem [shape: bf16[128,128], index: 4, kind: input, shape index: {}]
  %s5 = inlined_call_operand.hbm [shape: bf16[1152,128], index: 5, kind: input, shape index: {}]
  %s6 = inlined_call_operand.vmem [shape: bf16[128,128], index: 6, kind: input, shape index: {}]
  %s7 = inlined_call_operand.vmem [shape: f32[1,128], index: 7, kind: input, shape index: {}]
  %s8 = inlined_call_operand.vmem [shape: f32[1,128], index: 8, kind: input, shape index: {}]
  %s9 = inlined_call_operand.vmem [shape: f32[1,128], index: 9, kind: input, shape index: {}]
  %s10 = inlined_call_operand.hbm [shape: f32[768,128], index: 10, kind: output, shape index: {}]
  %s11 = sld [smem:[#allocation0]]
  $region89: #{tpu_custom_call.1} parent=0
    _
  %s13 = ssub.s32 1, %s11
  %s14 = scalar_select 0, %s13, %s11
  $region1: #{tpu_custom_call.1} parent=0
    #allocation3 [shape = 'u8[196608]{0}', space=vmem, size = 0x30000, scoped, tag = 'input window, operand 0']
    #allocation4 [shape = 's32[2]{0}', space=sflag, size = 0x8, scoped, tag = 'scoped memory for tpu_custom_call.1']
    #allocation5 [shape = 's32[2]{0}', space=sflag, size = 0x8, scoped, tag = 'scoped memory for tpu_custom_call.1']
    #allocation6 [shape = 'u8[24576]{0}', space=vmem, size = 0x6000, scoped, tag = 'input window, operand 1']
    #allocation7 [shape = 's32[2]{0}', space=sflag, size = 0x8, scoped, tag = 'scoped memory for tpu_custom_call.1']
    #allocation8 [shape = 'u8[24576]{0}', space=vmem, size = 0x6000, scoped, tag = 'input window, operand 2']
    #allocation9 [shape = 'u8[294912]{0}', space=vmem, size = 0x48000, scoped, tag = 'input window, operand 5, single buffered']
    #allocation10 [shape = 's32[1]{0}', space=sflag, size = 0x4, scoped, tag = 'scoped memory for tpu_custom_call.1']
    #allocation11 [shape = 'u8[196608]{0}', space=vmem, size = 0x30000, scoped, tag = 'output window, operand 0']
    %15 = vsyncpa [#allocation4], 0
    %s16 = scalar_lea.sflag [#allocation4], 1
    %17 = vsyncpa %s16, 0
    %18 = vsyncpa [#allocation7], 0
    %s19 = scalar_lea.sflag [#allocation7], 1
    %20 = vsyncpa %s19, 0
    %21 = vsyncpa [#allocation10], 0
    %22 = vsyncpa [#allocation5], 0
    %s23 = scalar_lea.sflag [#allocation5], 1
    %24 = vsyncpa %s23, 0
    loop: start=0, step=1, limit=6
    $region2: #{tpu_custom_call.1} parent=1 // loop_pre_header
      _
    $region3: #{tpu_custom_call.1} parent=1 // loop_header
      %s26 = sphi 0, %s30
      %p27 = scmp.ge.s32.totalorder %s26, 6
      %s33 = sphi 0, %s45
      %s34 = sphi 0, %s41
      %s35 = sphi 0, %s33
      %s36 = sphi 0, %s34
      %s37 = sphi 0, %s35
      %s38 = sphi 0, %s36
      %s52 = sphi 0, %s54
      %s55 = sphi 0, %s52
      %s56 = sphi 0, %s55
      %s72 = sphi 0, %s56
      %s90 = sphi 0, %s92
      %s93 = sphi 0, %s90
      %s94 = sphi 0, %s93
      %s110 = sphi 0, %s94
      %s128 = sphi 0, %s130
      %s131 = sphi 0, %s128
      %s132 = sphi 0, %s131
      %s148 = sphi 0, %s132
      %s152 = sphi 0, %s152
      %s154 = sphi 0, %s152
      %s155 = sphi 0, %s154
      %s169 = sphi 0, %s155
      %s173 = sphi 0, %s173
      %s175 = sphi 0, %s173
      %s176 = sphi 0, %s175
      %s190 = sphi 0, %s176
      %s194 = sphi 0, %s194
      %s196 = sphi 0, %s194
      %s197 = sphi 0, %s196
      %s211 = sphi 0, %s197
      %s215 = sphi 0, %s215
      %s217 = sphi 0, %s215
      %s218 = sphi 0, %s217
      %s232 = sphi 0, %s218
      %s236 = sphi 0, %s236
      %s238 = sphi 0, %s236
      %s239 = sphi 0, %s238
      %s253 = sphi 0, %s239
      %s257 = sphi 0, %s257
      %s259 = sphi 0, %s257
      %s260 = sphi 0, %s259
      %s274 = sphi 0, %s260
      %s278 = sphi 0, %s278
      %s280 = sphi 0, %s278
      %s281 = sphi 0, %s280
      %s295 = sphi 0, %s281
      %s305 = sphi 0, %s307
      %s308 = sphi 0, %s305
      %s309 = sphi 0, %s308
      %s325 = sphi 0, %s309
    $region4: #{tpu_custom_call.1} parent=1 // loop_header_branch
      %29 = sbr.rel (%p27) target = $region8
    $region5: #{tpu_custom_call.1} parent=1 // loop_body
      %s31 = ssub.s32 %s26, 1
      %s32 = ssub.s32 %s26, 2
      %s39 = sadd.s32 1, %s34
      %p40 = scmp.ge.s32.totalorder %s39, 2
      %s41 = scalar_select %p40, 0, %s39
      %s42 = sadd.s32 1, %s33
      %s43 = scalar_select %p40, %s42, %s33
      %p44 = scmp.ge.s32.totalorder %s43, 2
      %s45 = scalar_select %p44, 0, %s43
      %s46 = smul.u32 %s33, 2
      %s47 = sadd.s32 %s46, %s34
      %s48 = smul.u32 %s45, 2
      %s49 = sadd.s32 %s48, %s41
      %s50 = ssub.s32 %s47, %s49
      %p51 = scmp.eq.s32.totalorder %s50, 0
      %s53 = sadd.s32 %s52, 1
      %s54 = scalar_select %p51, %s52, %s53
      %p57 = pneg %p51
      %p58 = scmp.eq.s32.totalorder %s26, 3
      %p59 = por %p57, %p58
      %p60 = scmp.ne.s32.totalorder %s52, %s55
      %p61 = scmp.eq.s32.totalorder %s26, 0
      %p62 = por %p60, %p61
      %p63 = scmp.ne.s32.totalorder %s52, %s55
      %p64 = scmp.eq.s32.totalorder %s31, 3
      %p65 = por %p63, %p64
      %p66 = scmp.ne.s32.totalorder %s55, %s56
      %p67 = scmp.eq.s32.totalorder %s31, 0
      %p68 = por %p66, %p67
      %p69 = scmp.ne.s32.totalorder %s55, %s56
      %p70 = scmp.eq.s32.totalorder %s32, 3
      %p71 = por %p69, %p70
      %p73 = scmp.ne.s32.totalorder %s56, %s72
      %p74 = scmp.eq.s32.totalorder %s32, 0
      %p75 = por %p73, %p74
      %s76 = smul.u32 %s33, 16
      %s77 = smul.u32 %s34, 8
      %s78 = sadd.s32 %s76, %s77
      %s79 = ssub.s32 %s78, 1
      %p80 = scmp.gt.s32.totalorder %s79, 0
      %s81 = scalar_select %p80, %s79, 0
      %s82 = smul.u32 %s45, 16
      %s83 = smul.u32 %s41, 8
      %s84 = sadd.s32 %s82, %s83
      %s85 = ssub.s32 %s84, 1
      %p86 = scmp.gt.s32.totalorder %s85, 0
      %s87 = scalar_select %p86, %s85, 0
      %s88 = ssub.s32 %s81, %s87
      %p89 = scmp.eq.s32.totalorder %s88, 0
      %s91 = sadd.s32 %s90, 1
      %s92 = scalar_select %p89, %s90, %s91
      %p95 = pneg %p89
      %p96 = scmp.eq.s32.totalorder %s26, 3
      %p97 = por %p95, %p96
      %p98 = scmp.ne.s32.totalorder %s90, %s93
      %p99 = scmp.eq.s32.totalorder %s26, 0
      %p100 = por %p98, %p99
      %p101 = scmp.ne.s32.totalorder %s90, %s93
      %p102 = scmp.eq.s32.totalorder %s31, 3
      %p103 = por %p101, %p102
      %p104 = scmp.ne.s32.totalorder %s93, %s94
      %p105 = scmp.eq.s32.totalorder %s31, 0
      %p106 = por %p104, %p105
      %p107 = scmp.ne.s32.totalorder %s93, %s94
      %p108 = scmp.eq.s32.totalorder %s32, 3
      %p109 = por %p107, %p108
      %p111 = scmp.ne.s32.totalorder %s94, %s110
      %p112 = scmp.eq.s32.totalorder %s32, 0
      %p113 = por %p111, %p112
      %s114 = smul.u32 %s33, 16
      %s115 = sadd.s32 %s34, 1
      %s116 = smul.u32 %s115, 8
      %s117 = sadd.s32 %s114, %s116
      %p118 = scmp.lt.s32.totalorder %s117, 31
      %s119 = scalar_select %p118, %s117, 31
      %s120 = smul.u32 %s45, 16
      %s121 = sadd.s32 %s41, 1
      %s122 = smul.u32 %s121, 8
      %s123 = sadd.s32 %s120, %s122
      %p124 = scmp.lt.s32.totalorder %s123, 31
      %s125 = scalar_select %p124, %s123, 31
      %s126 = ssub.s32 %s119, %s125
      %p127 = scmp.eq.s32.totalorder %s126, 0
      %s129 = sadd.s32 %s128, 1
      %s130 = scalar_select %p127, %s128, %s129
      %p133 = pneg %p127
      %p134 = scmp.eq.s32.totalorder %s26, 3
      %p135 = por %p133, %p134
      %p136 = scmp.ne.s32.totalorder %s128, %s131
      %p137 = scmp.eq.s32.totalorder %s26, 0
      %p138 = por %p136, %p137
      %p139 = scmp.ne.s32.totalorder %s128, %s131
      %p140 = scmp.eq.s32.totalorder %s31, 3
      %p141 = por %p139, %p140
      %p142 = scmp.ne.s32.totalorder %s131, %s132
      %p143 = scmp.eq.s32.totalorder %s31, 0
      %p144 = por %p142, %p143
      %p145 = scmp.ne.s32.totalorder %s131, %s132
      %p146 = scmp.eq.s32.totalorder %s32, 3
      %p147 = por %p145, %p146
      %p149 = scmp.ne.s32.totalorder %s132, %s148
      %p150 = scmp.eq.s32.totalorder %s32, 0
      %p151 = por %p149, %p150
      %s153 = sadd.s32 %s152, 1
      %p156 = scmp.eq.s32.totalorder %s26, 3
      %p157 = scmp.ne.s32.totalorder %s152, %s154
      %p158 = scmp.eq.s32.totalorder %s26, 0
      %p159 = por %p157, %p158
      %p160 = scmp.ne.s32.totalorder %s152, %s154
      %p161 = scmp.eq.s32.totalorder %s31, 3
      %p162 = por %p160, %p161
      %p163 = scmp.ne.s32.totalorder %s154, %s155
      %p164 = scmp.eq.s32.totalorder %s31, 0
      %p165 = por %p163, %p164
      %p166 = scmp.ne.s32.totalorder %s154, %s155
      %p167 = scmp.eq.s32.totalorder %s32, 3
      %p168 = por %p166, %p167
      %p170 = scmp.ne.s32.totalorder %s155, %s169
      %p171 = scmp.eq.s32.totalorder %s32, 0
      %p172 = por %p170, %p171
      %s174 = sadd.s32 %s173, 1
      %p177 = scmp.eq.s32.totalorder %s26, 3
      %p178 = scmp.ne.s32.totalorder %s173, %s175
      %p179 = scmp.eq.s32.totalorder %s26, 0
      %p180 = por %p178, %p179
      %p181 = scmp.ne.s32.totalorder %s173, %s175
      %p182 = scmp.eq.s32.totalorder %s31, 3
      %p183 = por %p181, %p182
      %p184 = scmp.ne.s32.totalorder %s175, %s176
      %p185 = scmp.eq.s32.totalorder %s31, 0
      %p186 = por %p184, %p185
      %p187 = scmp.ne.s32.totalorder %s175, %s176
      %p188 = scmp.eq.s32.totalorder %s32, 3
      %p189 = por %p187, %p188
      %p191 = scmp.ne.s32.totalorder %s176, %s190
      %p192 = scmp.eq.s32.totalorder %s32, 0
      %p193 = por %p191, %p192
      %s195 = sadd.s32 %s194, 1
      %p198 = scmp.eq.s32.totalorder %s26, 3
      %p199 = scmp.ne.s32.totalorder %s194, %s196
      %p200 = scmp.eq.s32.totalorder %s26, 0
      %p201 = por %p199, %p200
      %p202 = scmp.ne.s32.totalorder %s194, %s196
      %p203 = scmp.eq.s32.totalorder %s31, 3
      %p204 = por %p202, %p203
      %p205 = scmp.ne.s32.totalorder %s196, %s197
      %p206 = scmp.eq.s32.totalorder %s31, 0
      %p207 = por %p205, %p206
      %p208 = scmp.ne.s32.totalorder %s196, %s197
      %p209 = scmp.eq.s32.totalorder %s32, 3
      %p210 = por %p208, %p209
      %p212 = scmp.ne.s32.totalorder %s197, %s211
      %p213 = scmp.eq.s32.totalorder %s32, 0
      %p214 = por %p212, %p213
      %s216 = sadd.s32 %s215, 1
      %p219 = scmp.eq.s32.totalorder %s26, 3
      %p220 = scmp.ne.s32.totalorder %s215, %s217
      %p221 = scmp.eq.s32.totalorder %s26, 0
      %p222 = por %p220, %p221
      %p223 = scmp.ne.s32.totalorder %s215, %s217
      %p224 = scmp.eq.s32.totalorder %s31, 3
      %p225 = por %p223, %p224
      %p226 = scmp.ne.s32.totalorder %s217, %s218
      %p227 = scmp.eq.s32.totalorder %s31, 0
      %p228 = por %p226, %p227
      %p229 = scmp.ne.s32.totalorder %s217, %s218
      %p230 = scmp.eq.s32.totalorder %s32, 3
      %p231 = por %p229, %p230
      %p233 = scmp.ne.s32.totalorder %s218, %s232
      %p234 = scmp.eq.s32.totalorder %s32, 0
      %p235 = por %p233, %p234
      %s237 = sadd.s32 %s236, 1
      %p240 = scmp.eq.s32.totalorder %s26, 3
      %p241 = scmp.ne.s32.totalorder %s236, %s238
      %p242 = scmp.eq.s32.totalorder %s26, 0
      %p243 = por %p241, %p242
      %p244 = scmp.ne.s32.totalorder %s236, %s238
      %p245 = scmp.eq.s32.totalorder %s31, 3
      %p246 = por %p244, %p245
      %p247 = scmp.ne.s32.totalorder %s238, %s239
      %p248 = scmp.eq.s32.totalorder %s31, 0
      %p249 = por %p247, %p248
      %p250 = scmp.ne.s32.totalorder %s238, %s239
      %p251 = scmp.eq.s32.totalorder %s32, 3
      %p252 = por %p250, %p251
      %p254 = scmp.ne.s32.totalorder %s239, %s253
      %p255 = scmp.eq.s32.totalorder %s32, 0
      %p256 = por %p254, %p255
      %s258 = sadd.s32 %s257, 1
      %p261 = scmp.eq.s32.totalorder %s26, 3
      %p262 = scmp.ne.s32.totalorder %s257, %s259
      %p263 = scmp.eq.s32.totalorder %s26, 0
      %p264 = por %p262, %p263
      %p265 = scmp.ne.s32.totalorder %s257, %s259
      %p266 = scmp.eq.s32.totalorder %s31, 3
      %p267 = por %p265, %p266
      %p268 = scmp.ne.s32.totalorder %s259, %s260
      %p269 = scmp.eq.s32.totalorder %s31, 0
      %p270 = por %p268, %p269
      %p271 = scmp.ne.s32.totalorder %s259, %s260
      %p272 = scmp.eq.s32.totalorder %s32, 3
      %p273 = por %p271, %p272
      %p275 = scmp.ne.s32.totalorder %s260, %s274
      %p276 = scmp.eq.s32.totalorder %s32, 0
      %p277 = por %p275, %p276
      %s279 = sadd.s32 %s278, 1
      %p282 = scmp.eq.s32.totalorder %s26, 3
      %p283 = scmp.ne.s32.totalorder %s278, %s280
      %p284 = scmp.eq.s32.totalorder %s26, 0
      %p285 = por %p283, %p284
      %p286 = scmp.ne.s32.totalorder %s278, %s280
      %p287 = scmp.eq.s32.totalorder %s31, 3
      %p288 = por %p286, %p287
      %p289 = scmp.ne.s32.totalorder %s280, %s281
      %p290 = scmp.eq.s32.totalorder %s31, 0
      %p291 = por %p289, %p290
      %p292 = scmp.ne.s32.totalorder %s280, %s281
      %p293 = scmp.eq.s32.totalorder %s32, 3
      %p294 = por %p292, %p293
      %p296 = scmp.ne.s32.totalorder %s281, %s295
      %p297 = scmp.eq.s32.totalorder %s32, 0
      %p298 = por %p296, %p297
      %s299 = smul.u32 %s33, 2
      %s300 = sadd.s32 %s299, %s34
      %s301 = smul.u32 %s45, 2
      %s302 = sadd.s32 %s301, %s41
      %s303 = ssub.s32 %s300, %s302
      %p304 = scmp.eq.s32.totalorder %s303, 0
      %s306 = sadd.s32 %s305, 1
      %s307 = scalar_select %p304, %s305, %s306
      %p310 = pneg %p304
      %p311 = scmp.eq.s32.totalorder %s26, 3
      %p312 = por %p310, %p311
      %p313 = scmp.ne.s32.totalorder %s305, %s308
      %p314 = scmp.eq.s32.totalorder %s26, 0
      %p315 = por %p313, %p314
      %p316 = scmp.ne.s32.totalorder %s305, %s308
      %p317 = scmp.eq.s32.totalorder %s31, 3
      %p318 = por %p316, %p317
      %p319 = scmp.ne.s32.totalorder %s308, %s309
      %p320 = scmp.eq.s32.totalorder %s31, 0
      %p321 = por %p319, %p320
      %p322 = scmp.ne.s32.totalorder %s308, %s309
      %p323 = scmp.eq.s32.totalorder %s32, 3
      %p324 = por %p322, %p323
      %p326 = scmp.ne.s32.totalorder %s309, %s325
      %p327 = scmp.eq.s32.totalorder %s32, 0
      %p328 = por %p326, %p327
      %p329 = scmp.le.s32.totalorder 1, %s26
      %p330 = scmp.lt.s32.totalorder %s26, 5
      %p331 = pnand %p329, %p330
      %p332 = pneg %p331
      // Predicated region
      $region9: #{tpu_custom_call.1} parent=5 // pred_check
        _
      $region10: #{tpu_custom_call.1} parent=5 // pred_check_branch
        %334 = sbr.rel (%p331) target = $region12
      $region11: #{tpu_custom_call.1} parent=5 // pred_region
        %s335 = ssub.s32 %s26, 1
        // Predicated region
        $region13: #{tpu_custom_call.1} parent=11 // pred_check
          %p336 = pneg %p165
        $region14: #{tpu_custom_call.1} parent=11 // pred_check_branch
          %338 = sbr.rel (%p336) target = $region16
        $region15: #{tpu_custom_call.1} parent=11 // pred_region
          _
        $region16: #{tpu_custom_call.1} parent=11 // pred_fallthru
          _
        // Predicated region
        $region17: #{tpu_custom_call.1} parent=11 // pred_check
          %p339 = pneg %p186
        $region18: #{tpu_custom_call.1} parent=11 // pred_check_branch
          %341 = sbr.rel (%p339) target = $region20
        $region19: #{tpu_custom_call.1} parent=11 // pred_region
          _
        $region20: #{tpu_custom_call.1} parent=11 // pred_fallthru
          _
        // Predicated region
        $region21: #{tpu_custom_call.1} parent=11 // pred_check
          %p342 = pneg %p207
        $region22: #{tpu_custom_call.1} parent=11 // pred_check_branch
          %344 = sbr.rel (%p342) target = $region24
        $region23: #{tpu_custom_call.1} parent=11 // pred_region
          %s346 = ssub.s32 9216, 9216
          %347 = vsyncadd [#allocation10], %s346
          %s348 = sshll.u32 [#allocation9], 4
          %s349 = int_to_ptr.vmem [resolvable:$true] %s348
          %354 = dma.hbm_to_vmem [thread:$0]  %s5, 9216, %s349, [#allocation10], 64, 64, 4
        $region24: #{tpu_custom_call.1} parent=11 // pred_fallthru
          _
        // Predicated region
        $region25: #{tpu_custom_call.1} parent=11 // pred_check
          %p355 = pneg %p228
        $region26: #{tpu_custom_call.1} parent=11 // pred_check_branch
          %357 = sbr.rel (%p355) target = $region28
        $region27: #{tpu_custom_call.1} parent=11 // pred_region
          _
        $region28: #{tpu_custom_call.1} parent=11 // pred_fallthru
          _
        // Predicated region
        $region29: #{tpu_custom_call.1} parent=11 // pred_check
          %p358 = pneg %p249
        $region30: #{tpu_custom_call.1} parent=11 // pred_check_branch
          %360 = sbr.rel (%p358) target = $region32
        $region31: #{tpu_custom_call.1} parent=11 // pred_region
          _
        $region32: #{tpu_custom_call.1} parent=11 // pred_fallthru
          _
        // Predicated region
        $region33: #{tpu_custom_call.1} parent=11 // pred_check
          %p361 = pneg %p270
        $region34: #{tpu_custom_call.1} parent=11 // pred_check_branch
          %363 = sbr.rel (%p361) target = $region36
        $region35: #{tpu_custom_call.1} parent=11 // pred_region
          _
        $region36: #{tpu_custom_call.1} parent=11 // pred_fallthru
          _
        // Predicated region
        $region37: #{tpu_custom_call.1} parent=11 // pred_check
          %p364 = pneg %p291
        $region38: #{tpu_custom_call.1} parent=11 // pred_check_branch
          %366 = sbr.rel (%p364) target = $region40
        $region39: #{tpu_custom_call.1} parent=11 // pred_region
          _
        $region40: #{tpu_custom_call.1} parent=11 // pred_fallthru
          _
      $region12: #{tpu_custom_call.1} parent=5 // pred_fallthru
        _
      %p367 = scmp.lt.s32.totalorder %s26, 4
      // Predicated region
      $region41: #{tpu_custom_call.1} parent=5 // pred_check
        %p368 = pneg %p367
      $region42: #{tpu_custom_call.1} parent=5 // pred_check_branch
        %370 = sbr.rel (%p368) target = $region44
      $region43: #{tpu_custom_call.1} parent=5 // pred_region
        // Predicated region
        $region45: #{tpu_custom_call.1} parent=43 // pred_check
          %p371 = pneg %p62
        $region46: #{tpu_custom_call.1} parent=43 // pred_check_branch
          %373 = sbr.rel (%p371) target = $region48
        $region47: #{tpu_custom_call.1} parent=43 // pred_region
          %s374 = sand.u32 %s52, 1
          %s375 = scalar_lea.sflag [#allocation4], %s374
          %s376 = sand.u32 %s52, 1
          %s377 = smul.addr %s376, 192
          %s378 = scalar_lea.vmem [#allocation3], %s377
          %s379 = smul.u32 %s33, 2
          %s380 = sadd.s32 %s379, %s34
          %s381 = smul.u32 24, %s380
          %s383 = ssub.s32 3072, 3072
          %384 = vsyncadd %s375, %s383
          %s385 = smul.addr %s381, 128
          %s386 = scalar_lea.hbm %s0, %s385
          %s387 = sshll.u32 %s378, 4
          %s388 = int_to_ptr.vmem [resolvable:$true] %s387
          %393 = dma.hbm_to_vmem [thread:$0]  %s386, 3072, %s388, %s375, 128, 128, 8
        $region48: #{tpu_custom_call.1} parent=43 // pred_fallthru
          _
        // Predicated region
        $region49: #{tpu_custom_call.1} parent=43 // pred_check
          %p394 = pneg %p100
        $region50: #{tpu_custom_call.1} parent=43 // pred_check_branch
          %396 = sbr.rel (%p394) target = $region52
        $region51: #{tpu_custom_call.1} parent=43 // pred_region
          %s397 = sand.u32 %s26, 1
          %s398 = scalar_lea.sflag [#allocation7], %s397
          %s399 = sand.u32 %s90, 1
          %s400 = smul.addr %s399, 24
          %s401 = scalar_lea.vmem [#allocation6], %s400
          %s402 = smul.u32 %s33, 16
          %s403 = smul.u32 %s34, 8
          %s404 = sadd.s32 %s402, %s403
          %s405 = ssub.s32 %s404, 1
          %p406 = scmp.gt.s32.totalorder %s405, 0
          %s407 = scalar_select %p406, %s405, 0
          %s408 = smul.u32 3, %s407
          %s410 = ssub.s32 384, 384
          %411 = vsyncadd %s398, %s410
          %s412 = smul.addr %s408, 128
          %s413 = scalar_lea.hbm %s1, %s412
          %s414 = sshll.u32 %s401, 4
          %s415 = int_to_ptr.vmem [resolvable:$true] %s414
          %420 = dma.hbm_to_vmem [thread:$0]  %s413, 384, %s415, %s398, 128, 128, 8
        $region52: #{tpu_custom_call.1} parent=43 // pred_fallthru
          _
        // Predicated region
        $region53: #{tpu_custom_call.1} parent=43 // pred_check
          %p421 = pneg %p138
        $region54: #{tpu_custom_call.1} parent=43 // pred_check_branch
          %423 = sbr.rel (%p421) target = $region56
        $region55: #{tpu_custom_call.1} parent=43 // pred_region
          %s424 = sand.u32 %s26, 1
          %s425 = scalar_lea.sflag [#allocation7], %s424
          %s426 = sand.u32 %s128, 1
          %s427 = smul.addr %s426, 24
          %s428 = scalar_lea.vmem [#allocation8], %s427
          %s429 = smul.u32 %s33, 16
          %s430 = sadd.s32 %s34, 1
          %s431 = smul.u32 %s430, 8
          %s432 = sadd.s32 %s429, %s431
          %p433 = scmp.lt.s32.totalorder %s432, 31
          %s434 = scalar_select %p433, %s432, 31
          %s435 = smul.u32 3, %s434
          %s437 = ssub.s32 384, 384
          %438 = vsyncadd %s425, %s437
          %s439 = smul.addr %s435, 128
          %s440 = scalar_lea.hbm %s2, %s439
          %s441 = sshll.u32 %s428, 4
          %s442 = int_to_ptr.vmem [resolvable:$true] %s441
          %447 = dma.hbm_to_vmem [thread:$0]  %s440, 384, %s442, %s425, 128, 128, 8
        $region56: #{tpu_custom_call.1} parent=43 // pred_fallthru
          _
      $region44: #{tpu_custom_call.1} parent=5 // pred_fallthru
        _
      %p448 = scmp.le.s32.totalorder 1, %s26
      %p449 = scmp.lt.s32.totalorder %s26, 5
      %p450 = pnand %p448, %p449
      %p451 = pneg %p450
      // Predicated region
      $region57: #{tpu_custom_call.1} parent=5 // pred_check
        _
      $region58: #{tpu_custom_call.1} parent=5 // pred_check_branch
        %453 = sbr.rel (%p450) target = $region60
      $region59: #{tpu_custom_call.1} parent=5 // pred_region
        %s454 = ssub.s32 %s26, 1
        %s455 = sand.u32 %s55, 1
        %s456 = scalar_lea.sflag [#allocation4], %s455
        %s457 = sand.u32 %s55, 1
        %s458 = smul.addr %s457, 192
        %s459 = scalar_lea.vmem [#allocation3], %s458
        // Predicated region
        $region61: #{tpu_custom_call.1} parent=59 // pred_check
          %p460 = pneg %p68
        $region62: #{tpu_custom_call.1} parent=59 // pred_check_branch
          %462 = sbr.rel (%p460) target = $region64
        $region63: #{tpu_custom_call.1} parent=59 // pred_region
          %463 = dma.done %s456, 3072
        $region64: #{tpu_custom_call.1} parent=59 // pred_fallthru
          _
        %s464 = sand.u32 %s31, 1
        %s465 = scalar_lea.sflag [#allocation7], %s464
        %s466 = sand.u32 %s93, 1
        %s467 = smul.addr %s466, 24
        %s468 = scalar_lea.vmem [#allocation6], %s467
        // Predicated region
        $region65: #{tpu_custom_call.1} parent=59 // pred_check
          %p469 = pneg %p106
        $region66: #{tpu_custom_call.1} parent=59 // pred_check_branch
          %471 = sbr.rel (%p469) target = $region68
        $region67: #{tpu_custom_call.1} parent=59 // pred_region
          %472 = dma.done %s465, 384
        $region68: #{tpu_custom_call.1} parent=59 // pred_fallthru
          _
        %s473 = sand.u32 %s31, 1
        %s474 = scalar_lea.sflag [#allocation7], %s473
        %s475 = sand.u32 %s131, 1
        %s476 = smul.addr %s475, 24
        %s477 = scalar_lea.vmem [#allocation8], %s476
        // Predicated region
        $region69: #{tpu_custom_call.1} parent=59 // pred_check
          %p478 = pneg %p144
        $region70: #{tpu_custom_call.1} parent=59 // pred_check_branch
          %480 = sbr.rel (%p478) target = $region72
        $region71: #{tpu_custom_call.1} parent=59 // pred_region
          %481 = dma.done %s474, 384
        $region72: #{tpu_custom_call.1} parent=59 // pred_fallthru
          _
        // Predicated region
        $region73: #{tpu_custom_call.1} parent=59 // pred_check
          %p482 = pneg %p207
        $region74: #{tpu_custom_call.1} parent=59 // pred_check_branch
          %484 = sbr.rel (%p482) target = $region76
        $region75: #{tpu_custom_call.1} parent=59 // pred_region
          %485 = dma.done [#allocation10], 9216
        $region76: #{tpu_custom_call.1} parent=59 // pred_fallthru
          _
        %s486 = sand.u32 %s55, 1
        %s487 = scalar_lea.sflag [#allocation4], %s486
        %s488 = sand.u32 %s55, 1
        %s489 = smul.addr %s488, 192
        %s490 = scalar_lea.vmem [#allocation3], %s489
        %p491 = pneg %p68
        %p492 = pneg %p65
        %s493 = sand.u32 %s31, 1
        %s494 = scalar_lea.sflag [#allocation7], %s493
        %s495 = sand.u32 %s93, 1
        %s496 = smul.addr %s495, 24
        %s497 = scalar_lea.vmem [#allocation6], %s496
        %p498 = pneg %p106
        %p499 = pneg %p103
        %s500 = sand.u32 %s31, 1
        %s501 = scalar_lea.sflag [#allocation7], %s500
        %s502 = sand.u32 %s131, 1
        %s503 = smul.addr %s502, 24
        %s504 = scalar_lea.vmem [#allocation8], %s503
        %p505 = pneg %p144
        %p506 = pneg %p141
        %p507 = pneg %p165
        %p508 = pneg %p162
        %p509 = pneg %p186
        %p510 = pneg %p183
        %p511 = pneg %p207
        %p512 = pneg %p204
        %p513 = pneg %p228
        %p514 = pneg %p225
        %p515 = pneg %p249
        %p516 = pneg %p246
        %p517 = pneg %p270
        %p518 = pneg %p267
        %p519 = pneg %p291
        %p520 = pneg %p288
        %p521 = pneg %p321
        %p522 = pneg %p318
        %s523 = sand.u32 %s308, 1
        %s524 = scalar_lea.sflag [#allocation5], %s523
        %s525 = sand.u32 %s308, 1
        %s526 = smul.addr %s525, 192
        %s527 = scalar_lea.vmem [#allocation11], %s526
        %s528 = smul.u32 %s35, 2
        %s529 = sadd.s32 %s528, %s36
        %s530 = smul.u32 24, %s529
        %s531 = smul.u32 %s35, 16
        %s532 = smul.u32 %s36, 8
        %s533 = sadd.s32 %s531, %s532
        %s534 = ssub.s32 %s533, 1
        %p535 = scmp.gt.s32.totalorder %s534, 0
        %s536 = scalar_select %p535, %s534, 0
        %s537 = smul.u32 3, %s536
        %s538 = smul.u32 %s35, 16
        %s539 = sadd.s32 %s36, 1
        %s540 = smul.u32 %s539, 8
        %s541 = sadd.s32 %s538, %s540
        %p542 = scmp.lt.s32.totalorder %s541, 31
        %s543 = scalar_select %p542, %s541, 31
        %s544 = smul.u32 3, %s543
        %s545 = smul.u32 %s35, 2
        %s546 = sadd.s32 %s545, %s36
        %s547 = smul.u32 24, %s546
        %v549 = vld [vmem:[%s4] sm:$0xf]
        %v550 = vld [vmem:[%s4 + $0x4] sm:$0xf]
        %v551 = vld [vmem:[%s4 + $0x8] sm:$0xf]
        %v552 = vld [vmem:[%s4 + $0xc] sm:$0xf]
        %v553 = vld [vmem:[%s4 + $0x10] sm:$0xf]
        %v554 = vld [vmem:[%s4 + $0x14] sm:$0xf]
        %v555 = vld [vmem:[%s4 + $0x18] sm:$0xf]
        %v556 = vld [vmem:[%s4 + $0x1c] sm:$0xf]
        %v557 = vld [vmem:[%s4 + $0x20] sm:$0xf]
        %v558 = vld [vmem:[%s4 + $0x24] sm:$0xf]
        %v559 = vld [vmem:[%s4 + $0x28] sm:$0xf]
        %v560 = vld [vmem:[%s4 + $0x2c] sm:$0xf]
        %v561 = vld [vmem:[%s4 + $0x30] sm:$0xf]
        %v562 = vld [vmem:[%s4 + $0x34] sm:$0xf]
        %v563 = vld [vmem:[%s4 + $0x38] sm:$0xf]
        %v564 = vld [vmem:[%s4 + $0x3c] sm:$0xf]
        %v565 = vld [vmem:[%s7] sm:$0x1]
        %v566 = vld [vmem:[%s3] sm:$0xff]
        %v567 = vld [vmem:[%s3 + $0x8] sm:$0xff]
        %v568 = vld [vmem:[%s3 + $0x10] sm:$0xff]
        %v569 = vld [vmem:[%s3 + $0x18] sm:$0xff]
        %v570 = vld [vmem:[%s3 + $0x20] sm:$0xff]
        %v571 = vld [vmem:[%s3 + $0x28] sm:$0xff]
        %v572 = vld [vmem:[%s3 + $0x30] sm:$0xff]
        %v573 = vld [vmem:[%s3 + $0x38] sm:$0xff]
        %v574 = vld [vmem:[%s3 + $0x40] sm:$0xff]
        %v575 = vld [vmem:[%s3 + $0x48] sm:$0xff]
        %v576 = vld [vmem:[%s3 + $0x50] sm:$0xff]
        %v577 = vld [vmem:[%s3 + $0x58] sm:$0xff]
        %v578 = vld [vmem:[%s3 + $0x60] sm:$0xff]
        %v579 = vld [vmem:[%s3 + $0x68] sm:$0xff]
        %v580 = vld [vmem:[%s3 + $0x70] sm:$0xff]
        %v581 = vld [vmem:[%s3 + $0x78] sm:$0xff]
        %v582 = vld [vmem:[%s3 + $0x80] sm:$0xff]
        %v583 = vld [vmem:[%s3 + $0x88] sm:$0xff]
        %v584 = vld [vmem:[%s3 + $0x90] sm:$0xff]
        %v585 = vld [vmem:[%s3 + $0x98] sm:$0xff]
        %v586 = vld [vmem:[%s3 + $0xa0] sm:$0xff]
        %v587 = vld [vmem:[%s3 + $0xa8] sm:$0xff]
        %v588 = vld [vmem:[%s3 + $0xb0] sm:$0xff]
        %v589 = vld [vmem:[%s3 + $0xb8] sm:$0xff]
        %v590 = vld [vmem:[%s459] sm:$0xff]
        %v591 = vld [vmem:[%s459 + $0x8] sm:$0xff]
        %v592 = vld [vmem:[%s459 + $0x10] sm:$0xff]
        %v593 = vld [vmem:[%s459 + $0x18] sm:$0xff]
        %v594 = vld [vmem:[%s459 + $0x20] sm:$0xff]
        %v595 = vld [vmem:[%s459 + $0x28] sm:$0xff]
        %v596 = vld [vmem:[%s459 + $0x30] sm:$0xff]
        %v597 = vld [vmem:[%s459 + $0x38] sm:$0xff]
        %v598 = vld [vmem:[%s459 + $0x40] sm:$0xff]
        %v599 = vld [vmem:[%s459 + $0x48] sm:$0xff]
        %v600 = vld [vmem:[%s459 + $0x50] sm:$0xff]
        %v601 = vld [vmem:[%s459 + $0x58] sm:$0xff]
        %v602 = vld [vmem:[%s459 + $0x60] sm:$0xff]
        %v603 = vld [vmem:[%s459 + $0x68] sm:$0xff]
        %v604 = vld [vmem:[%s459 + $0x70] sm:$0xff]
        %v605 = vld [vmem:[%s459 + $0x78] sm:$0xff]
        %v606 = vld [vmem:[%s459 + $0x80] sm:$0xff]
        %v607 = vld [vmem:[%s459 + $0x88] sm:$0xff]
        %v608 = vld [vmem:[%s459 + $0x90] sm:$0xff]
        %v609 = vld [vmem:[%s459 + $0x98] sm:$0xff]
        %v610 = vld [vmem:[%s459 + $0xa0] sm:$0xff]
        %v611 = vld [vmem:[%s459 + $0xa8] sm:$0xff]
        %v612 = vld [vmem:[%s459 + $0xb0] sm:$0xff]
        %v613 = vld [vmem:[%s459 + $0xb8] sm:$0xff]
        %v614 = vpack.c.bf16 %v591, %v590
        %v615 = vpack.c.bf16 %v593, %v592
        %v616 = vpack.c.bf16 %v595, %v594
        %v617 = vpack.c.bf16 %v597, %v596
        %v618 = vpack.c.bf16 %v599, %v598
        %v619 = vpack.c.bf16 %v601, %v600
        %v620 = vpack.c.bf16 %v603, %v602
        %v621 = vpack.c.bf16 %v605, %v604
        %v622 = vpack.c.bf16 %v607, %v606
        %v623 = vpack.c.bf16 %v609, %v608
        %v624 = vpack.c.bf16 %v611, %v610
        %v625 = vpack.c.bf16 %v613, %v612
        %v627 = vlaneseq
        %v628 = vshrl.u32 %v627, 7
        %v629 = vsub.s32 0, %v628
        %v630 = vrot.slane %v565, %v629
        %v648 = vunpack.c.l.b16 %v549
        %v649 = vunpack.c.l.b16 %v550
        %v650 = vunpack.c.l.b16 %v551
        %v651 = vunpack.c.l.b16 %v552
        %v652 = vunpack.c.l.b16 %v553
        %v653 = vunpack.c.l.b16 %v554
        %v654 = vunpack.c.l.b16 %v555
        %v655 = vunpack.c.l.b16 %v556
        %v656 = vunpack.c.l.b16 %v557
        %v657 = vunpack.c.l.b16 %v558
        %v658 = vunpack.c.l.b16 %v559
        %v659 = vunpack.c.l.b16 %v560
        %v660 = vunpack.c.l.b16 %v561
        %v661 = vunpack.c.l.b16 %v562
        %v662 = vunpack.c.l.b16 %v563
        %v663 = vunpack.c.l.b16 %v564
        %v664 = vpack.c.b16 %v649, %v648
        %v665 = vpack.c.b16 %v651, %v650
        %v666 = vpack.c.b16 %v653, %v652
        %v667 = vpack.c.b16 %v655, %v654
        %v668 = vpack.c.b16 %v657, %v656
        %v669 = vpack.c.b16 %v659, %v658
        %v670 = vpack.c.b16 %v661, %v660
        %v671 = vpack.c.b16 %v663, %v662
        %680 = vmatprep.subr.bf16.mxu0 0
        %681 = vmatpush1.bf16.msra.mxu0 %v664
        %682 = vmatprep.subr.bf16.mxu0 0
        %683 = vmatpush1.bf16.msra.mxu0 %v665
        %684 = vmatprep.subr.bf16.mxu0 0
        %685 = vmatpush1.bf16.msra.mxu0 %v666
        %686 = vmatprep.subr.bf16.mxu0 0
        %687 = vmatpush1.bf16.msra.mxu0 %v667
        %688 = vmatprep.subr.bf16.mxu0 0
        %689 = vmatpush1.bf16.msra.mxu0 %v668
        %690 = vmatprep.subr.bf16.mxu0 0
        %691 = vmatpush1.bf16.msra.mxu0 %v669
        %692 = vmatprep.subr.bf16.mxu0 0
        %693 = vmatpush1.bf16.msra.mxu0 %v670
        %694 = vmatprep.subr.bf16.mxu0 0
        %695 = vmatpush1.bf16.msra.mxu0 %v671
        %696 = vmatprep.subr.bf16.mxu0 0
        %697 = vmatpush1.bf16.msra.mxu0 0
        %698 = vmatprep.subr.bf16.mxu0 0
        %699 = vmatpush1.bf16.msra.mxu0 0
        %700 = vmatprep.subr.bf16.mxu0 0
        %701 = vmatpush1.bf16.msra.mxu0 0
        %702 = vmatprep.subr.bf16.mxu0 0
        %703 = vmatpush1.bf16.msra.mxu0 0
        %704 = vmatprep.subr.bf16.mxu0 0
        %705 = vmatpush1.bf16.msra.mxu0 0
        %706 = vmatprep.subr.bf16.mxu0 0
        %707 = vmatpush1.bf16.msra.mxu0 0
        %708 = vmatprep.subr.bf16.mxu0 0
        %709 = vmatpush1.bf16.msra.mxu0 0
        %710 = vmatprep.subr.bf16.mxu0 0
        %711 = vmatpush1.bf16.msra.mxu0 0
        %712 = vmatprep.mubr.bf16.mxu0 0
        %713 = vmatmul.mubr.bf16.gmra.mrb[0].mxu0 %v614
        %v714 = vpop.f32.mrb[0].mxu0
        %v715 = vadd.f32 %v630, %v714
        %v716 = vpop.f32.mrb[0].mxu0
        %v717 = vpop.f32.mrb[0].mxu0
        %v718 = vadd.f32 %v630, %v717
        %v719 = vpop.f32.mrb[0].mxu0
        %720 = vmatprep.mubr.bf16.mxu0 0
        %721 = vmatmul.mubr.bf16.gmra.mrb[0].mxu0 %v615
        %v722 = vpop.f32.mrb[0].mxu0
        %v723 = vadd.f32 %v630, %v722
        %v724 = vpop.f32.mrb[0].mxu0
        %v725 = vpop.f32.mrb[0].mxu0
        %v726 = vadd.f32 %v630, %v725
        %v727 = vpop.f32.mrb[0].mxu0
        %728 = vmatprep.mubr.bf16.mxu0 0
        %729 = vmatmul.mubr.bf16.gmra.mrb[0].mxu0 %v616
        %v730 = vpop.f32.mrb[0].mxu0
        %v731 = vadd.f32 %v630, %v730
        %v732 = vpop.f32.mrb[0].mxu0
        %v733 = vpop.f32.mrb[0].mxu0
        %v734 = vadd.f32 %v630, %v733
        %v735 = vpop.f32.mrb[0].mxu0
        %736 = vmatprep.mubr.bf16.mxu0 0
        %737 = vmatmul.mubr.bf16.gmra.mrb[0].mxu0 %v617
        %v738 = vpop.f32.mrb[0].mxu0
        %v739 = vadd.f32 %v630, %v738
        %v740 = vpop.f32.mrb[0].mxu0
        %v741 = vpop.f32.mrb[0].mxu0
        %v742 = vadd.f32 %v630, %v741
        %v743 = vpop.f32.mrb[0].mxu0
        %744 = vmatprep.mubr.bf16.mxu0 0
        %745 = vmatmul.mubr.bf16.gmra.mrb[0].mxu0 %v618
        %v746 = vpop.f32.mrb[0].mxu0
        %v747 = vadd.f32 %v630, %v746
        %v748 = vpop.f32.mrb[0].mxu0
        %v749 = vpop.f32.mrb[0].mxu0
        %v750 = vadd.f32 %v630, %v749
        %v751 = vpop.f32.mrb[0].mxu0
        %752 = vmatprep.mubr.bf16.mxu0 0
        %753 = vmatmul.mubr.bf16.gmra.mrb[0].mxu0 %v619
        %v754 = vpop.f32.mrb[0].mxu0
        %v755 = vadd.f32 %v630, %v754
        %v756 = vpop.f32.mrb[0].mxu0
        %v757 = vpop.f32.mrb[0].mxu0
        %v758 = vadd.f32 %v630, %v757
        %v759 = vpop.f32.mrb[0].mxu0
        %760 = vmatprep.mubr.bf16.mxu0 0
        %761 = vmatmul.mubr.bf16.gmra.mrb[0].mxu0 %v620
        %v762 = vpop.f32.mrb[0].mxu0
        %v763 = vadd.f32 %v630, %v762
        %v764 = vpop.f32.mrb[0].mxu0
        %v765 = vpop.f32.mrb[0].mxu0
        %v766 = vadd.f32 %v630, %v765
        %v767 = vpop.f32.mrb[0].mxu0
        %768 = vmatprep.mubr.bf16.mxu0 0
        %769 = vmatmul.mubr.bf16.gmra.mrb[0].mxu0 %v621
        %v770 = vpop.f32.mrb[0].mxu0
        %v771 = vadd.f32 %v630, %v770
        %v772 = vpop.f32.mrb[0].mxu0
        %v773 = vpop.f32.mrb[0].mxu0
        %v774 = vadd.f32 %v630, %v773
        %v775 = vpop.f32.mrb[0].mxu0
        %776 = vmatprep.mubr.bf16.mxu0 0
        %777 = vmatmul.mubr.bf16.gmra.mrb[0].mxu0 %v622
        %v778 = vpop.f32.mrb[0].mxu0
        %v779 = vadd.f32 %v630, %v778
        %v780 = vpop.f32.mrb[0].mxu0
        %v781 = vpop.f32.mrb[0].mxu0
        %v782 = vadd.f32 %v630, %v781
        %v783 = vpop.f32.mrb[0].mxu0
        %784 = vmatprep.mubr.bf16.mxu0 0
        %785 = vmatmul.mubr.bf16.gmra.mrb[0].mxu0 %v623
        %v786 = vpop.f32.mrb[0].mxu0
        %v787 = vadd.f32 %v630, %v786
        %v788 = vpop.f32.mrb[0].mxu0
        %v789 = vpop.f32.mrb[0].mxu0
        %v790 = vadd.f32 %v630, %v789
        %v791 = vpop.f32.mrb[0].mxu0
        %792 = vmatprep.mubr.bf16.mxu0 0
        %793 = vmatmul.mubr.bf16.gmra.mrb[0].mxu0 %v624
        %v794 = vpop.f32.mrb[0].mxu0
        %v795 = vadd.f32 %v630, %v794
        %v796 = vpop.f32.mrb[0].mxu0
        %v797 = vpop.f32.mrb[0].mxu0
        %v798 = vadd.f32 %v630, %v797
        %v799 = vpop.f32.mrb[0].mxu0
        %800 = vmatprep.mubr.bf16.mxu0 0
        %801 = vmatmul.mubr.bf16.gmra.mrb[0].mxu0 %v625
        %v802 = vpop.f32.mrb[0].mxu0
        %v803 = vadd.f32 %v630, %v802
        %v804 = vpop.f32.mrb[0].mxu0
        %v805 = vpop.f32.mrb[0].mxu0
        %v806 = vadd.f32 %v630, %v805
        %v807 = vpop.f32.mrb[0].mxu0
        %808 = vdwg.mxu0
        %v809 = vmax.f32 %v715, 0.0
        %v810 = vmax.f32 %v718, 0.0
        %v811 = vmax.f32 %v723, 0.0
        %v812 = vmax.f32 %v726, 0.0
        %v813 = vmax.f32 %v731, 0.0
        %v814 = vmax.f32 %v734, 0.0
        %v815 = vmax.f32 %v739, 0.0
        %v816 = vmax.f32 %v742, 0.0
        %v817 = vmax.f32 %v747, 0.0
        %v818 = vmax.f32 %v750, 0.0
        %v819 = vmax.f32 %v755, 0.0
        %v820 = vmax.f32 %v758, 0.0
        %v821 = vmax.f32 %v763, 0.0
        %v822 = vmax.f32 %v766, 0.0
        %v823 = vmax.f32 %v771, 0.0
        %v824 = vmax.f32 %v774, 0.0
        %v825 = vmax.f32 %v779, 0.0
        %v826 = vmax.f32 %v782, 0.0
        %v827 = vmax.f32 %v787, 0.0
        %v828 = vmax.f32 %v790, 0.0
        %v829 = vmax.f32 %v795, 0.0
        %v830 = vmax.f32 %v798, 0.0
        %v831 = vmax.f32 %v803, 0.0
        %v832 = vmax.f32 %v806, 0.0
        %834 = vset.pattern.permute.xlu0 0
        %835 = vperm.xlu0 %834, %v566
        %v836 = vpop.permute.xlu0 %835
        %839 = vset.pattern.permute.xlu0 0
        %840 = vperm.xlu0 %839, %v567
        %v841 = vpop.permute.xlu0 %840
        %844 = vset.pattern.permute.xlu0 0
        %845 = vperm.xlu0 %844, %v568
        %v846 = vpop.permute.xlu0 %845
        %849 = vset.pattern.permute.xlu0 0
        %850 = vperm.xlu0 %849, %v569
        %v851 = vpop.permute.xlu0 %850
        %854 = vset.pattern.permute.xlu0 0
        %855 = vperm.xlu0 %854, %v570
        %v856 = vpop.permute.xlu0 %855
        %859 = vset.pattern.permute.xlu0 0
        %860 = vperm.xlu0 %859, %v571
        %v861 = vpop.permute.xlu0 %860
        %864 = vset.pattern.permute.xlu0 0
        %865 = vperm.xlu0 %864, %v572
        %v866 = vpop.permute.xlu0 %865
        %869 = vset.pattern.permute.xlu0 0
        %870 = vperm.xlu0 %869, %v573
        %v871 = vpop.permute.xlu0 %870
        %874 = vset.pattern.permute.xlu0 0
        %875 = vperm.xlu0 %874, %v574
        %v876 = vpop.permute.xlu0 %875
        %879 = vset.pattern.permute.xlu0 0
        %880 = vperm.xlu0 %879, %v575
        %v881 = vpop.permute.xlu0 %880
        %884 = vset.pattern.permute.xlu0 0
        %885 = vperm.xlu0 %884, %v576
        %v886 = vpop.permute.xlu0 %885
        %889 = vset.pattern.permute.xlu0 0
        %890 = vperm.xlu0 %889, %v577
        %v891 = vpop.permute.xlu0 %890
        %894 = vset.pattern.permute.xlu0 0
        %895 = vperm.xlu0 %894, %v578
        %v896 = vpop.permute.xlu0 %895
        %899 = vset.pattern.permute.xlu0 0
        %900 = vperm.xlu0 %899, %v579
        %v901 = vpop.permute.xlu0 %900
        %904 = vset.pattern.permute.xlu0 0
        %905 = vperm.xlu0 %904, %v580
        %v906 = vpop.permute.xlu0 %905
        %909 = vset.pattern.permute.xlu0 0
        %910 = vperm.xlu0 %909, %v581
        %v911 = vpop.permute.xlu0 %910
        %914 = vset.pattern.permute.xlu0 0
        %915 = vperm.xlu0 %914, %v582
        %v916 = vpop.permute.xlu0 %915
        %919 = vset.pattern.permute.xlu0 0
        %920 = vperm.xlu0 %919, %v583
        %v921 = vpop.permute.xlu0 %920
        %924 = vset.pattern.permute.xlu0 0
        %925 = vperm.xlu0 %924, %v584
        %v926 = vpop.permute.xlu0 %925
        %929 = vset.pattern.permute.xlu0 0
        %930 = vperm.xlu0 %929, %v585
        %v931 = vpop.permute.xlu0 %930
        %934 = vset.pattern.permute.xlu0 0
        %935 = vperm.xlu0 %934, %v586
        %v936 = vpop.permute.xlu0 %935
        %939 = vset.pattern.permute.xlu0 0
        %940 = vperm.xlu0 %939, %v587
        %v941 = vpop.permute.xlu0 %940
        %944 = vset.pattern.permute.xlu0 0
        %945 = vperm.xlu0 %944, %v588
        %v946 = vpop.permute.xlu0 %945
        %949 = vset.pattern.permute.xlu0 0
        %950 = vperm.xlu0 %949, %v589
        %v951 = vpop.permute.xlu0 %950
        %v953 = vmul.f32 %v809, %v836
        %v954 = vmul.f32 %v810, %v841
        %v955 = vmul.f32 %v811, %v846
        %v956 = vmul.f32 %v812, %v851
        %v957 = vmul.f32 %v813, %v856
        %v958 = vmul.f32 %v814, %v861
        %v959 = vmul.f32 %v815, %v866
        %v960 = vmul.f32 %v816, %v871
        %v961 = vmul.f32 %v817, %v876
        %v962 = vmul.f32 %v818, %v881
        %v963 = vmul.f32 %v819, %v886
        %v964 = vmul.f32 %v820, %v891
        %v965 = vmul.f32 %v821, %v896
        %v966 = vmul.f32 %v822, %v901
        %v967 = vmul.f32 %v823, %v906
        %v968 = vmul.f32 %v824, %v911
        %v969 = vmul.f32 %v825, %v916
        %v970 = vmul.f32 %v826, %v921
        %v971 = vmul.f32 %v827, %v926
        %v972 = vmul.f32 %v828, %v931
        %v973 = vmul.f32 %v829, %v936
        %v974 = vmul.f32 %v830, %v941
        %v975 = vmul.f32 %v831, %v946
        %v976 = vmul.f32 %v832, %v951
        %977 = vst [vmem:[#allocation2 + $0x20] sm:$0xff] %v953
        %978 = vst [vmem:[#allocation2 + $0x28] sm:$0xff] %v954
        %979 = vst [vmem:[#allocation2 + $0x30] sm:$0xff] %v955
        %980 = vst [vmem:[#allocation2 + $0x38] sm:$0xff] %v956
        %981 = vst [vmem:[#allocation2 + $0x40] sm:$0xff] %v957
        %982 = vst [vmem:[#allocation2 + $0x48] sm:$0xff] %v958
        %983 = vst [vmem:[#allocation2 + $0x50] sm:$0xff] %v959
        %984 = vst [vmem:[#allocation2 + $0x58] sm:$0xff] %v960
        %985 = vst [vmem:[#allocation2 + $0x60] sm:$0xff] %v961
        %986 = vst [vmem:[#allocation2 + $0x68] sm:$0xff] %v962
        %987 = vst [vmem:[#allocation2 + $0x70] sm:$0xff] %v963
        %988 = vst [vmem:[#allocation2 + $0x78] sm:$0xff] %v964
        %989 = vst [vmem:[#allocation2 + $0x80] sm:$0xff] %v965
        %990 = vst [vmem:[#allocation2 + $0x88] sm:$0xff] %v966
        %991 = vst [vmem:[#allocation2 + $0x90] sm:$0xff] %v967
        %992 = vst [vmem:[#allocation2 + $0x98] sm:$0xff] %v968
        %993 = vst [vmem:[#allocation2 + $0xa0] sm:$0xff] %v969
        %994 = vst [vmem:[#allocation2 + $0xa8] sm:$0xff] %v970
        %995 = vst [vmem:[#allocation2 + $0xb0] sm:$0xff] %v971
        %996 = vst [vmem:[#allocation2 + $0xb8] sm:$0xff] %v972
        %997 = vst [vmem:[#allocation2 + $0xc0] sm:$0xff] %v973
        %998 = vst [vmem:[#allocation2 + $0xc8] sm:$0xff] %v974
        %999 = vst [vmem:[#allocation2 + $0xd0] sm:$0xff] %v975
        %1000 = vst [vmem:[#allocation2 + $0xd8] sm:$0xff] %v976
        %v1001 = vld [vmem:[%s3] sm:$0xff]
        %v1002 = vld [vmem:[%s3 + $0x8] sm:$0xff]
        %v1003 = vld [vmem:[%s3 + $0x10] sm:$0xff]
        %p1004 = scmp.gt.s32.totalorder %s36, 0
        %s1005 = scalar_select %p1004, 1, 0
        %s1006 = scvt.s32.f32 %s1005
        %p1007 = scmp.lt.s32.totalorder %s36, 1
        %s1008 = scalar_select %p1007, 1, 0
        %s1009 = scvt.s32.f32 %s1008
        %v1010 = vld [vmem:[%s468] sm:$0xff]
        %v1011 = vld [vmem:[%s468 + $0x8] sm:$0xff]
        %v1012 = vld [vmem:[%s468 + $0x10] sm:$0xff]
        %v1013 = vpack.c.bf16 %v1011, %v1010
        %v1014 = vpack.c.bf16 %v1012, %v1012
        %1015 = vmatprep.subr.bf16.mxu0 0
        %1016 = vmatpush1.bf16.msra.mxu0 %v664
        %1017 = vmatprep.subr.bf16.mxu0 0
        %1018 = vmatpush1.bf16.msra.mxu0 %v665
        %1019 = vmatprep.subr.bf16.mxu0 0
        %1020 = vmatpush1.bf16.msra.mxu0 %v666
        %1021 = vmatprep.subr.bf16.mxu0 0
        %1022 = vmatpush1.bf16.msra.mxu0 %v667
        %1023 = vmatprep.subr.bf16.mxu0 0
        %1024 = vmatpush1.bf16.msra.mxu0 %v668
        %1025 = vmatprep.subr.bf16.mxu0 0
        %1026 = vmatpush1.bf16.msra.mxu0 %v669
        %1027 = vmatprep.subr.bf16.mxu0 0
        %1028 = vmatpush1.bf16.msra.mxu0 %v670
        %1029 = vmatprep.subr.bf16.mxu0 0
        %1030 = vmatpush1.bf16.msra.mxu0 %v671
        %1031 = vmatprep.subr.bf16.mxu0 0
        %1032 = vmatpush1.bf16.msra.mxu0 0
        %1033 = vmatprep.subr.bf16.mxu0 0
        %1034 = vmatpush1.bf16.msra.mxu0 0
        %1035 = vmatprep.subr.bf16.mxu0 0
        %1036 = vmatpush1.bf16.msra.mxu0 0
        %1037 = vmatprep.subr.bf16.mxu0 0
        %1038 = vmatpush1.bf16.msra.mxu0 0
        %1039 = vmatprep.subr.bf16.mxu0 0
        %1040 = vmatpush1.bf16.msra.mxu0 0
        %1041 = vmatprep.subr.bf16.mxu0 0
        %1042 = vmatpush1.bf16.msra.mxu0 0
        %1043 = vmatprep.subr.bf16.mxu0 0
        %1044 = vmatpush1.bf16.msra.mxu0 0
        %1045 = vmatprep.subr.bf16.mxu0 0
        %1046 = vmatpush1.bf16.msra.mxu0 0
        %1047 = vmatprep.mubr.bf16.mxu0 0
        %1048 = vmatmul.mubr.bf16.gmra.mrb[0].mxu0 %v1013
        %v1049 = vpop.f32.mrb[0].mxu0
        %v1050 = vadd.f32 %v630, %v1049
        %v1051 = vpop.f32.mrb[0].mxu0
        %v1052 = vpop.f32.mrb[0].mxu0
        %v1053 = vadd.f32 %v630, %v1052
        %v1054 = vpop.f32.mrb[0].mxu0
        %1055 = vmatprep.mubr.bf16.mxu0 0
        %1056 = vmatmul.mubr.bf16.gmra.mrb[0].mxu0 %v1014
        %v1057 = vpop.f32.mrb[0].mxu0
        %v1058 = vadd.f32 %v630, %v1057
        %v1059 = vpop.f32.mrb[0].mxu0
        %v1060 = vpop.f32.mrb[0].mxu0
        %v1061 = vpop.f32.mrb[0].mxu0
        %1062 = vdwg.mxu0
        %v1063 = vmax.f32 %v1050, 0.0
        %v1064 = vmax.f32 %v1053, 0.0
        %v1065 = vmax.f32 %v1058, 0.0
        %v1066 = vstv %s1006
        %v1067 = vmul.f32 %v1001, %v1066
        %v1068 = vmul.f32 %v1002, %v1066
        %v1069 = vmul.f32 %v1003, %v1066
        %1071 = vset.pattern.permute.xlu0 0
        %1072 = vperm.xlu0 %1071, %v1067
        %v1073 = vpop.permute.xlu0 %1072
        %1076 = vset.pattern.permute.xlu0 0
        %1077 = vperm.xlu0 %1076, %v1068
        %v1078 = vpop.permute.xlu0 %1077
        %1081 = vset.pattern.permute.xlu0 0
        %1082 = vperm.xlu0 %1081, %v1069
        %v1083 = vpop.permute.xlu0 %1082
        %v1085 = vmul.f32 %v1063, %v1073
        %v1086 = vmul.f32 %v1064, %v1078
        %v1087 = vmul.f32 %v1065, %v1083
        %1088 = vst [vmem:[#allocation2 + $0x8] sm:$0xff] %v1085
        %1089 = vst [vmem:[#allocation2 + $0x10] sm:$0xff] %v1086
        %1090 = vst [vmem:[#allocation2 + $0x18] sm:$0xff] %v1087
        %v1091 = vld [vmem:[%s477] sm:$0xff]
        %v1092 = vld [vmem:[%s477 + $0x8] sm:$0xff]
        %v1093 = vld [vmem:[%s477 + $0x10] sm:$0xff]
        %v1094 = vpack.c.bf16 %v1092, %v1091
        %v1095 = vpack.c.bf16 %v1093, %v1093
        %1096 = vmatprep.subr.bf16.mxu0 0
        %1097 = vmatpush1.bf16.msra.mxu0 %v664
        %1098 = vmatprep.subr.bf16.mxu0 0
        %1099 = vmatpush1.bf16.msra.mxu0 %v665
        %1100 = vmatprep.subr.bf16.mxu0 0
        %1101 = vmatpush1.bf16.msra.mxu0 %v666
        %1102 = vmatprep.subr.bf16.mxu0 0
        %1103 = vmatpush1.bf16.msra.mxu0 %v667
        %1104 = vmatprep.subr.bf16.mxu0 0
        %1105 = vmatpush1.bf16.msra.mxu0 %v668
        %1106 = vmatprep.subr.bf16.mxu0 0
        %1107 = vmatpush1.bf16.msra.mxu0 %v669
        %1108 = vmatprep.subr.bf16.mxu0 0
        %1109 = vmatpush1.bf16.msra.mxu0 %v670
        %1110 = vmatprep.subr.bf16.mxu0 0
        %1111 = vmatpush1.bf16.msra.mxu0 %v671
        %1112 = vmatprep.subr.bf16.mxu0 0
        %1113 = vmatpush1.bf16.msra.mxu0 0
        %1114 = vmatprep.subr.bf16.mxu0 0
        %1115 = vmatpush1.bf16.msra.mxu0 0
        %1116 = vmatprep.subr.bf16.mxu0 0
        %1117 = vmatpush1.bf16.msra.mxu0 0
        %1118 = vmatprep.subr.bf16.mxu0 0
        %1119 = vmatpush1.bf16.msra.mxu0 0
        %1120 = vmatprep.subr.bf16.mxu0 0
        %1121 = vmatpush1.bf16.msra.mxu0 0
        %1122 = vmatprep.subr.bf16.mxu0 0
        %1123 = vmatpush1.bf16.msra.mxu0 0
        %1124 = vmatprep.subr.bf16.mxu0 0
        %1125 = vmatpush1.bf16.msra.mxu0 0
        %1126 = vmatprep.subr.bf16.mxu0 0
        %1127 = vmatpush1.bf16.msra.mxu0 0
        %1128 = vmatprep.mubr.bf16.mxu0 0
        %1129 = vmatmul.mubr.bf16.gmra.mrb[0].mxu0 %v1094
        %v1130 = vpop.f32.mrb[0].mxu0
        %v1131 = vadd.f32 %v630, %v1130
        %v1132 = vpop.f32.mrb[0].mxu0
        %v1133 = vpop.f32.mrb[0].mxu0
        %v1134 = vadd.f32 %v630, %v1133
        %v1135 = vpop.f32.mrb[0].mxu0
        %1136 = vmatprep.mubr.bf16.mxu0 0
        %1137 = vmatmul.mubr.bf16.gmra.mrb[0].mxu0 %v1095
        %v1138 = vpop.f32.mrb[0].mxu0
        %v1139 = vadd.f32 %v630, %v1138
        %v1140 = vpop.f32.mrb[0].mxu0
        %v1141 = vpop.f32.mrb[0].mxu0
        %v1142 = vpop.f32.mrb[0].mxu0
        %1143 = vdwg.mxu0
        %v1144 = vmax.f32 %v1131, 0.0
        %v1145 = vmax.f32 %v1134, 0.0
        %v1146 = vmax.f32 %v1139, 0.0
        %v1147 = vstv %s1009
        %v1148 = vmul.f32 %v1001, %v1147
        %v1149 = vmul.f32 %v1002, %v1147
        %v1150 = vmul.f32 %v1003, %v1147
        %1152 = vset.pattern.permute.xlu0 0
        %1153 = vperm.xlu0 %1152, %v1148
        %v1154 = vpop.permute.xlu0 %1153
        %1157 = vset.pattern.permute.xlu0 0
        %1158 = vperm.xlu0 %1157, %v1149
        %v1159 = vpop.permute.xlu0 %1158
        %1162 = vset.pattern.permute.xlu0 0
        %1163 = vperm.xlu0 %1162, %v1150
        %v1164 = vpop.permute.xlu0 %1163
        %v1166 = vmul.f32 %v1144, %v1154
        %v1167 = vmul.f32 %v1145, %v1159
        %v1168 = vmul.f32 %v1146, %v1164
        %1169 = vst [vmem:[#allocation2 + $0xe0] sm:$0xff] %v1166
        %1170 = vst [vmem:[#allocation2 + $0xe8] sm:$0xff] %v1167
        %1171 = vst [vmem:[#allocation2 + $0xf0] sm:$0xff] %v1168
        %v1172 = vld [vmem:[#allocation2 + $0x7] sm:$0xff]
        %v1173 = vld [vmem:[#allocation2 + $0xf] sm:$0xff]
        %v1174 = vld [vmem:[#allocation2 + $0x17] sm:$0xff]
        %v1175 = vld [vmem:[#allocation2 + $0x1f] sm:$0xff]
        %v1176 = vld [vmem:[#allocation2 + $0x27] sm:$0xff]
        %v1177 = vld [vmem:[#allocation2 + $0x2f] sm:$0xff]
        %v1178 = vld [vmem:[#allocation2 + $0x37] sm:$0xff]
        %v1179 = vld [vmem:[#allocation2 + $0x3f] sm:$0xff]
        %v1180 = vld [vmem:[#allocation2 + $0x47] sm:$0xff]
        %v1181 = vld [vmem:[#allocation2 + $0x4f] sm:$0xff]
        %v1182 = vld [vmem:[#allocation2 + $0x57] sm:$0xff]
        %v1183 = vld [vmem:[#allocation2 + $0x5f] sm:$0xff]
        %v1184 = vld [vmem:[#allocation2 + $0x67] sm:$0xff]
        %v1185 = vld [vmem:[#allocation2 + $0x6f] sm:$0xff]
        %v1186 = vld [vmem:[#allocation2 + $0x77] sm:$0xff]
        %v1187 = vld [vmem:[#allocation2 + $0x7f] sm:$0xff]
        %v1188 = vld [vmem:[#allocation2 + $0x87] sm:$0xff]
        %v1189 = vld [vmem:[#allocation2 + $0x8f] sm:$0xff]
        %v1190 = vld [vmem:[#allocation2 + $0x97] sm:$0xff]
        %v1191 = vld [vmem:[#allocation2 + $0x9f] sm:$0xff]
        %v1192 = vld [vmem:[#allocation2 + $0xa7] sm:$0xff]
        %v1193 = vld [vmem:[#allocation2 + $0xaf] sm:$0xff]
        %v1194 = vld [vmem:[#allocation2 + $0xb7] sm:$0xff]
        %v1195 = vld [vmem:[#allocation2 + $0xbf] sm:$0xff]
        %v1196 = vpack.c.bf16 %v1173, %v1172
        %v1197 = vpack.c.bf16 %v1175, %v1174
        %v1198 = vpack.c.bf16 %v1177, %v1176
        %v1199 = vpack.c.bf16 %v1179, %v1178
        %v1200 = vpack.c.bf16 %v1181, %v1180
        %v1201 = vpack.c.bf16 %v1183, %v1182
        %v1202 = vpack.c.bf16 %v1185, %v1184
        %v1203 = vpack.c.bf16 %v1187, %v1186
        %v1204 = vpack.c.bf16 %v1189, %v1188
        %v1205 = vpack.c.bf16 %v1191, %v1190
        %v1206 = vpack.c.bf16 %v1193, %v1192
        %v1207 = vpack.c.bf16 %v1195, %v1194
        %v1208 = vld [vmem:[#allocation2 + $0x8] sm:$0xff]
        %v1209 = vld [vmem:[#allocation2 + $0x10] sm:$0xff]
        %v1210 = vld [vmem:[#allocation2 + $0x18] sm:$0xff]
        %v1211 = vld [vmem:[#allocation2 + $0x20] sm:$0xff]
        %v1212 = vld [vmem:[#allocation2 + $0x28] sm:$0xff]
        %v1213 = vld [vmem:[#allocation2 + $0x30] sm:$0xff]
        %v1214 = vld [vmem:[#allocation2 + $0x38] sm:$0xff]
        %v1215 = vld [vmem:[#allocation2 + $0x40] sm:$0xff]
        %v1216 = vld [vmem:[#allocation2 + $0x48] sm:$0xff]
        %v1217 = vld [vmem:[#allocation2 + $0x50] sm:$0xff]
        %v1218 = vld [vmem:[#allocation2 + $0x58] sm:$0xff]
        %v1219 = vld [vmem:[#allocation2 + $0x60] sm:$0xff]
        %v1220 = vld [vmem:[#allocation2 + $0x68] sm:$0xff]
        %v1221 = vld [vmem:[#allocation2 + $0x70] sm:$0xff]
        %v1222 = vld [vmem:[#allocation2 + $0x78] sm:$0xff]
        %v1223 = vld [vmem:[#allocation2 + $0x80] sm:$0xff]
        %v1224 = vld [vmem:[#allocation2 + $0x88] sm:$0xff]
        %v1225 = vld [vmem:[#allocation2 + $0x90] sm:$0xff]
        %v1226 = vld [vmem:[#allocation2 + $0x98] sm:$0xff]
        %v1227 = vld [vmem:[#allocation2 + $0xa0] sm:$0xff]
        %v1228 = vld [vmem:[#allocation2 + $0xa8] sm:$0xff]
        %v1229 = vld [vmem:[#allocation2 + $0xb0] sm:$0xff]
        %v1230 = vld [vmem:[#allocation2 + $0xb8] sm:$0xff]
        %v1231 = vld [vmem:[#allocation2 + $0xc0] sm:$0xff]
        %v1232 = vpack.c.bf16 %v1209, %v1208
        %v1233 = vpack.c.bf16 %v1211, %v1210
        %v1234 = vpack.c.bf16 %v1213, %v1212
        %v1235 = vpack.c.bf16 %v1215, %v1214
        %v1236 = vpack.c.bf16 %v1217, %v1216
        %v1237 = vpack.c.bf16 %v1219, %v1218
        %v1238 = vpack.c.bf16 %v1221, %v1220
        %v1239 = vpack.c.bf16 %v1223, %v1222
        %v1240 = vpack.c.bf16 %v1225, %v1224
        %v1241 = vpack.c.bf16 %v1227, %v1226
        %v1242 = vpack.c.bf16 %v1229, %v1228
        %v1243 = vpack.c.bf16 %v1231, %v1230
        %v1244 = vld [vmem:[#allocation2 + $0x9] sm:$0xff]
        %v1245 = vld [vmem:[#allocation2 + $0x11] sm:$0xff]
        %v1246 = vld [vmem:[#allocation2 + $0x19] sm:$0xff]
        %v1247 = vld [vmem:[#allocation2 + $0x21] sm:$0xff]
        %v1248 = vld [vmem:[#allocation2 + $0x29] sm:$0xff]
        %v1249 = vld [vmem:[#allocation2 + $0x31] sm:$0xff]
        %v1250 = vld [vmem:[#allocation2 + $0x39] sm:$0xff]
        %v1251 = vld [vmem:[#allocation2 + $0x41] sm:$0xff]
        %v1252 = vld [vmem:[#allocation2 + $0x49] sm:$0xff]
        %v1253 = vld [vmem:[#allocation2 + $0x51] sm:$0xff]
        %v1254 = vld [vmem:[#allocation2 + $0x59] sm:$0xff]
        %v1255 = vld [vmem:[#allocation2 + $0x61] sm:$0xff]
        %v1256 = vld [vmem:[#allocation2 + $0x69] sm:$0xff]
        %v1257 = vld [vmem:[#allocation2 + $0x71] sm:$0xff]
        %v1258 = vld [vmem:[#allocation2 + $0x79] sm:$0xff]
        %v1259 = vld [vmem:[#allocation2 + $0x81] sm:$0xff]
        %v1260 = vld [vmem:[#allocation2 + $0x89] sm:$0xff]
        %v1261 = vld [vmem:[#allocation2 + $0x91] sm:$0xff]
        %v1262 = vld [vmem:[#allocation2 + $0x99] sm:$0xff]
        %v1263 = vld [vmem:[#allocation2 + $0xa1] sm:$0xff]
        %v1264 = vld [vmem:[#allocation2 + $0xa9] sm:$0xff]
        %v1265 = vld [vmem:[#allocation2 + $0xb1] sm:$0xff]
        %v1266 = vld [vmem:[#allocation2 + $0xb9] sm:$0xff]
        %v1267 = vld [vmem:[#allocation2 + $0xc1] sm:$0xff]
        %v1268 = vpack.c.bf16 %v1245, %v1244
        %v1269 = vpack.c.bf16 %v1247, %v1246
        %v1270 = vpack.c.bf16 %v1249, %v1248
        %v1271 = vpack.c.bf16 %v1251, %v1250
        %v1272 = vpack.c.bf16 %v1253, %v1252
        %v1273 = vpack.c.bf16 %v1255, %v1254
        %v1274 = vpack.c.bf16 %v1257, %v1256
        %v1275 = vpack.c.bf16 %v1259, %v1258
        %v1276 = vpack.c.bf16 %v1261, %v1260
        %v1277 = vpack.c.bf16 %v1263, %v1262
        %v1278 = vpack.c.bf16 %v1265, %v1264
        %v1279 = vpack.c.bf16 %v1267, %v1266
        %v1280 = vld [vmem:[#allocation2 + $0xc7] sm:$0xff]
        %v1281 = vld [vmem:[#allocation2 + $0xcf] sm:$0xff]
        %v1282 = vld [vmem:[#allocation2 + $0xd7] sm:$0xff]
        %v1283 = vpack.c.bf16 %v1176, %v1175
        %v1284 = vpack.c.bf16 %v1178, %v1177
        %v1285 = vpack.c.bf16 %v1180, %v1179
        %v1286 = vpack.c.bf16 %v1182, %v1181
        %v1287 = vpack.c.bf16 %v1184, %v1183
        %v1288 = vpack.c.bf16 %v1186, %v1185
        %v1289 = vpack.c.bf16 %v1188, %v1187
        %v1290 = vpack.c.bf16 %v1190, %v1189
        %v1291 = vpack.c.bf16 %v1192, %v1191
        %v1292 = vpack.c.bf16 %v1194, %v1193
        %v1293 = vpack.c.bf16 %v1280, %v1195
        %v1294 = vpack.c.bf16 %v1282, %v1281
        %v1295 = vld [vmem:[#allocation2 + $0xc8] sm:$0xff]
        %v1296 = vld [vmem:[#allocation2 + $0xd0] sm:$0xff]
        %v1297 = vld [vmem:[#allocation2 + $0xd8] sm:$0xff]
        %v1298 = vpack.c.bf16 %v1212, %v1211
        %v1299 = vpack.c.bf16 %v1214, %v1213
        %v1300 = vpack.c.bf16 %v1216, %v1215
        %v1301 = vpack.c.bf16 %v1218, %v1217
        %v1302 = vpack.c.bf16 %v1220, %v1219
        %v1303 = vpack.c.bf16 %v1222, %v1221
        %v1304 = vpack.c.bf16 %v1224, %v1223
        %v1305 = vpack.c.bf16 %v1226, %v1225
        %v1306 = vpack.c.bf16 %v1228, %v1227
        %v1307 = vpack.c.bf16 %v1230, %v1229
        %v1308 = vpack.c.bf16 %v1295, %v1231
        %v1309 = vpack.c.bf16 %v1297, %v1296
        %v1310 = vld [vmem:[#allocation2 + $0xc9] sm:$0xff]
        %v1311 = vld [vmem:[#allocation2 + $0xd1] sm:$0xff]
        %v1312 = vld [vmem:[#allocation2 + $0xd9] sm:$0xff]
        %v1313 = vpack.c.bf16 %v1248, %v1247
        %v1314 = vpack.c.bf16 %v1250, %v1249
        %v1315 = vpack.c.bf16 %v1252, %v1251
        %v1316 = vpack.c.bf16 %v1254, %v1253
        %v1317 = vpack.c.bf16 %v1256, %v1255
        %v1318 = vpack.c.bf16 %v1258, %v1257
        %v1319 = vpack.c.bf16 %v1260, %v1259
        %v1320 = vpack.c.bf16 %v1262, %v1261
        %v1321 = vpack.c.bf16 %v1264, %v1263
        %v1322 = vpack.c.bf16 %v1266, %v1265
        %v1323 = vpack.c.bf16 %v1310, %v1267
        %v1324 = vpack.c.bf16 %v1312, %v1311
        %v1325 = vld [vmem:[#allocation2 + $0xdf] sm:$0xff]
        %v1326 = vld [vmem:[#allocation2 + $0xe7] sm:$0xff]
        %v1327 = vld [vmem:[#allocation2 + $0xef] sm:$0xff]
        %v1328 = vpack.c.bf16 %v1281, %v1280
        %v1329 = vpack.c.bf16 %v1325, %v1282
        %v1330 = vpack.c.bf16 %v1327, %v1326
        %v1331 = vld [vmem:[#allocation2 + $0xe0] sm:$0xff]
        %v1332 = vld [vmem:[#allocation2 + $0xe8] sm:$0xff]
        %v1333 = vld [vmem:[#allocation2 + $0xf0] sm:$0xff]
        %v1334 = vpack.c.bf16 %v1296, %v1295
        %v1335 = vpack.c.bf16 %v1331, %v1297
        %v1336 = vpack.c.bf16 %v1333, %v1332
        %v1337 = vld [vmem:[#allocation2 + $0xe1] sm:$0xff]
        %v1338 = vld [vmem:[#allocation2 + $0xe9] sm:$0xff]
        %v1339 = vld [vmem:[#allocation2 + $0xf1] sm:$0xff]
        %v1340 = vpack.c.bf16 %v1311, %v1310
        %v1341 = vpack.c.bf16 %v1337, %v1312
        %v1342 = vpack.c.bf16 %v1339, %v1338
        %v1343 = vld [vmem:[#allocation9] sm:$0xf]
        %v1344 = vld [vmem:[#allocation9 + $0x4] sm:$0xf]
        %v1345 = vld [vmem:[#allocation9 + $0x8] sm:$0xf]
        %v1346 = vld [vmem:[#allocation9 + $0xc] sm:$0xf]
        %v1347 = vld [vmem:[#allocation9 + $0x10] sm:$0xf]
        %v1348 = vld [vmem:[#allocation9 + $0x14] sm:$0xf]
        %v1349 = vld [vmem:[#allocation9 + $0x18] sm:$0xf]
        %v1350 = vld [vmem:[#allocation9 + $0x1c] sm:$0xf]
        %v1351 = vld [vmem:[#allocation9 + $0x20] sm:$0xf]
        %v1352 = vld [vmem:[#allocation9 + $0x24] sm:$0xf]
        %v1353 = vld [vmem:[#allocation9 + $0x28] sm:$0xf]
        %v1354 = vld [vmem:[#allocation9 + $0x2c] sm:$0xf]
        %v1355 = vld [vmem:[#allocation9 + $0x30] sm:$0xf]
        %v1356 = vld [vmem:[#allocation9 + $0x34] sm:$0xf]
        %v1357 = vld [vmem:[#allocation9 + $0x38] sm:$0xf]
        %v1358 = vld [vmem:[#allocation9 + $0x3c] sm:$0xf]
        %v1359 = vld [vmem:[#allocation9 + $0x40] sm:$0xf]
        %v1360 = vld [vmem:[#allocation9 + $0x44] sm:$0xf]
        %v1361 = vld [vmem:[#allocation9 + $0x48] sm:$0xf]
        %v1362 = vld [vmem:[#allocation9 + $0x4c] sm:$0xf]
        %v1363 = vld [vmem:[#allocation9 + $0x50] sm:$0xf]
        %v1364 = vld [vmem:[#allocation9 + $0x54] sm:$0xf]
        %v1365 = vld [vmem:[#allocation9 + $0x58] sm:$0xf]
        %v1366 = vld [vmem:[#allocation9 + $0x5c] sm:$0xf]
        %v1367 = vld [vmem:[#allocation9 + $0x60] sm:$0xf]
        %v1368 = vld [vmem:[#allocation9 + $0x64] sm:$0xf]
        %v1369 = vld [vmem:[#allocation9 + $0x68] sm:$0xf]
        %v1370 = vld [vmem:[#allocation9 + $0x6c] sm:$0xf]
        %v1371 = vld [vmem:[#allocation9 + $0x70] sm:$0xf]
        %v1372 = vld [vmem:[#allocation9 + $0x74] sm:$0xf]
        %v1373 = vld [vmem:[#allocation9 + $0x78] sm:$0xf]
        %v1374 = vld [vmem:[#allocation9 + $0x7c] sm:$0xf]
        %v1375 = vld [vmem:[#allocation9 + $0x80] sm:$0xf]
        %v1376 = vld [vmem:[#allocation9 + $0x84] sm:$0xf]
        %v1377 = vld [vmem:[#allocation9 + $0x88] sm:$0xf]
        %v1378 = vld [vmem:[#allocation9 + $0x8c] sm:$0xf]
        %v1379 = vld [vmem:[#allocation9 + $0x90] sm:$0xf]
        %v1380 = vld [vmem:[#allocation9 + $0x94] sm:$0xf]
        %v1381 = vld [vmem:[#allocation9 + $0x98] sm:$0xf]
        %v1382 = vld [vmem:[#allocation9 + $0x9c] sm:$0xf]
        %v1383 = vld [vmem:[#allocation9 + $0xa0] sm:$0xf]
        %v1384 = vld [vmem:[#allocation9 + $0xa4] sm:$0xf]
        %v1385 = vld [vmem:[#allocation9 + $0xa8] sm:$0xf]
        %v1386 = vld [vmem:[#allocation9 + $0xac] sm:$0xf]
        %v1387 = vld [vmem:[#allocation9 + $0xb0] sm:$0xf]
        %v1388 = vld [vmem:[#allocation9 + $0xb4] sm:$0xf]
        %v1389 = vld [vmem:[#allocation9 + $0xb8] sm:$0xf]
        %v1390 = vld [vmem:[#allocation9 + $0xbc] sm:$0xf]
        %v1391 = vld [vmem:[#allocation9 + $0xc0] sm:$0xf]
        %v1392 = vld [vmem:[#allocation9 + $0xc4] sm:$0xf]
        %v1393 = vld [vmem:[#allocation9 + $0xc8] sm:$0xf]
        %v1394 = vld [vmem:[#allocation9 + $0xcc] sm:$0xf]
        %v1395 = vld [vmem:[#allocation9 + $0xd0] sm:$0xf]
        %v1396 = vld [vmem:[#allocation9 + $0xd4] sm:$0xf]
        %v1397 = vld [vmem:[#allocation9 + $0xd8] sm:$0xf]
        %v1398 = vld [vmem:[#allocation9 + $0xdc] sm:$0xf]
        %v1399 = vld [vmem:[#allocation9 + $0xe0] sm:$0xf]
        %v1400 = vld [vmem:[#allocation9 + $0xe4] sm:$0xf]
        %v1401 = vld [vmem:[#allocation9 + $0xe8] sm:$0xf]
        %v1402 = vld [vmem:[#allocation9 + $0xec] sm:$0xf]
        %v1403 = vld [vmem:[#allocation9 + $0xf0] sm:$0xf]
        %v1404 = vld [vmem:[#allocation9 + $0xf4] sm:$0xf]
        %v1405 = vld [vmem:[#allocation9 + $0xf8] sm:$0xf]
        %v1406 = vld [vmem:[#allocation9 + $0xfc] sm:$0xf]
        %v1407 = vld [vmem:[#allocation9 + $0x100] sm:$0xf]
        %v1408 = vld [vmem:[#allocation9 + $0x104] sm:$0xf]
        %v1409 = vld [vmem:[#allocation9 + $0x108] sm:$0xf]
        %v1410 = vld [vmem:[#allocation9 + $0x10c] sm:$0xf]
        %v1411 = vld [vmem:[#allocation9 + $0x110] sm:$0xf]
        %v1412 = vld [vmem:[#allocation9 + $0x114] sm:$0xf]
        %v1413 = vld [vmem:[#allocation9 + $0x118] sm:$0xf]
        %v1414 = vld [vmem:[#allocation9 + $0x11c] sm:$0xf]
        %v1415 = vld [vmem:[#allocation9 + $0x120] sm:$0xf]
        %v1416 = vld [vmem:[#allocation9 + $0x124] sm:$0xf]
        %v1417 = vld [vmem:[#allocation9 + $0x128] sm:$0xf]
        %v1418 = vld [vmem:[#allocation9 + $0x12c] sm:$0xf]
        %v1419 = vld [vmem:[#allocation9 + $0x130] sm:$0xf]
        %v1420 = vld [vmem:[#allocation9 + $0x134] sm:$0xf]
        %v1421 = vld [vmem:[#allocation9 + $0x138] sm:$0xf]
        %v1422 = vld [vmem:[#allocation9 + $0x13c] sm:$0xf]
        %v1423 = vld [vmem:[#allocation9 + $0x140] sm:$0xf]
        %v1424 = vld [vmem:[#allocation9 + $0x144] sm:$0xf]
        %v1425 = vld [vmem:[#allocation9 + $0x148] sm:$0xf]
        %v1426 = vld [vmem:[#allocation9 + $0x14c] sm:$0xf]
        %v1427 = vld [vmem:[#allocation9 + $0x150] sm:$0xf]
        %v1428 = vld [vmem:[#allocation9 + $0x154] sm:$0xf]
        %v1429 = vld [vmem:[#allocation9 + $0x158] sm:$0xf]
        %v1430 = vld [vmem:[#allocation9 + $0x15c] sm:$0xf]
        %v1431 = vld [vmem:[#allocation9 + $0x160] sm:$0xf]
        %v1432 = vld [vmem:[#allocation9 + $0x164] sm:$0xf]
        %v1433 = vld [vmem:[#allocation9 + $0x168] sm:$0xf]
        %v1434 = vld [vmem:[#allocation9 + $0x16c] sm:$0xf]
        %v1435 = vld [vmem:[#allocation9 + $0x170] sm:$0xf]
        %v1436 = vld [vmem:[#allocation9 + $0x174] sm:$0xf]
        %v1437 = vld [vmem:[#allocation9 + $0x178] sm:$0xf]
        %v1438 = vld [vmem:[#allocation9 + $0x17c] sm:$0xf]
        %v1439 = vld [vmem:[#allocation9 + $0x180] sm:$0xf]
        %v1440 = vld [vmem:[#allocation9 + $0x184] sm:$0xf]
        %v1441 = vld [vmem:[#allocation9 + $0x188] sm:$0xf]
        %v1442 = vld [vmem:[#allocation9 + $0x18c] sm:$0xf]
        %v1443 = vld [vmem:[#allocation9 + $0x190] sm:$0xf]
        %v1444 = vld [vmem:[#allocation9 + $0x194] sm:$0xf]
        %v1445 = vld [vmem:[#allocation9 + $0x198] sm:$0xf]
        %v1446 = vld [vmem:[#allocation9 + $0x19c] sm:$0xf]
        %v1447 = vld [vmem:[#allocation9 + $0x1a0] sm:$0xf]
        %v1448 = vld [vmem:[#allocation9 + $0x1a4] sm:$0xf]
        %v1449 = vld [vmem:[#allocation9 + $0x1a8] sm:$0xf]
        %v1450 = vld [vmem:[#allocation9 + $0x1ac] sm:$0xf]
        %v1451 = vld [vmem:[#allocation9 + $0x1b0] sm:$0xf]
        %v1452 = vld [vmem:[#allocation9 + $0x1b4] sm:$0xf]
        %v1453 = vld [vmem:[#allocation9 + $0x1b8] sm:$0xf]
        %v1454 = vld [vmem:[#allocation9 + $0x1bc] sm:$0xf]
        %v1455 = vld [vmem:[#allocation9 + $0x1c0] sm:$0xf]
        %v1456 = vld [vmem:[#allocation9 + $0x1c4] sm:$0xf]
        %v1457 = vld [vmem:[#allocation9 + $0x1c8] sm:$0xf]
        %v1458 = vld [vmem:[#allocation9 + $0x1cc] sm:$0xf]
        %v1459 = vld [vmem:[#allocation9 + $0x1d0] sm:$0xf]
        %v1460 = vld [vmem:[#allocation9 + $0x1d4] sm:$0xf]
        %v1461 = vld [vmem:[#allocation9 + $0x1d8] sm:$0xf]
        %v1462 = vld [vmem:[#allocation9 + $0x1dc] sm:$0xf]
        %v1463 = vld [vmem:[#allocation9 + $0x1e0] sm:$0xf]
        %v1464 = vld [vmem:[#allocation9 + $0x1e4] sm:$0xf]
        %v1465 = vld [vmem:[#allocation9 + $0x1e8] sm:$0xf]
        %v1466 = vld [vmem:[#allocation9 + $0x1ec] sm:$0xf]
        %v1467 = vld [vmem:[#allocation9 + $0x1f0] sm:$0xf]
        %v1468 = vld [vmem:[#allocation9 + $0x1f4] sm:$0xf]
        %v1469 = vld [vmem:[#allocation9 + $0x1f8] sm:$0xf]
        %v1470 = vld [vmem:[#allocation9 + $0x1fc] sm:$0xf]
        %v1471 = vld [vmem:[#allocation9 + $0x200] sm:$0xf]
        %v1472 = vld [vmem:[#allocation9 + $0x204] sm:$0xf]
        %v1473 = vld [vmem:[#allocation9 + $0x208] sm:$0xf]
        %v1474 = vld [vmem:[#allocation9 + $0x20c] sm:$0xf]
        %v1475 = vld [vmem:[#allocation9 + $0x210] sm:$0xf]
        %v1476 = vld [vmem:[#allocation9 + $0x214] sm:$0xf]
        %v1477 = vld [vmem:[#allocation9 + $0x218] sm:$0xf]
        %v1478 = vld [vmem:[#allocation9 + $0x21c] sm:$0xf]
        %v1479 = vld [vmem:[#allocation9 + $0x220] sm:$0xf]
        %v1480 = vld [vmem:[#allocation9 + $0x224] sm:$0xf]
        %v1481 = vld [vmem:[#allocation9 + $0x228] sm:$0xf]
        %v1482 = vld [vmem:[#allocation9 + $0x22c] sm:$0xf]
        %v1483 = vld [vmem:[#allocation9 + $0x230] sm:$0xf]
        %v1484 = vld [vmem:[#allocation9 + $0x234] sm:$0xf]
        %v1485 = vld [vmem:[#allocation9 + $0x238] sm:$0xf]
        %v1486 = vld [vmem:[#allocation9 + $0x23c] sm:$0xf]
        %v1487 = vld [vmem:[%s8] sm:$0x1]
        %v1489 = vlaneseq
        %v1490 = vshrl.u32 %v1489, 7
        %v1491 = vsub.s32 0, %v1490
        %v1492 = vrot.slane %v1487, %v1491
        %v1638 = vunpack.c.l.b16 %v1343
        %v1639 = vunpack.c.l.b16 %v1344
        %v1640 = vunpack.c.l.b16 %v1345
        %v1641 = vunpack.c.l.b16 %v1346
        %v1642 = vunpack.c.l.b16 %v1347
        %v1643 = vunpack.c.l.b16 %v1348
        %v1644 = vunpack.c.l.b16 %v1349
        %v1645 = vunpack.c.l.b16 %v1350
        %v1646 = vunpack.c.l.b16 %v1351
        %v1647 = vunpack.c.l.b16 %v1352
        %v1648 = vunpack.c.l.b16 %v1353
        %v1649 = vunpack.c.l.b16 %v1354
        %v1650 = vunpack.c.l.b16 %v1355
        %v1651 = vunpack.c.l.b16 %v1356
        %v1652 = vunpack.c.l.b16 %v1357
        %v1653 = vunpack.c.l.b16 %v1358
        %v1654 = vunpack.c.l.b16 %v1359
        %v1655 = vunpack.c.l.b16 %v1360
        %v1656 = vunpack.c.l.b16 %v1361
        %v1657 = vunpack.c.l.b16 %v1362
        %v1658 = vunpack.c.l.b16 %v1363
        %v1659 = vunpack.c.l.b16 %v1364
        %v1660 = vunpack.c.l.b16 %v1365
        %v1661 = vunpack.c.l.b16 %v1366
        %v1662 = vunpack.c.l.b16 %v1367
        %v1663 = vunpack.c.l.b16 %v1368
        %v1664 = vunpack.c.l.b16 %v1369
        %v1665 = vunpack.c.l.b16 %v1370
        %v1666 = vunpack.c.l.b16 %v1371
        %v1667 = vunpack.c.l.b16 %v1372
        %v1668 = vunpack.c.l.b16 %v1373
        %v1669 = vunpack.c.l.b16 %v1374
        %v1670 = vunpack.c.l.b16 %v1375
        %v1671 = vunpack.c.l.b16 %v1376
        %v1672 = vunpack.c.l.b16 %v1377
        %v1673 = vunpack.c.l.b16 %v1378
        %v1674 = vunpack.c.l.b16 %v1379
        %v1675 = vunpack.c.l.b16 %v1380
        %v1676 = vunpack.c.l.b16 %v1381
        %v1677 = vunpack.c.l.b16 %v1382
        %v1678 = vunpack.c.l.b16 %v1383
        %v1679 = vunpack.c.l.b16 %v1384
        %v1680 = vunpack.c.l.b16 %v1385
        %v1681 = vunpack.c.l.b16 %v1386
        %v1682 = vunpack.c.l.b16 %v1387
        %v1683 = vunpack.c.l.b16 %v1388
        %v1684 = vunpack.c.l.b16 %v1389
        %v1685 = vunpack.c.l.b16 %v1390
        %v1686 = vunpack.c.l.b16 %v1391
        %v1687 = vunpack.c.l.b16 %v1392
        %v1688 = vunpack.c.l.b16 %v1393
        %v1689 = vunpack.c.l.b16 %v1394
        %v1690 = vunpack.c.l.b16 %v1395
        %v1691 = vunpack.c.l.b16 %v1396
        %v1692 = vunpack.c.l.b16 %v1397
        %v1693 = vunpack.c.l.b16 %v1398
        %v1694 = vunpack.c.l.b16 %v1399
        %v1695 = vunpack.c.l.b16 %v1400
        %v1696 = vunpack.c.l.b16 %v1401
        %v1697 = vunpack.c.l.b16 %v1402
        %v1698 = vunpack.c.l.b16 %v1403
        %v1699 = vunpack.c.l.b16 %v1404
        %v1700 = vunpack.c.l.b16 %v1405
        %v1701 = vunpack.c.l.b16 %v1406
        %v1702 = vunpack.c.l.b16 %v1407
        %v1703 = vunpack.c.l.b16 %v1408
        %v1704 = vunpack.c.l.b16 %v1409
        %v1705 = vunpack.c.l.b16 %v1410
        %v1706 = vunpack.c.l.b16 %v1411
        %v1707 = vunpack.c.l.b16 %v1412
        %v1708 = vunpack.c.l.b16 %v1413
        %v1709 = vunpack.c.l.b16 %v1414
        %v1710 = vunpack.c.l.b16 %v1415
        %v1711 = vunpack.c.l.b16 %v1416
        %v1712 = vunpack.c.l.b16 %v1417
        %v1713 = vunpack.c.l.b16 %v1418
        %v1714 = vunpack.c.l.b16 %v1419
        %v1715 = vunpack.c.l.b16 %v1420
        %v1716 = vunpack.c.l.b16 %v1421
        %v1717 = vunpack.c.l.b16 %v1422
        %v1718 = vunpack.c.l.b16 %v1423
        %v1719 = vunpack.c.l.b16 %v1424
        %v1720 = vunpack.c.l.b16 %v1425
        %v1721 = vunpack.c.l.b16 %v1426
        %v1722 = vunpack.c.l.b16 %v1427
        %v1723 = vunpack.c.l.b16 %v1428
        %v1724 = vunpack.c.l.b16 %v1429
        %v1725 = vunpack.c.l.b16 %v1430
        %v1726 = vunpack.c.l.b16 %v1431
        %v1727 = vunpack.c.l.b16 %v1432
        %v1728 = vunpack.c.l.b16 %v1433
        %v1729 = vunpack.c.l.b16 %v1434
        %v1730 = vunpack.c.l.b16 %v1435
        %v1731 = vunpack.c.l.b16 %v1436
        %v1732 = vunpack.c.l.b16 %v1437
        %v1733 = vunpack.c.l.b16 %v1438
        %v1734 = vunpack.c.l.b16 %v1439
        %v1735 = vunpack.c.l.b16 %v1440
        %v1736 = vunpack.c.l.b16 %v1441
        %v1737 = vunpack.c.l.b16 %v1442
        %v1738 = vunpack.c.l.b16 %v1443
        %v1739 = vunpack.c.l.b16 %v1444
        %v1740 = vunpack.c.l.b16 %v1445
        %v1741 = vunpack.c.l.b16 %v1446
        %v1742 = vunpack.c.l.b16 %v1447
        %v1743 = vunpack.c.l.b16 %v1448
        %v1744 = vunpack.c.l.b16 %v1449
        %v1745 = vunpack.c.l.b16 %v1450
        %v1746 = vunpack.c.l.b16 %v1451
        %v1747 = vunpack.c.l.b16 %v1452
        %v1748 = vunpack.c.l.b16 %v1453
        %v1749 = vunpack.c.l.b16 %v1454
        %v1750 = vunpack.c.l.b16 %v1455
        %v1751 = vunpack.c.l.b16 %v1456
        %v1752 = vunpack.c.l.b16 %v1457
        %v1753 = vunpack.c.l.b16 %v1458
        %v1754 = vunpack.c.l.b16 %v1459
        %v1755 = vunpack.c.l.b16 %v1460
        %v1756 = vunpack.c.l.b16 %v1461
        %v1757 = vunpack.c.l.b16 %v1462
        %v1758 = vunpack.c.l.b16 %v1463
        %v1759 = vunpack.c.l.b16 %v1464
        %v1760 = vunpack.c.l.b16 %v1465
        %v1761 = vunpack.c.l.b16 %v1466
        %v1762 = vunpack.c.l.b16 %v1467
        %v1763 = vunpack.c.l.b16 %v1468
        %v1764 = vunpack.c.l.b16 %v1469
        %v1765 = vunpack.c.l.b16 %v1470
        %v1766 = vunpack.c.l.b16 %v1471
        %v1767 = vunpack.c.l.b16 %v1472
        %v1768 = vunpack.c.l.b16 %v1473
        %v1769 = vunpack.c.l.b16 %v1474
        %v1770 = vunpack.c.l.b16 %v1475
        %v1771 = vunpack.c.l.b16 %v1476
        %v1772 = vunpack.c.l.b16 %v1477
        %v1773 = vunpack.c.l.b16 %v1478
        %v1774 = vunpack.c.l.b16 %v1479
        %v1775 = vunpack.c.l.b16 %v1480
        %v1776 = vunpack.c.l.b16 %v1481
        %v1777 = vunpack.c.l.b16 %v1482
        %v1778 = vunpack.c.l.b16 %v1483
        %v1779 = vunpack.c.l.b16 %v1484
        %v1780 = vunpack.c.l.b16 %v1485
        %v1781 = vunpack.c.l.b16 %v1486
        %v1782 = vpack.c.b16 %v1639, %v1638
        %v1783 = vpack.c.b16 %v1641, %v1640
        %v1784 = vpack.c.b16 %v1643, %v1642
        %v1785 = vpack.c.b16 %v1645, %v1644
        %v1786 = vpack.c.b16 %v1647, %v1646
        %v1787 = vpack.c.b16 %v1649, %v1648
        %v1788 = vpack.c.b16 %v1651, %v1650
        %v1789 = vpack.c.b16 %v1653, %v1652
        %v1790 = vpack.c.b16 %v1655, %v1654
        %v1791 = vpack.c.b16 %v1657, %v1656
        %v1792 = vpack.c.b16 %v1659, %v1658
        %v1793 = vpack.c.b16 %v1661, %v1660
        %v1794 = vpack.c.b16 %v1663, %v1662
        %v1795 = vpack.c.b16 %v1665, %v1664
        %v1796 = vpack.c.b16 %v1667, %v1666
        %v1797 = vpack.c.b16 %v1669, %v1668
        %v1798 = vpack.c.b16 %v1671, %v1670
        %v1799 = vpack.c.b16 %v1673, %v1672
        %v1800 = vpack.c.b16 %v1675, %v1674
        %v1801 = vpack.c.b16 %v1677, %v1676
        %v1802 = vpack.c.b16 %v1679, %v1678
        %v1803 = vpack.c.b16 %v1681, %v1680
        %v1804 = vpack.c.b16 %v1683, %v1682
        %v1805 = vpack.c.b16 %v1685, %v1684
        %v1806 = vpack.c.b16 %v1687, %v1686
        %v1807 = vpack.c.b16 %v1689, %v1688
        %v1808 = vpack.c.b16 %v1691, %v1690
        %v1809 = vpack.c.b16 %v1693, %v1692
        %v1810 = vpack.c.b16 %v1695, %v1694
        %v1811 = vpack.c.b16 %v1697, %v1696
        %v1812 = vpack.c.b16 %v1699, %v1698
        %v1813 = vpack.c.b16 %v1701, %v1700
        %v1814 = vpack.c.b16 %v1703, %v1702
        %v1815 = vpack.c.b16 %v1705, %v1704
        %v1816 = vpack.c.b16 %v1707, %v1706
        %v1817 = vpack.c.b16 %v1709, %v1708
        %v1818 = vpack.c.b16 %v1711, %v1710
        %v1819 = vpack.c.b16 %v1713, %v1712
        %v1820 = vpack.c.b16 %v1715, %v1714
        %v1821 = vpack.c.b16 %v1717, %v1716
        %v1822 = vpack.c.b16 %v1719, %v1718
        %v1823 = vpack.c.b16 %v1721, %v1720
        %v1824 = vpack.c.b16 %v1723, %v1722
        %v1825 = vpack.c.b16 %v1725, %v1724
        %v1826 = vpack.c.b16 %v1727, %v1726
        %v1827 = vpack.c.b16 %v1729, %v1728
        %v1828 = vpack.c.b16 %v1731, %v1730
        %v1829 = vpack.c.b16 %v1733, %v1732
        %v1830 = vpack.c.b16 %v1735, %v1734
        %v1831 = vpack.c.b16 %v1737, %v1736
        %v1832 = vpack.c.b16 %v1739, %v1738
        %v1833 = vpack.c.b16 %v1741, %v1740
        %v1834 = vpack.c.b16 %v1743, %v1742
        %v1835 = vpack.c.b16 %v1745, %v1744
        %v1836 = vpack.c.b16 %v1747, %v1746
        %v1837 = vpack.c.b16 %v1749, %v1748
        %v1838 = vpack.c.b16 %v1751, %v1750
        %v1839 = vpack.c.b16 %v1753, %v1752
        %v1840 = vpack.c.b16 %v1755, %v1754
        %v1841 = vpack.c.b16 %v1757, %v1756
        %v1842 = vpack.c.b16 %v1759, %v1758
        %v1843 = vpack.c.b16 %v1761, %v1760
        %v1844 = vpack.c.b16 %v1763, %v1762
        %v1845 = vpack.c.b16 %v1765, %v1764
        %v1846 = vpack.c.b16 %v1767, %v1766
        %v1847 = vpack.c.b16 %v1769, %v1768
        %v1848 = vpack.c.b16 %v1771, %v1770
        %v1849 = vpack.c.b16 %v1773, %v1772
        %v1850 = vpack.c.b16 %v1775, %v1774
        %v1851 = vpack.c.b16 %v1777, %v1776
        %v1852 = vpack.c.b16 %v1779, %v1778
        %v1853 = vpack.c.b16 %v1781, %v1780
        %1926 = vmatprep.subr.bf16.mxu0 0
        %1927 = vmatpush1.bf16.msra.mxu0 %v1782
        %1928 = vmatprep.subr.bf16.mxu0 0
        %1929 = vmatpush1.bf16.msra.mxu0 %v1783
        %1930 = vmatprep.subr.bf16.mxu0 0
        %1931 = vmatpush1.bf16.msra.mxu0 %v1784
        %1932 = vmatprep.subr.bf16.mxu0 0
        %1933 = vmatpush1.bf16.msra.mxu0 %v1785
        %1934 = vmatprep.subr.bf16.mxu0 0
        %1935 = vmatpush1.bf16.msra.mxu0 %v1786
        %1936 = vmatprep.subr.bf16.mxu0 0
        %1937 = vmatpush1.bf16.msra.mxu0 %v1787
        %1938 = vmatprep.subr.bf16.mxu0 0
        %1939 = vmatpush1.bf16.msra.mxu0 %v1788
        %1940 = vmatprep.subr.bf16.mxu0 0
        %1941 = vmatpush1.bf16.msra.mxu0 %v1789
        %1942 = vmatprep.subr.bf16.mxu0 0
        %1943 = vmatpush1.bf16.msra.mxu0 %v1790
        %1944 = vmatprep.subr.bf16.mxu0 0
        %1945 = vmatpush1.bf16.msra.mxu0 %v1791
        %1946 = vmatprep.subr.bf16.mxu0 0
        %1947 = vmatpush1.bf16.msra.mxu0 %v1792
        %1948 = vmatprep.subr.bf16.mxu0 0
        %1949 = vmatpush1.bf16.msra.mxu0 %v1793
        %1950 = vmatprep.subr.bf16.mxu0 0
        %1951 = vmatpush1.bf16.msra.mxu0 %v1794
        %1952 = vmatprep.subr.bf16.mxu0 0
        %1953 = vmatpush1.bf16.msra.mxu0 %v1795
        %1954 = vmatprep.subr.bf16.mxu0 0
        %1955 = vmatpush1.bf16.msra.mxu0 %v1796
        %1956 = vmatprep.subr.bf16.mxu0 0
        %1957 = vmatpush1.bf16.msra.mxu0 %v1797
        %1958 = vmatprep.mubr.bf16.mxu0 %v1232
        %1959 = vmatmul.mubr.bf16.gmra.mrb[0].mxu0 %v1196
        %v1960 = vpop.f32.mrb[0].mxu0
        %v1961 = vadd.f32 %v1492, %v1960
        %v1962 = vpop.f32.mrb[0].mxu0
        %v1963 = vpop.f32.mrb[0].mxu0
        %v1964 = vadd.f32 %v1492, %v1963
        %v1965 = vpop.f32.mrb[0].mxu0
        %1966 = vmatprep.mubr.bf16.mxu0 %v1233
        %1967 = vmatmul.mubr.bf16.gmra.mrb[0].mxu0 %v1197
        %v1968 = vpop.f32.mrb[0].mxu0
        %v1969 = vadd.f32 %v1492, %v1968
        %v1970 = vpop.f32.mrb[0].mxu0
        %v1971 = vpop.f32.mrb[0].mxu0
        %v1972 = vadd.f32 %v1492, %v1971
        %v1973 = vpop.f32.mrb[0].mxu0
        %1974 = vmatprep.mubr.bf16.mxu0 %v1234
        %1975 = vmatmul.mubr.bf16.gmra.mrb[0].mxu0 %v1198
        %v1976 = vpop.f32.mrb[0].mxu0
        %v1977 = vadd.f32 %v1492, %v1976
        %v1978 = vpop.f32.mrb[0].mxu0
        %v1979 = vpop.f32.mrb[0].mxu0
        %v1980 = vadd.f32 %v1492, %v1979
        %v1981 = vpop.f32.mrb[0].mxu0
        %1982 = vmatprep.mubr.bf16.mxu0 %v1235
        %1983 = vmatmul.mubr.bf16.gmra.mrb[0].mxu0 %v1199
        %v1984 = vpop.f32.mrb[0].mxu0
        %v1985 = vadd.f32 %v1492, %v1984
        %v1986 = vpop.f32.mrb[0].mxu0
        %v1987 = vpop.f32.mrb[0].mxu0
        %v1988 = vadd.f32 %v1492, %v1987
        %v1989 = vpop.f32.mrb[0].mxu0
        %1990 = vmatprep.mubr.bf16.mxu0 %v1236
        %1991 = vmatmul.mubr.bf16.gmra.mrb[0].mxu0 %v1200
        %v1992 = vpop.f32.mrb[0].mxu0
        %v1993 = vadd.f32 %v1492, %v1992
        %v1994 = vpop.f32.mrb[0].mxu0
        %v1995 = vpop.f32.mrb[0].mxu0
        %v1996 = vadd.f32 %v1492, %v1995
        %v1997 = vpop.f32.mrb[0].mxu0
        %1998 = vmatprep.mubr.bf16.mxu0 %v1237
        %1999 = vmatmul.mubr.bf16.gmra.mrb[0].mxu0 %v1201
        %v2000 = vpop.f32.mrb[0].mxu0
        %v2001 = vadd.f32 %v1492, %v2000
        %v2002 = vpop.f32.mrb[0].mxu0
        %v2003 = vpop.f32.mrb[0].mxu0
        %v2004 = vadd.f32 %v1492, %v2003
        %v2005 = vpop.f32.mrb[0].mxu0
        %2006 = vmatprep.mubr.bf16.mxu0 %v1238
        %2007 = vmatmul.mubr.bf16.gmra.mrb[0].mxu0 %v1202
        %v2008 = vpop.f32.mrb[0].mxu0
        %v2009 = vadd.f32 %v1492, %v2008
        %v2010 = vpop.f32.mrb[0].mxu0
        %v2011 = vpop.f32.mrb[0].mxu0
        %v2012 = vadd.f32 %v1492, %v2011
        %v2013 = vpop.f32.mrb[0].mxu0
        %2014 = vmatprep.mubr.bf16.mxu0 %v1239
        %2015 = vmatmul.mubr.bf16.gmra.mrb[0].mxu0 %v1203
        %v2016 = vpop.f32.mrb[0].mxu0
        %v2017 = vadd.f32 %v1492, %v2016
        %v2018 = vpop.f32.mrb[0].mxu0
        %v2019 = vpop.f32.mrb[0].mxu0
        %v2020 = vadd.f32 %v1492, %v2019
        %v2021 = vpop.f32.mrb[0].mxu0
        %2022 = vmatprep.mubr.bf16.mxu0 %v1240
        %2023 = vmatmul.mubr.bf16.gmra.mrb[0].mxu0 %v1204
        %v2024 = vpop.f32.mrb[0].mxu0
        %v2025 = vadd.f32 %v1492, %v2024
        %v2026 = vpop.f32.mrb[0].mxu0
        %v2027 = vpop.f32.mrb[0].mxu0
        %v2028 = vadd.f32 %v1492, %v2027
        %v2029 = vpop.f32.mrb[0].mxu0
        %2030 = vmatprep.mubr.bf16.mxu0 %v1241
        %2031 = vmatmul.mubr.bf16.gmra.mrb[0].mxu0 %v1205
        %v2032 = vpop.f32.mrb[0].mxu0
        %v2033 = vadd.f32 %v1492, %v2032
        %v2034 = vpop.f32.mrb[0].mxu0
        %v2035 = vpop.f32.mrb[0].mxu0
        %v2036 = vadd.f32 %v1492, %v2035
        %v2037 = vpop.f32.mrb[0].mxu0
        %2038 = vmatprep.mubr.bf16.mxu0 %v1242
        %2039 = vmatmul.mubr.bf16.gmra.mrb[0].mxu0 %v1206
        %v2040 = vpop.f32.mrb[0].mxu0
        %v2041 = vadd.f32 %v1492, %v2040
        %v2042 = vpop.f32.mrb[0].mxu0
        %v2043 = vpop.f32.mrb[0].mxu0
        %v2044 = vadd.f32 %v1492, %v2043
        %v2045 = vpop.f32.mrb[0].mxu0
        %2046 = vmatprep.mubr.bf16.mxu0 %v1243
        %2047 = vmatmul.mubr.bf16.gmra.mrb[0].mxu0 %v1207
        %v2048 = vpop.f32.mrb[0].mxu0
        %v2049 = vadd.f32 %v1492, %v2048
        %v2050 = vpop.f32.mrb[0].mxu0
        %v2051 = vpop.f32.mrb[0].mxu0
        %v2052 = vadd.f32 %v1492, %v2051
        %v2053 = vpop.f32.mrb[0].mxu0
        %2054 = vdwg.mxu0
        %2055 = vmatprep.subr.bf16.mxu0 0
        %2056 = vmatpush1.bf16.msra.mxu0 %v1798
        %2057 = vmatprep.subr.bf16.mxu0 0
        %2058 = vmatpush1.bf16.msra.mxu0 %v1799
        %2059 = vmatprep.subr.bf16.mxu0 0
        %2060 = vmatpush1.bf16.msra.mxu0 %v1800
        %2061 = vmatprep.subr.bf16.mxu0 0
        %2062 = vmatpush1.bf16.msra.mxu0 %v1801
        %2063 = vmatprep.subr.bf16.mxu0 0
        %2064 = vmatpush1.bf16.msra.mxu0 %v1802
        %2065 = vmatprep.subr.bf16.mxu0 0
        %2066 = vmatpush1.bf16.msra.mxu0 %v1803
        %2067 = vmatprep.subr.bf16.mxu0 0
        %2068 = vmatpush1.bf16.msra.mxu0 %v1804
        %2069 = vmatprep.subr.bf16.mxu0 0
        %2070 = vmatpush1.bf16.msra.mxu0 %v1805
        %2071 = vmatprep.subr.bf16.mxu0 0
        %2072 = vmatpush1.bf16.msra.mxu0 %v1806
        %2073 = vmatprep.subr.bf16.mxu0 0
        %2074 = vmatpush1.bf16.msra.mxu0 %v1807
        %2075 = vmatprep.subr.bf16.mxu0 0
        %2076 = vmatpush1.bf16.msra.mxu0 %v1808
        %2077 = vmatprep.subr.bf16.mxu0 0
        %2078 = vmatpush1.bf16.msra.mxu0 %v1809
        %2079 = vmatprep.subr.bf16.mxu0 0
        %2080 = vmatpush1.bf16.msra.mxu0 %v1810
        %2081 = vmatprep.subr.bf16.mxu0 0
        %2082 = vmatpush1.bf16.msra.mxu0 %v1811
        %2083 = vmatprep.subr.bf16.mxu0 0
        %2084 = vmatpush1.bf16.msra.mxu0 %v1812
        %2085 = vmatprep.subr.bf16.mxu0 0
        %2086 = vmatpush1.bf16.msra.mxu0 %v1813
        %2087 = vmatprep.mubr.bf16.mxu0 %v1283
        %2088 = vmatmul.mubr.bf16.gmra.mrb[0].mxu0 %v1268
        %v2089 = vpop.f32.mrb[0].mxu0
        %v2090 = vadd.f32 %v1961, %v2089
        %v2091 = vpop.f32.mrb[0].mxu0
        %v2092 = vpop.f32.mrb[0].mxu0
        %v2093 = vadd.f32 %v1964, %v2092
        %v2094 = vpop.f32.mrb[0].mxu0
        %2095 = vmatprep.mubr.bf16.mxu0 %v1284
        %2096 = vmatmul.mubr.bf16.gmra.mrb[0].mxu0 %v1269
        %v2097 = vpop.f32.mrb[0].mxu0
        %v2098 = vadd.f32 %v1969, %v2097
        %v2099 = vpop.f32.mrb[0].mxu0
        %v2100 = vpop.f32.mrb[0].mxu0
        %v2101 = vadd.f32 %v1972, %v2100
        %v2102 = vpop.f32.mrb[0].mxu0
        %2103 = vmatprep.mubr.bf16.mxu0 %v1285
        %2104 = vmatmul.mubr.bf16.gmra.mrb[0].mxu0 %v1270
        %v2105 = vpop.f32.mrb[0].mxu0
        %v2106 = vadd.f32 %v1977, %v2105
        %v2107 = vpop.f32.mrb[0].mxu0
        %v2108 = vpop.f32.mrb[0].mxu0
        %v2109 = vadd.f32 %v1980, %v2108
        %v2110 = vpop.f32.mrb[0].mxu0
        %2111 = vmatprep.mubr.bf16.mxu0 %v1286
        %2112 = vmatmul.mubr.bf16.gmra.mrb[0].mxu0 %v1271
        %v2113 = vpop.f32.mrb[0].mxu0
        %v2114 = vadd.f32 %v1985, %v2113
        %v2115 = vpop.f32.mrb[0].mxu0
        %v2116 = vpop.f32.mrb[0].mxu0
        %v2117 = vadd.f32 %v1988, %v2116
        %v2118 = vpop.f32.mrb[0].mxu0
        %2119 = vmatprep.mubr.bf16.mxu0 %v1287
        %2120 = vmatmul.mubr.bf16.gmra.mrb[0].mxu0 %v1272
        %v2121 = vpop.f32.mrb[0].mxu0
        %v2122 = vadd.f32 %v1993, %v2121
        %v2123 = vpop.f32.mrb[0].mxu0
        %v2124 = vpop.f32.mrb[0].mxu0
        %v2125 = vadd.f32 %v1996, %v2124
        %v2126 = vpop.f32.mrb[0].mxu0
        %2127 = vmatprep.mubr.bf16.mxu0 %v1288
        %2128 = vmatmul.mubr.bf16.gmra.mrb[0].mxu0 %v1273
        %v2129 = vpop.f32.mrb[0].mxu0
        %v2130 = vadd.f32 %v2001, %v2129
        %v2131 = vpop.f32.mrb[0].mxu0
        %v2132 = vpop.f32.mrb[0].mxu0
        %v2133 = vadd.f32 %v2004, %v2132
        %v2134 = vpop.f32.mrb[0].mxu0
        %2135 = vmatprep.mubr.bf16.mxu0 %v1289
        %2136 = vmatmul.mubr.bf16.gmra.mrb[0].mxu0 %v1274
        %v2137 = vpop.f32.mrb[0].mxu0
        %v2138 = vadd.f32 %v2009, %v2137
        %v2139 = vpop.f32.mrb[0].mxu0
        %v2140 = vpop.f32.mrb[0].mxu0
        %v2141 = vadd.f32 %v2012, %v2140
        %v2142 = vpop.f32.mrb[0].mxu0
        %2143 = vmatprep.mubr.bf16.mxu0 %v1290
        %2144 = vmatmul.mubr.bf16.gmra.mrb[0].mxu0 %v1275
        %v2145 = vpop.f32.mrb[0].mxu0
        %v2146 = vadd.f32 %v2017, %v2145
        %v2147 = vpop.f32.mrb[0].mxu0
        %v2148 = vpop.f32.mrb[0].mxu0
        %v2149 = vadd.f32 %v2020, %v2148
        %v2150 = vpop.f32.mrb[0].mxu0
        %2151 = vmatprep.mubr.bf16.mxu0 %v1291
        %2152 = vmatmul.mubr.bf16.gmra.mrb[0].mxu0 %v1276
        %v2153 = vpop.f32.mrb[0].mxu0
        %v2154 = vadd.f32 %v2025, %v2153
        %v2155 = vpop.f32.mrb[0].mxu0
        %v2156 = vpop.f32.mrb[0].mxu0
        %v2157 = vadd.f32 %v2028, %v2156
        %v2158 = vpop.f32.mrb[0].mxu0
        %2159 = vmatprep.mubr.bf16.mxu0 %v1292
        %2160 = vmatmul.mubr.bf16.gmra.mrb[0].mxu0 %v1277
        %v2161 = vpop.f32.mrb[0].mxu0
        %v2162 = vadd.f32 %v2033, %v2161
        %v2163 = vpop.f32.mrb[0].mxu0
        %v2164 = vpop.f32.mrb[0].mxu0
        %v2165 = vadd.f32 %v2036, %v2164
        %v2166 = vpop.f32.mrb[0].mxu0
        %2167 = vmatprep.mubr.bf16.mxu0 %v1293
        %2168 = vmatmul.mubr.bf16.gmra.mrb[0].mxu0 %v1278
        %v2169 = vpop.f32.mrb[0].mxu0
        %v2170 = vadd.f32 %v2041, %v2169
        %v2171 = vpop.f32.mrb[0].mxu0
        %v2172 = vpop.f32.mrb[0].mxu0
        %v2173 = vadd.f32 %v2044, %v2172
        %v2174 = vpop.f32.mrb[0].mxu0
        %2175 = vmatprep.mubr.bf16.mxu0 %v1294
        %2176 = vmatmul.mubr.bf16.gmra.mrb[0].mxu0 %v1279
        %v2177 = vpop.f32.mrb[0].mxu0
        %v2178 = vadd.f32 %v2049, %v2177
        %v2179 = vpop.f32.mrb[0].mxu0
        %v2180 = vpop.f32.mrb[0].mxu0
        %v2181 = vadd.f32 %v2052, %v2180
        %v2182 = vpop.f32.mrb[0].mxu0
        %2183 = vdwg.mxu0
        %2184 = vmatprep.subr.bf16.mxu0 0
        %2185 = vmatpush1.bf16.msra.mxu0 %v1814
        %2186 = vmatprep.subr.bf16.mxu0 0
        %2187 = vmatpush1.bf16.msra.mxu0 %v1815
        %2188 = vmatprep.subr.bf16.mxu0 0
        %2189 = vmatpush1.bf16.msra.mxu0 %v1816
        %2190 = vmatprep.subr.bf16.mxu0 0
        %2191 = vmatpush1.bf16.msra.mxu0 %v1817
        %2192 = vmatprep.subr.bf16.mxu0 0
        %2193 = vmatpush1.bf16.msra.mxu0 %v1818
        %2194 = vmatprep.subr.bf16.mxu0 0
        %2195 = vmatpush1.bf16.msra.mxu0 %v1819
        %2196 = vmatprep.subr.bf16.mxu0 0
        %2197 = vmatpush1.bf16.msra.mxu0 %v1820
        %2198 = vmatprep.subr.bf16.mxu0 0
        %2199 = vmatpush1.bf16.msra.mxu0 %v1821
        %2200 = vmatprep.subr.bf16.mxu0 0
        %2201 = vmatpush1.bf16.msra.mxu0 %v1822
        %2202 = vmatprep.subr.bf16.mxu0 0
        %2203 = vmatpush1.bf16.msra.mxu0 %v1823
        %2204 = vmatprep.subr.bf16.mxu0 0
        %2205 = vmatpush1.bf16.msra.mxu0 %v1824
        %2206 = vmatprep.subr.bf16.mxu0 0
        %2207 = vmatpush1.bf16.msra.mxu0 %v1825
        %2208 = vmatprep.subr.bf16.mxu0 0
        %2209 = vmatpush1.bf16.msra.mxu0 %v1826
        %2210 = vmatprep.subr.bf16.mxu0 0
        %2211 = vmatpush1.bf16.msra.mxu0 %v1827
        %2212 = vmatprep.subr.bf16.mxu0 0
        %2213 = vmatpush1.bf16.msra.mxu0 %v1828
        %2214 = vmatprep.subr.bf16.mxu0 0
        %2215 = vmatpush1.bf16.msra.mxu0 %v1829
        %2216 = vmatprep.mubr.bf16.mxu0 %v1313
        %2217 = vmatmul.mubr.bf16.gmra.mrb[0].mxu0 %v1298
        %v2218 = vpop.f32.mrb[0].mxu0
        %v2219 = vadd.f32 %v2090, %v2218
        %v2220 = vpop.f32.mrb[0].mxu0
        %v2221 = vpop.f32.mrb[0].mxu0
        %v2222 = vadd.f32 %v2093, %v2221
        %v2223 = vpop.f32.mrb[0].mxu0
        %2224 = vmatprep.mubr.bf16.mxu0 %v1314
        %2225 = vmatmul.mubr.bf16.gmra.mrb[0].mxu0 %v1299
        %v2226 = vpop.f32.mrb[0].mxu0
        %v2227 = vadd.f32 %v2098, %v2226
        %v2228 = vpop.f32.mrb[0].mxu0
        %v2229 = vpop.f32.mrb[0].mxu0
        %v2230 = vadd.f32 %v2101, %v2229
        %v2231 = vpop.f32.mrb[0].mxu0
        %2232 = vmatprep.mubr.bf16.mxu0 %v1315
        %2233 = vmatmul.mubr.bf16.gmra.mrb[0].mxu0 %v1300
        %v2234 = vpop.f32.mrb[0].mxu0
        %v2235 = vadd.f32 %v2106, %v2234
        %v2236 = vpop.f32.mrb[0].mxu0
        %v2237 = vpop.f32.mrb[0].mxu0
        %v2238 = vadd.f32 %v2109, %v2237
        %v2239 = vpop.f32.mrb[0].mxu0
        %2240 = vmatprep.mubr.bf16.mxu0 %v1316
        %2241 = vmatmul.mubr.bf16.gmra.mrb[0].mxu0 %v1301
        %v2242 = vpop.f32.mrb[0].mxu0
        %v2243 = vadd.f32 %v2114, %v2242
        %v2244 = vpop.f32.mrb[0].mxu0
        %v2245 = vpop.f32.mrb[0].mxu0
        %v2246 = vadd.f32 %v2117, %v2245
        %v2247 = vpop.f32.mrb[0].mxu0
        %2248 = vmatprep.mubr.bf16.mxu0 %v1317
        %2249 = vmatmul.mubr.bf16.gmra.mrb[0].mxu0 %v1302
        %v2250 = vpop.f32.mrb[0].mxu0
        %v2251 = vadd.f32 %v2122, %v2250
        %v2252 = vpop.f32.mrb[0].mxu0
        %v2253 = vpop.f32.mrb[0].mxu0
        %v2254 = vadd.f32 %v2125, %v2253
        %v2255 = vpop.f32.mrb[0].mxu0
        %2256 = vmatprep.mubr.bf16.mxu0 %v1318
        %2257 = vmatmul.mubr.bf16.gmra.mrb[0].mxu0 %v1303
        %v2258 = vpop.f32.mrb[0].mxu0
        %v2259 = vadd.f32 %v2130, %v2258
        %v2260 = vpop.f32.mrb[0].mxu0
        %v2261 = vpop.f32.mrb[0].mxu0
        %v2262 = vadd.f32 %v2133, %v2261
        %v2263 = vpop.f32.mrb[0].mxu0
        %2264 = vmatprep.mubr.bf16.mxu0 %v1319
        %2265 = vmatmul.mubr.bf16.gmra.mrb[0].mxu0 %v1304
        %v2266 = vpop.f32.mrb[0].mxu0
        %v2267 = vadd.f32 %v2138, %v2266
        %v2268 = vpop.f32.mrb[0].mxu0
        %v2269 = vpop.f32.mrb[0].mxu0
        %v2270 = vadd.f32 %v2141, %v2269
        %v2271 = vpop.f32.mrb[0].mxu0
        %2272 = vmatprep.mubr.bf16.mxu0 %v1320
        %2273 = vmatmul.mubr.bf16.gmra.mrb[0].mxu0 %v1305
        %v2274 = vpop.f32.mrb[0].mxu0
        %v2275 = vadd.f32 %v2146, %v2274
        %v2276 = vpop.f32.mrb[0].mxu0
        %v2277 = vpop.f32.mrb[0].mxu0
        %v2278 = vadd.f32 %v2149, %v2277
        %v2279 = vpop.f32.mrb[0].mxu0
        %2280 = vmatprep.mubr.bf16.mxu0 %v1321
        %2281 = vmatmul.mubr.bf16.gmra.mrb[0].mxu0 %v1306
        %v2282 = vpop.f32.mrb[0].mxu0
        %v2283 = vadd.f32 %v2154, %v2282
        %v2284 = vpop.f32.mrb[0].mxu0
        %v2285 = vpop.f32.mrb[0].mxu0
        %v2286 = vadd.f32 %v2157, %v2285
        %v2287 = vpop.f32.mrb[0].mxu0
        %2288 = vmatprep.mubr.bf16.mxu0 %v1322
        %2289 = vmatmul.mubr.bf16.gmra.mrb[0].mxu0 %v1307
        %v2290 = vpop.f32.mrb[0].mxu0
        %v2291 = vadd.f32 %v2162, %v2290
        %v2292 = vpop.f32.mrb[0].mxu0
        %v2293 = vpop.f32.mrb[0].mxu0
        %v2294 = vadd.f32 %v2165, %v2293
        %v2295 = vpop.f32.mrb[0].mxu0
        %2296 = vmatprep.mubr.bf16.mxu0 %v1323
        %2297 = vmatmul.mubr.bf16.gmra.mrb[0].mxu0 %v1308
        %v2298 = vpop.f32.mrb[0].mxu0
        %v2299 = vadd.f32 %v2170, %v2298
        %v2300 = vpop.f32.mrb[0].mxu0
        %v2301 = vpop.f32.mrb[0].mxu0
        %v2302 = vadd.f32 %v2173, %v2301
        %v2303 = vpop.f32.mrb[0].mxu0
        %2304 = vmatprep.mubr.bf16.mxu0 %v1324
        %2305 = vmatmul.mubr.bf16.gmra.mrb[0].mxu0 %v1309
        %v2306 = vpop.f32.mrb[0].mxu0
        %v2307 = vadd.f32 %v2178, %v2306
        %v2308 = vpop.f32.mrb[0].mxu0
        %v2309 = vpop.f32.mrb[0].mxu0
        %v2310 = vadd.f32 %v2181, %v2309
        %v2311 = vpop.f32.mrb[0].mxu0
        %2312 = vdwg.mxu0
        %2313 = vmatprep.subr.bf16.mxu0 0
        %2314 = vmatpush1.bf16.msra.mxu0 %v1830
        %2315 = vmatprep.subr.bf16.mxu0 0
        %2316 = vmatpush1.bf16.msra.mxu0 %v1831
        %2317 = vmatprep.subr.bf16.mxu0 0
        %2318 = vmatpush1.bf16.msra.mxu0 %v1832
        %2319 = vmatprep.subr.bf16.mxu0 0
        %2320 = vmatpush1.bf16.msra.mxu0 %v1833
        %2321 = vmatprep.subr.bf16.mxu0 0
        %2322 = vmatpush1.bf16.msra.mxu0 %v1834
        %2323 = vmatprep.subr.bf16.mxu0 0
        %2324 = vmatpush1.bf16.msra.mxu0 %v1835
        %2325 = vmatprep.subr.bf16.mxu0 0
        %2326 = vmatpush1.bf16.msra.mxu0 %v1836
        %2327 = vmatprep.subr.bf16.mxu0 0
        %2328 = vmatpush1.bf16.msra.mxu0 %v1837
        %2329 = vmatprep.subr.bf16.mxu0 0
        %2330 = vmatpush1.bf16.msra.mxu0 %v1838
        %2331 = vmatprep.subr.bf16.mxu0 0
        %2332 = vmatpush1.bf16.msra.mxu0 %v1839
        %2333 = vmatprep.subr.bf16.mxu0 0
        %2334 = vmatpush1.bf16.msra.mxu0 %v1840
        %2335 = vmatprep.subr.bf16.mxu0 0
        %2336 = vmatpush1.bf16.msra.mxu0 %v1841
        %2337 = vmatprep.subr.bf16.mxu0 0
        %2338 = vmatpush1.bf16.msra.mxu0 %v1842
        %2339 = vmatprep.subr.bf16.mxu0 0
        %2340 = vmatpush1.bf16.msra.mxu0 %v1843
        %2341 = vmatprep.subr.bf16.mxu0 0
        %2342 = vmatpush1.bf16.msra.mxu0 %v1844
        %2343 = vmatprep.subr.bf16.mxu0 0
        %2344 = vmatpush1.bf16.msra.mxu0 %v1845
        %2345 = vmatprep.mubr.bf16.mxu0 %v1235
        %2346 = vmatmul.mubr.bf16.gmra.mrb[0].mxu0 %v1199
        %v2347 = vpop.f32.mrb[0].mxu0
        %v2348 = vadd.f32 %v2219, %v2347
        %v2349 = vpop.f32.mrb[0].mxu0
        %v2350 = vpop.f32.mrb[0].mxu0
        %v2351 = vadd.f32 %v2222, %v2350
        %v2352 = vpop.f32.mrb[0].mxu0
        %2353 = vmatprep.mubr.bf16.mxu0 %v1236
        %2354 = vmatmul.mubr.bf16.gmra.mrb[0].mxu0 %v1200
        %v2355 = vpop.f32.mrb[0].mxu0
        %v2356 = vadd.f32 %v2227, %v2355
        %v2357 = vpop.f32.mrb[0].mxu0
        %v2358 = vpop.f32.mrb[0].mxu0
        %v2359 = vadd.f32 %v2230, %v2358
        %v2360 = vpop.f32.mrb[0].mxu0
        %2361 = vmatprep.mubr.bf16.mxu0 %v1237
        %2362 = vmatmul.mubr.bf16.gmra.mrb[0].mxu0 %v1201
        %v2363 = vpop.f32.mrb[0].mxu0
        %v2364 = vadd.f32 %v2235, %v2363
        %v2365 = vpop.f32.mrb[0].mxu0
        %v2366 = vpop.f32.mrb[0].mxu0
        %v2367 = vadd.f32 %v2238, %v2366
        %v2368 = vpop.f32.mrb[0].mxu0
        %2369 = vmatprep.mubr.bf16.mxu0 %v1238
        %2370 = vmatmul.mubr.bf16.gmra.mrb[0].mxu0 %v1202
        %v2371 = vpop.f32.mrb[0].mxu0
        %v2372 = vadd.f32 %v2243, %v2371
        %v2373 = vpop.f32.mrb[0].mxu0
        %v2374 = vpop.f32.mrb[0].mxu0
        %v2375 = vadd.f32 %v2246, %v2374
        %v2376 = vpop.f32.mrb[0].mxu0
        %2377 = vmatprep.mubr.bf16.mxu0 %v1239
        %2378 = vmatmul.mubr.bf16.gmra.mrb[0].mxu0 %v1203
        %v2379 = vpop.f32.mrb[0].mxu0
        %v2380 = vadd.f32 %v2251, %v2379
        %v2381 = vpop.f32.mrb[0].mxu0
        %v2382 = vpop.f32.mrb[0].mxu0
        %v2383 = vadd.f32 %v2254, %v2382
        %v2384 = vpop.f32.mrb[0].mxu0
        %2385 = vmatprep.mubr.bf16.mxu0 %v1240
        %2386 = vmatmul.mubr.bf16.gmra.mrb[0].mxu0 %v1204
        %v2387 = vpop.f32.mrb[0].mxu0
        %v2388 = vadd.f32 %v2259, %v2387
        %v2389 = vpop.f32.mrb[0].mxu0
        %v2390 = vpop.f32.mrb[0].mxu0
        %v2391 = vadd.f32 %v2262, %v2390
        %v2392 = vpop.f32.mrb[0].mxu0
        %2393 = vmatprep.mubr.bf16.mxu0 %v1241
        %2394 = vmatmul.mubr.bf16.gmra.mrb[0].mxu0 %v1205
        %v2395 = vpop.f32.mrb[0].mxu0
        %v2396 = vadd.f32 %v2267, %v2395
        %v2397 = vpop.f32.mrb[0].mxu0
        %v2398 = vpop.f32.mrb[0].mxu0
        %v2399 = vadd.f32 %v2270, %v2398
        %v2400 = vpop.f32.mrb[0].mxu0
        %2401 = vmatprep.mubr.bf16.mxu0 %v1242
        %2402 = vmatmul.mubr.bf16.gmra.mrb[0].mxu0 %v1206
        %v2403 = vpop.f32.mrb[0].mxu0
        %v2404 = vadd.f32 %v2275, %v2403
        %v2405 = vpop.f32.mrb[0].mxu0
        %v2406 = vpop.f32.mrb[0].mxu0
        %v2407 = vadd.f32 %v2278, %v2406
        %v2408 = vpop.f32.mrb[0].mxu0
        %2409 = vmatprep.mubr.bf16.mxu0 %v1243
        %2410 = vmatmul.mubr.bf16.gmra.mrb[0].mxu0 %v1207
        %v2411 = vpop.f32.mrb[0].mxu0
        %v2412 = vadd.f32 %v2283, %v2411
        %v2413 = vpop.f32.mrb[0].mxu0
        %v2414 = vpop.f32.mrb[0].mxu0
        %v2415 = vadd.f32 %v2286, %v2414
        %v2416 = vpop.f32.mrb[0].mxu0
        %2417 = vmatprep.mubr.bf16.mxu0 %v1334
        %2418 = vmatmul.mubr.bf16.gmra.mrb[0].mxu0 %v1328
        %v2419 = vpop.f32.mrb[0].mxu0
        %v2420 = vadd.f32 %v2291, %v2419
        %v2421 = vpop.f32.mrb[0].mxu0
        %v2422 = vpop.f32.mrb[0].mxu0
        %v2423 = vadd.f32 %v2294, %v2422
        %v2424 = vpop.f32.mrb[0].mxu0
        %2425 = vmatprep.mubr.bf16.mxu0 %v1335
        %2426 = vmatmul.mubr.bf16.gmra.mrb[0].mxu0 %v1329
        %v2427 = vpop.f32.mrb[0].mxu0
        %v2428 = vadd.f32 %v2299, %v2427
        %v2429 = vpop.f32.mrb[0].mxu0
        %v2430 = vpop.f32.mrb[0].mxu0
        %v2431 = vadd.f32 %v2302, %v2430
        %v2432 = vpop.f32.mrb[0].mxu0
        %2433 = vmatprep.mubr.bf16.mxu0 %v1336
        %2434 = vmatmul.mubr.bf16.gmra.mrb[0].mxu0 %v1330
        %v2435 = vpop.f32.mrb[0].mxu0
        %v2436 = vadd.f32 %v2307, %v2435
        %v2437 = vpop.f32.mrb[0].mxu0
        %v2438 = vpop.f32.mrb[0].mxu0
        %v2439 = vadd.f32 %v2310, %v2438
        %v2440 = vpop.f32.mrb[0].mxu0
        %2441 = vdwg.mxu0
        %2442 = vmatprep.subr.bf16.mxu0 0
        %2443 = vmatpush1.bf16.msra.mxu0 %v1846
        %2444 = vmatprep.subr.bf16.mxu0 0
        %2445 = vmatpush1.bf16.msra.mxu0 %v1847
        %2446 = vmatprep.subr.bf16.mxu0 0
        %2447 = vmatpush1.bf16.msra.mxu0 %v1848
        %2448 = vmatprep.subr.bf16.mxu0 0
        %2449 = vmatpush1.bf16.msra.mxu0 %v1849
        %2450 = vmatprep.subr.bf16.mxu0 0
        %2451 = vmatpush1.bf16.msra.mxu0 %v1850
        %2452 = vmatprep.subr.bf16.mxu0 0
        %2453 = vmatpush1.bf16.msra.mxu0 %v1851
        %2454 = vmatprep.subr.bf16.mxu0 0
        %2455 = vmatpush1.bf16.msra.mxu0 %v1852
        %2456 = vmatprep.subr.bf16.mxu0 0
        %2457 = vmatpush1.bf16.msra.mxu0 %v1853
        %2458 = vmatprep.subr.bf16.mxu0 0
        %2459 = vmatpush1.bf16.msra.mxu0 0
        %2460 = vmatprep.subr.bf16.mxu0 0
        %2461 = vmatpush1.bf16.msra.mxu0 0
        %2462 = vmatprep.subr.bf16.mxu0 0
        %2463 = vmatpush1.bf16.msra.mxu0 0
        %2464 = vmatprep.subr.bf16.mxu0 0
        %2465 = vmatpush1.bf16.msra.mxu0 0
        %2466 = vmatprep.subr.bf16.mxu0 0
        %2467 = vmatpush1.bf16.msra.mxu0 0
        %2468 = vmatprep.subr.bf16.mxu0 0
        %2469 = vmatpush1.bf16.msra.mxu0 0
        %2470 = vmatprep.subr.bf16.mxu0 0
        %2471 = vmatpush1.bf16.msra.mxu0 0
        %2472 = vmatprep.subr.bf16.mxu0 0
        %2473 = vmatpush1.bf16.msra.mxu0 0
        %2474 = vmatprep.mubr.bf16.mxu0 0
        %2475 = vmatmul.mubr.bf16.gmra.mrb[0].mxu0 %v1271
        %v2476 = vpop.f32.mrb[0].mxu0
        %v2477 = vadd.f32 %v2348, %v2476
        %v2478 = vpop.f32.mrb[0].mxu0
        %v2479 = vpop.f32.mrb[0].mxu0
        %v2480 = vadd.f32 %v2351, %v2479
        %v2481 = vpop.f32.mrb[0].mxu0
        %2482 = vmatprep.mubr.bf16.mxu0 0
        %2483 = vmatmul.mubr.bf16.gmra.mrb[0].mxu0 %v1272
        %v2484 = vpop.f32.mrb[0].mxu0
        %v2485 = vadd.f32 %v2356, %v2484
        %v2486 = vpop.f32.mrb[0].mxu0
        %v2487 = vpop.f32.mrb[0].mxu0
        %v2488 = vadd.f32 %v2359, %v2487
        %v2489 = vpop.f32.mrb[0].mxu0
        %2490 = vmatprep.mubr.bf16.mxu0 0
        %2491 = vmatmul.mubr.bf16.gmra.mrb[0].mxu0 %v1273
        %v2492 = vpop.f32.mrb[0].mxu0
        %v2493 = vadd.f32 %v2364, %v2492
        %v2494 = vpop.f32.mrb[0].mxu0
        %v2495 = vpop.f32.mrb[0].mxu0
        %v2496 = vadd.f32 %v2367, %v2495
        %v2497 = vpop.f32.mrb[0].mxu0
        %2498 = vmatprep.mubr.bf16.mxu0 0
        %2499 = vmatmul.mubr.bf16.gmra.mrb[0].mxu0 %v1274
        %v2500 = vpop.f32.mrb[0].mxu0
        %v2501 = vadd.f32 %v2372, %v2500
        %v2502 = vpop.f32.mrb[0].mxu0
        %v2503 = vpop.f32.mrb[0].mxu0
        %v2504 = vadd.f32 %v2375, %v2503
        %v2505 = vpop.f32.mrb[0].mxu0
        %2506 = vmatprep.mubr.bf16.mxu0 0
        %2507 = vmatmul.mubr.bf16.gmra.mrb[0].mxu0 %v1275
        %v2508 = vpop.f32.mrb[0].mxu0
        %v2509 = vadd.f32 %v2380, %v2508
        %v2510 = vpop.f32.mrb[0].mxu0
        %v2511 = vpop.f32.mrb[0].mxu0
        %v2512 = vadd.f32 %v2383, %v2511
        %v2513 = vpop.f32.mrb[0].mxu0
        %2514 = vmatprep.mubr.bf16.mxu0 0
        %2515 = vmatmul.mubr.bf16.gmra.mrb[0].mxu0 %v1276
        %v2516 = vpop.f32.mrb[0].mxu0
        %v2517 = vadd.f32 %v2388, %v2516
        %v2518 = vpop.f32.mrb[0].mxu0
        %v2519 = vpop.f32.mrb[0].mxu0
        %v2520 = vadd.f32 %v2391, %v2519
        %v2521 = vpop.f32.mrb[0].mxu0
        %2522 = vmatprep.mubr.bf16.mxu0 0
        %2523 = vmatmul.mubr.bf16.gmra.mrb[0].mxu0 %v1277
        %v2524 = vpop.f32.mrb[0].mxu0
        %v2525 = vadd.f32 %v2396, %v2524
        %v2526 = vpop.f32.mrb[0].mxu0
        %v2527 = vpop.f32.mrb[0].mxu0
        %v2528 = vadd.f32 %v2399, %v2527
        %v2529 = vpop.f32.mrb[0].mxu0
        %2530 = vmatprep.mubr.bf16.mxu0 0
        %2531 = vmatmul.mubr.bf16.gmra.mrb[0].mxu0 %v1278
        %v2532 = vpop.f32.mrb[0].mxu0
        %v2533 = vadd.f32 %v2404, %v2532
        %v2534 = vpop.f32.mrb[0].mxu0
        %v2535 = vpop.f32.mrb[0].mxu0
        %v2536 = vadd.f32 %v2407, %v2535
        %v2537 = vpop.f32.mrb[0].mxu0
        %2538 = vmatprep.mubr.bf16.mxu0 0
        %2539 = vmatmul.mubr.bf16.gmra.mrb[0].mxu0 %v1279
        %v2540 = vpop.f32.mrb[0].mxu0
        %v2541 = vadd.f32 %v2412, %v2540
        %v2542 = vpop.f32.mrb[0].mxu0
        %v2543 = vpop.f32.mrb[0].mxu0
        %v2544 = vadd.f32 %v2415, %v2543
        %v2545 = vpop.f32.mrb[0].mxu0
        %2546 = vmatprep.mubr.bf16.mxu0 0
        %2547 = vmatmul.mubr.bf16.gmra.mrb[0].mxu0 %v1340
        %v2548 = vpop.f32.mrb[0].mxu0
        %v2549 = vadd.f32 %v2420, %v2548
        %v2550 = vpop.f32.mrb[0].mxu0
        %v2551 = vpop.f32.mrb[0].mxu0
        %v2552 = vadd.f32 %v2423, %v2551
        %v2553 = vpop.f32.mrb[0].mxu0
        %2554 = vmatprep.mubr.bf16.mxu0 0
        %2555 = vmatmul.mubr.bf16.gmra.mrb[0].mxu0 %v1341
        %v2556 = vpop.f32.mrb[0].mxu0
        %v2557 = vadd.f32 %v2428, %v2556
        %v2558 = vpop.f32.mrb[0].mxu0
        %v2559 = vpop.f32.mrb[0].mxu0
        %v2560 = vadd.f32 %v2431, %v2559
        %v2561 = vpop.f32.mrb[0].mxu0
        %2562 = vmatprep.mubr.bf16.mxu0 0
        %2563 = vmatmul.mubr.bf16.gmra.mrb[0].mxu0 %v1342
        %v2564 = vpop.f32.mrb[0].mxu0
        %v2565 = vadd.f32 %v2436, %v2564
        %v2566 = vpop.f32.mrb[0].mxu0
        %v2567 = vpop.f32.mrb[0].mxu0
        %v2568 = vadd.f32 %v2439, %v2567
        %v2569 = vpop.f32.mrb[0].mxu0
        %2570 = vdwg.mxu0
        %v2571 = vmax.f32 %v2477, 0.0
        %v2572 = vmax.f32 %v2480, 0.0
        %v2573 = vmax.f32 %v2485, 0.0
        %v2574 = vmax.f32 %v2488, 0.0
        %v2575 = vmax.f32 %v2493, 0.0
        %v2576 = vmax.f32 %v2496, 0.0
        %v2577 = vmax.f32 %v2501, 0.0
        %v2578 = vmax.f32 %v2504, 0.0
        %v2579 = vmax.f32 %v2509, 0.0
        %v2580 = vmax.f32 %v2512, 0.0
        %v2581 = vmax.f32 %v2517, 0.0
        %v2582 = vmax.f32 %v2520, 0.0
        %v2583 = vmax.f32 %v2525, 0.0
        %v2584 = vmax.f32 %v2528, 0.0
        %v2585 = vmax.f32 %v2533, 0.0
        %v2586 = vmax.f32 %v2536, 0.0
        %v2587 = vmax.f32 %v2541, 0.0
        %v2588 = vmax.f32 %v2544, 0.0
        %v2589 = vmax.f32 %v2549, 0.0
        %v2590 = vmax.f32 %v2552, 0.0
        %v2591 = vmax.f32 %v2557, 0.0
        %v2592 = vmax.f32 %v2560, 0.0
        %v2593 = vmax.f32 %v2565, 0.0
        %v2594 = vmax.f32 %v2568, 0.0
        %v2595 = vpack.c.bf16 %v2572, %v2571
        %v2596 = vpack.c.bf16 %v2574, %v2573
        %v2597 = vpack.c.bf16 %v2576, %v2575
        %v2598 = vpack.c.bf16 %v2578, %v2577
        %v2599 = vpack.c.bf16 %v2580, %v2579
        %v2600 = vpack.c.bf16 %v2582, %v2581
        %v2601 = vpack.c.bf16 %v2584, %v2583
        %v2602 = vpack.c.bf16 %v2586, %v2585
        %v2603 = vpack.c.bf16 %v2588, %v2587
        %v2604 = vpack.c.bf16 %v2590, %v2589
        %v2605 = vpack.c.bf16 %v2592, %v2591
        %v2606 = vpack.c.bf16 %v2594, %v2593
        %v2607 = vld [vmem:[%s6] sm:$0xf]
        %v2608 = vld [vmem:[%s6 + $0x4] sm:$0xf]
        %v2609 = vld [vmem:[%s6 + $0x8] sm:$0xf]
        %v2610 = vld [vmem:[%s6 + $0xc] sm:$0xf]
        %v2611 = vld [vmem:[%s6 + $0x10] sm:$0xf]
        %v2612 = vld [vmem:[%s6 + $0x14] sm:$0xf]
        %v2613 = vld [vmem:[%s6 + $0x18] sm:$0xf]
        %v2614 = vld [vmem:[%s6 + $0x1c] sm:$0xf]
        %v2615 = vld [vmem:[%s6 + $0x20] sm:$0xf]
        %v2616 = vld [vmem:[%s6 + $0x24] sm:$0xf]
        %v2617 = vld [vmem:[%s6 + $0x28] sm:$0xf]
        %v2618 = vld [vmem:[%s6 + $0x2c] sm:$0xf]
        %v2619 = vld [vmem:[%s6 + $0x30] sm:$0xf]
        %v2620 = vld [vmem:[%s6 + $0x34] sm:$0xf]
        %v2621 = vld [vmem:[%s6 + $0x38] sm:$0xf]
        %v2622 = vld [vmem:[%s6 + $0x3c] sm:$0xf]
        %v2623 = vld [vmem:[%s9] sm:$0x1]
        %v2625 = vlaneseq
        %v2626 = vshrl.u32 %v2625, 7
        %v2627 = vsub.s32 0, %v2626
        %v2628 = vrot.slane %v2623, %v2627
        %v2646 = vunpack.c.l.b16 %v2607
        %v2647 = vunpack.c.l.b16 %v2608
        %v2648 = vunpack.c.l.b16 %v2609
        %v2649 = vunpack.c.l.b16 %v2610
        %v2650 = vunpack.c.l.b16 %v2611
        %v2651 = vunpack.c.l.b16 %v2612
        %v2652 = vunpack.c.l.b16 %v2613
        %v2653 = vunpack.c.l.b16 %v2614
        %v2654 = vunpack.c.l.b16 %v2615
        %v2655 = vunpack.c.l.b16 %v2616
        %v2656 = vunpack.c.l.b16 %v2617
        %v2657 = vunpack.c.l.b16 %v2618
        %v2658 = vunpack.c.l.b16 %v2619
        %v2659 = vunpack.c.l.b16 %v2620
        %v2660 = vunpack.c.l.b16 %v2621
        %v2661 = vunpack.c.l.b16 %v2622
        %v2662 = vpack.c.b16 %v2647, %v2646
        %v2663 = vpack.c.b16 %v2649, %v2648
        %v2664 = vpack.c.b16 %v2651, %v2650
        %v2665 = vpack.c.b16 %v2653, %v2652
        %v2666 = vpack.c.b16 %v2655, %v2654
        %v2667 = vpack.c.b16 %v2657, %v2656
        %v2668 = vpack.c.b16 %v2659, %v2658
        %v2669 = vpack.c.b16 %v2661, %v2660
        %2678 = vmatprep.subr.bf16.mxu0 0
        %2679 = vmatpush1.bf16.msra.mxu0 %v2662
        %2680 = vmatprep.subr.bf16.mxu0 0
        %2681 = vmatpush1.bf16.msra.mxu0 %v2663
        %2682 = vmatprep.subr.bf16.mxu0 0
        %2683 = vmatpush1.bf16.msra.mxu0 %v2664
        %2684 = vmatprep.subr.bf16.mxu0 0
        %2685 = vmatpush1.bf16.msra.mxu0 %v2665
        %2686 = vmatprep.subr.bf16.mxu0 0
        %2687 = vmatpush1.bf16.msra.mxu0 %v2666
        %2688 = vmatprep.subr.bf16.mxu0 0
        %2689 = vmatpush1.bf16.msra.mxu0 %v2667
        %2690 = vmatprep.subr.bf16.mxu0 0
        %2691 = vmatpush1.bf16.msra.mxu0 %v2668
        %2692 = vmatprep.subr.bf16.mxu0 0
        %2693 = vmatpush1.bf16.msra.mxu0 %v2669
        %2694 = vmatprep.subr.bf16.mxu0 0
        %2695 = vmatpush1.bf16.msra.mxu0 0
        %2696 = vmatprep.subr.bf16.mxu0 0
        %2697 = vmatpush1.bf16.msra.mxu0 0
        %2698 = vmatprep.subr.bf16.mxu0 0
        %2699 = vmatpush1.bf16.msra.mxu0 0
        %2700 = vmatprep.subr.bf16.mxu0 0
        %2701 = vmatpush1.bf16.msra.mxu0 0
        %2702 = vmatprep.subr.bf16.mxu0 0
        %2703 = vmatpush1.bf16.msra.mxu0 0
        %2704 = vmatprep.subr.bf16.mxu0 0
        %2705 = vmatpush1.bf16.msra.mxu0 0
        %2706 = vmatprep.subr.bf16.mxu0 0
        %2707 = vmatpush1.bf16.msra.mxu0 0
        %2708 = vmatprep.subr.bf16.mxu0 0
        %2709 = vmatpush1.bf16.msra.mxu0 0
        %2710 = vmatprep.mubr.bf16.mxu0 0
        %2711 = vmatmul.mubr.bf16.gmra.mrb[0].mxu0 %v2595
        %v2712 = vpop.f32.mrb[0].mxu0
        %v2713 = vadd.f32 %v2628, %v2712
        %v2714 = vpop.f32.mrb[0].mxu0
        %v2715 = vpop.f32.mrb[0].mxu0
        %v2716 = vadd.f32 %v2628, %v2715
        %v2717 = vpop.f32.mrb[0].mxu0
        %2718 = vmatprep.mubr.bf16.mxu0 0
        %2719 = vmatmul.mubr.bf16.gmra.mrb[0].mxu0 %v2596
        %v2720 = vpop.f32.mrb[0].mxu0
        %v2721 = vadd.f32 %v2628, %v2720
        %v2722 = vpop.f32.mrb[0].mxu0
        %v2723 = vpop.f32.mrb[0].mxu0
        %v2724 = vadd.f32 %v2628, %v2723
        %v2725 = vpop.f32.mrb[0].mxu0
        %2726 = vmatprep.mubr.bf16.mxu0 0
        %2727 = vmatmul.mubr.bf16.gmra.mrb[0].mxu0 %v2597
        %v2728 = vpop.f32.mrb[0].mxu0
        %v2729 = vadd.f32 %v2628, %v2728
        %v2730 = vpop.f32.mrb[0].mxu0
        %v2731 = vpop.f32.mrb[0].mxu0
        %v2732 = vadd.f32 %v2628, %v2731
        %v2733 = vpop.f32.mrb[0].mxu0
        %2734 = vmatprep.mubr.bf16.mxu0 0
        %2735 = vmatmul.mubr.bf16.gmra.mrb[0].mxu0 %v2598
        %v2736 = vpop.f32.mrb[0].mxu0
        %v2737 = vadd.f32 %v2628, %v2736
        %v2738 = vpop.f32.mrb[0].mxu0
        %v2739 = vpop.f32.mrb[0].mxu0
        %v2740 = vadd.f32 %v2628, %v2739
        %v2741 = vpop.f32.mrb[0].mxu0
        %2742 = vmatprep.mubr.bf16.mxu0 0
        %2743 = vmatmul.mubr.bf16.gmra.mrb[0].mxu0 %v2599
        %v2744 = vpop.f32.mrb[0].mxu0
        %v2745 = vadd.f32 %v2628, %v2744
        %v2746 = vpop.f32.mrb[0].mxu0
        %v2747 = vpop.f32.mrb[0].mxu0
        %v2748 = vadd.f32 %v2628, %v2747
        %v2749 = vpop.f32.mrb[0].mxu0
        %2750 = vmatprep.mubr.bf16.mxu0 0
        %2751 = vmatmul.mubr.bf16.gmra.mrb[0].mxu0 %v2600
        %v2752 = vpop.f32.mrb[0].mxu0
        %v2753 = vadd.f32 %v2628, %v2752
        %v2754 = vpop.f32.mrb[0].mxu0
        %v2755 = vpop.f32.mrb[0].mxu0
        %v2756 = vadd.f32 %v2628, %v2755
        %v2757 = vpop.f32.mrb[0].mxu0
        %2758 = vmatprep.mubr.bf16.mxu0 0
        %2759 = vmatmul.mubr.bf16.gmra.mrb[0].mxu0 %v2601
        %v2760 = vpop.f32.mrb[0].mxu0
        %v2761 = vadd.f32 %v2628, %v2760
        %v2762 = vpop.f32.mrb[0].mxu0
        %v2763 = vpop.f32.mrb[0].mxu0
        %v2764 = vadd.f32 %v2628, %v2763
        %v2765 = vpop.f32.mrb[0].mxu0
        %2766 = vmatprep.mubr.bf16.mxu0 0
        %2767 = vmatmul.mubr.bf16.gmra.mrb[0].mxu0 %v2602
        %v2768 = vpop.f32.mrb[0].mxu0
        %v2769 = vadd.f32 %v2628, %v2768
        %v2770 = vpop.f32.mrb[0].mxu0
        %v2771 = vpop.f32.mrb[0].mxu0
        %v2772 = vadd.f32 %v2628, %v2771
        %v2773 = vpop.f32.mrb[0].mxu0
        %2774 = vmatprep.mubr.bf16.mxu0 0
        %2775 = vmatmul.mubr.bf16.gmra.mrb[0].mxu0 %v2603
        %v2776 = vpop.f32.mrb[0].mxu0
        %v2777 = vadd.f32 %v2628, %v2776
        %v2778 = vpop.f32.mrb[0].mxu0
        %v2779 = vpop.f32.mrb[0].mxu0
        %v2780 = vadd.f32 %v2628, %v2779
        %v2781 = vpop.f32.mrb[0].mxu0
        %2782 = vmatprep.mubr.bf16.mxu0 0
        %2783 = vmatmul.mubr.bf16.gmra.mrb[0].mxu0 %v2604
        %v2784 = vpop.f32.mrb[0].mxu0
        %v2785 = vadd.f32 %v2628, %v2784
        %v2786 = vpop.f32.mrb[0].mxu0
        %v2787 = vpop.f32.mrb[0].mxu0
        %v2788 = vadd.f32 %v2628, %v2787
        %v2789 = vpop.f32.mrb[0].mxu0
        %2790 = vmatprep.mubr.bf16.mxu0 0
        %2791 = vmatmul.mubr.bf16.gmra.mrb[0].mxu0 %v2605
        %v2792 = vpop.f32.mrb[0].mxu0
        %v2793 = vadd.f32 %v2628, %v2792
        %v2794 = vpop.f32.mrb[0].mxu0
        %v2795 = vpop.f32.mrb[0].mxu0
        %v2796 = vadd.f32 %v2628, %v2795
        %v2797 = vpop.f32.mrb[0].mxu0
        %2798 = vmatprep.mubr.bf16.mxu0 0
        %2799 = vmatmul.mubr.bf16.gmra.mrb[0].mxu0 %v2606
        %v2800 = vpop.f32.mrb[0].mxu0
        %v2801 = vadd.f32 %v2628, %v2800
        %v2802 = vpop.f32.mrb[0].mxu0
        %v2803 = vpop.f32.mrb[0].mxu0
        %v2804 = vadd.f32 %v2628, %v2803
        %v2805 = vpop.f32.mrb[0].mxu0
        %2806 = vdwg.mxu0
        %v2807 = vld [vmem:[%s459] sm:$0xff]
        %v2808 = vld [vmem:[%s459 + $0x8] sm:$0xff]
        %v2809 = vld [vmem:[%s459 + $0x10] sm:$0xff]
        %v2810 = vld [vmem:[%s459 + $0x18] sm:$0xff]
        %v2811 = vld [vmem:[%s459 + $0x20] sm:$0xff]
        %v2812 = vld [vmem:[%s459 + $0x28] sm:$0xff]
        %v2813 = vld [vmem:[%s459 + $0x30] sm:$0xff]
        %v2814 = vld [vmem:[%s459 + $0x38] sm:$0xff]
        %v2815 = vld [vmem:[%s459 + $0x40] sm:$0xff]
        %v2816 = vld [vmem:[%s459 + $0x48] sm:$0xff]
        %v2817 = vld [vmem:[%s459 + $0x50] sm:$0xff]
        %v2818 = vld [vmem:[%s459 + $0x58] sm:$0xff]
        %v2819 = vld [vmem:[%s459 + $0x60] sm:$0xff]
        %v2820 = vld [vmem:[%s459 + $0x68] sm:$0xff]
        %v2821 = vld [vmem:[%s459 + $0x70] sm:$0xff]
        %v2822 = vld [vmem:[%s459 + $0x78] sm:$0xff]
        %v2823 = vld [vmem:[%s459 + $0x80] sm:$0xff]
        %v2824 = vld [vmem:[%s459 + $0x88] sm:$0xff]
        %v2825 = vld [vmem:[%s459 + $0x90] sm:$0xff]
        %v2826 = vld [vmem:[%s459 + $0x98] sm:$0xff]
        %v2827 = vld [vmem:[%s459 + $0xa0] sm:$0xff]
        %v2828 = vld [vmem:[%s459 + $0xa8] sm:$0xff]
        %v2829 = vld [vmem:[%s459 + $0xb0] sm:$0xff]
        %v2830 = vld [vmem:[%s459 + $0xb8] sm:$0xff]
        %v2831 = vadd.f32 %v2713, %v2807
        %v2832 = vadd.f32 %v2716, %v2808
        %v2833 = vadd.f32 %v2721, %v2809
        %v2834 = vadd.f32 %v2724, %v2810
        %v2835 = vadd.f32 %v2729, %v2811
        %v2836 = vadd.f32 %v2732, %v2812
        %v2837 = vadd.f32 %v2737, %v2813
        %v2838 = vadd.f32 %v2740, %v2814
        %v2839 = vadd.f32 %v2745, %v2815
        %v2840 = vadd.f32 %v2748, %v2816
        %v2841 = vadd.f32 %v2753, %v2817
        %v2842 = vadd.f32 %v2756, %v2818
        %v2843 = vadd.f32 %v2761, %v2819
        %v2844 = vadd.f32 %v2764, %v2820
        %v2845 = vadd.f32 %v2769, %v2821
        %v2846 = vadd.f32 %v2772, %v2822
        %v2847 = vadd.f32 %v2777, %v2823
        %v2848 = vadd.f32 %v2780, %v2824
        %v2849 = vadd.f32 %v2785, %v2825
        %v2850 = vadd.f32 %v2788, %v2826
        %v2851 = vadd.f32 %v2793, %v2827
        %v2852 = vadd.f32 %v2796, %v2828
        %v2853 = vadd.f32 %v2801, %v2829
        %v2854 = vadd.f32 %v2804, %v2830
        %v2855 = vmax.f32 %v2831, 0.0
        %v2856 = vmax.f32 %v2832, 0.0
        %v2857 = vmax.f32 %v2833, 0.0
        %v2858 = vmax.f32 %v2834, 0.0
        %v2859 = vmax.f32 %v2835, 0.0
        %v2860 = vmax.f32 %v2836, 0.0
        %v2861 = vmax.f32 %v2837, 0.0
        %v2862 = vmax.f32 %v2838, 0.0
        %v2863 = vmax.f32 %v2839, 0.0
        %v2864 = vmax.f32 %v2840, 0.0
        %v2865 = vmax.f32 %v2841, 0.0
        %v2866 = vmax.f32 %v2842, 0.0
        %v2867 = vmax.f32 %v2843, 0.0
        %v2868 = vmax.f32 %v2844, 0.0
        %v2869 = vmax.f32 %v2845, 0.0
        %v2870 = vmax.f32 %v2846, 0.0
        %v2871 = vmax.f32 %v2847, 0.0
        %v2872 = vmax.f32 %v2848, 0.0
        %v2873 = vmax.f32 %v2849, 0.0
        %v2874 = vmax.f32 %v2850, 0.0
        %v2875 = vmax.f32 %v2851, 0.0
        %v2876 = vmax.f32 %v2852, 0.0
        %v2877 = vmax.f32 %v2853, 0.0
        %v2878 = vmax.f32 %v2854, 0.0
        %2879 = vst [vmem:[%s527] sm:$0xff] %v2855
        %2880 = vst [vmem:[%s527 + $0x8] sm:$0xff] %v2856
        %2881 = vst [vmem:[%s527 + $0x10] sm:$0xff] %v2857
        %2882 = vst [vmem:[%s527 + $0x18] sm:$0xff] %v2858
        %2883 = vst [vmem:[%s527 + $0x20] sm:$0xff] %v2859
        %2884 = vst [vmem:[%s527 + $0x28] sm:$0xff] %v2860
        %2885 = vst [vmem:[%s527 + $0x30] sm:$0xff] %v2861
        %2886 = vst [vmem:[%s527 + $0x38] sm:$0xff] %v2862
        %2887 = vst [vmem:[%s527 + $0x40] sm:$0xff] %v2863
        %2888 = vst [vmem:[%s527 + $0x48] sm:$0xff] %v2864
        %2889 = vst [vmem:[%s527 + $0x50] sm:$0xff] %v2865
        %2890 = vst [vmem:[%s527 + $0x58] sm:$0xff] %v2866
        %2891 = vst [vmem:[%s527 + $0x60] sm:$0xff] %v2867
        %2892 = vst [vmem:[%s527 + $0x68] sm:$0xff] %v2868
        %2893 = vst [vmem:[%s527 + $0x70] sm:$0xff] %v2869
        %2894 = vst [vmem:[%s527 + $0x78] sm:$0xff] %v2870
        %2895 = vst [vmem:[%s527 + $0x80] sm:$0xff] %v2871
        %2896 = vst [vmem:[%s527 + $0x88] sm:$0xff] %v2872
        %2897 = vst [vmem:[%s527 + $0x90] sm:$0xff] %v2873
        %2898 = vst [vmem:[%s527 + $0x98] sm:$0xff] %v2874
        %2899 = vst [vmem:[%s527 + $0xa0] sm:$0xff] %v2875
        %2900 = vst [vmem:[%s527 + $0xa8] sm:$0xff] %v2876
        %2901 = vst [vmem:[%s527 + $0xb0] sm:$0xff] %v2877
        %2902 = vst [vmem:[%s527 + $0xb8] sm:$0xff] %v2878
        %s2903 = sand.u32 %s308, 1
        %s2904 = scalar_lea.sflag [#allocation5], %s2903
        %s2905 = sand.u32 %s308, 1
        %s2906 = smul.addr %s2905, 192
        %s2907 = scalar_lea.vmem [#allocation11], %s2906
        // Predicated region
        $region77: #{tpu_custom_call.1} parent=59 // pred_check
          %p2908 = pneg %p318
        $region78: #{tpu_custom_call.1} parent=59 // pred_check_branch
          %2910 = sbr.rel (%p2908) target = $region80
        $region79: #{tpu_custom_call.1} parent=59 // pred_region
          %s2911 = smul.u32 %s35, 2
          %s2912 = sadd.s32 %s2911, %s36
          %s2913 = smul.u32 24, %s2912
          %s2915 = ssub.s32 3072, 3072
          %2916 = vsyncadd %s2904, %s2915
          %s2917 = smul.addr %s2913, 128
          %s2918 = scalar_lea.hbm %s10, %s2917
          %s2919 = sshll.u32 %s2907, 4
          %s2920 = int_to_ptr.vmem [resolvable:$true] %s2919
          %2925 = dma.vmem_to_hbm [thread:$0]  %s2920, 3072, %s2918, %s2904, 128, 128, 8
        $region80: #{tpu_custom_call.1} parent=59 // pred_fallthru
          _
      $region60: #{tpu_custom_call.1} parent=5 // pred_fallthru
        _
      %p2926 = scmp.le.s32.totalorder 2, %s26
      // Predicated region
      $region81: #{tpu_custom_call.1} parent=5 // pred_check
        %p2927 = pneg %p2926
      $region82: #{tpu_custom_call.1} parent=5 // pred_check_branch
        %2929 = sbr.rel (%p2927) target = $region84
      $region83: #{tpu_custom_call.1} parent=5 // pred_region
        %s2930 = ssub.s32 %s26, 2
        // Predicated region
        $region85: #{tpu_custom_call.1} parent=83 // pred_check
          %p2931 = pneg %p324
        $region86: #{tpu_custom_call.1} parent=83 // pred_check_branch
          %2933 = sbr.rel (%p2931) target = $region88
        $region87: #{tpu_custom_call.1} parent=83 // pred_region
          %s2934 = sand.u32 %s309, 1
          %s2935 = scalar_lea.sflag [#allocation5], %s2934
          %s2936 = sand.u32 %s309, 1
          %s2937 = smul.addr %s2936, 192
          %s2938 = scalar_lea.vmem [#allocation11], %s2937
          %2939 = dma.done %s2935, 3072
        $region88: #{tpu_custom_call.1} parent=83 // pred_fallthru
          _
      $region84: #{tpu_custom_call.1} parent=5 // pred_fallthru
        _
    $region6: #{tpu_custom_call.1} parent=1 // loop_footer
      %s30 = sadd.s32 1, %s26
    $region7: #{tpu_custom_call.1} parent=1 // loop_footer_branch
      %25 = sbr.rel target = $region3
    $region8: #{tpu_custom_call.1} parent=1 // loop_exit
      _
    %2940 = vsyncpa [#allocation4], 1
    %s2941 = scalar_lea.sflag [#allocation4], 1
    %2942 = vsyncpa %s2941, 1
    %2943 = vsyncpa [#allocation7], 1
    %s2944 = scalar_lea.sflag [#allocation7], 1
    %2945 = vsyncpa %s2944, 1
    %2946 = vsyncpa [#allocation10], 1
    %2947 = vsyncpa [#allocation5], 1
    %s2948 = scalar_lea.sflag [#allocation5], 1
    %2949 = vsyncpa %s2948, 1

</llo_original>
